<compile_context>
chip_gen: v5e
topology: v5e:2x2
jax: 0.10.0
libtpu: 0.0.40
codegen_flags: <defaults>
</compile_context>

<pallas_src>
import functools
import math

import jax
import jax.numpy as jnp
from jax.experimental import pallas as pl
from jax.experimental.pallas import tpu as pltpu


# ----------------------------------------------------------------------------------
# tiling / VMEM helpers
# ----------------------------------------------------------------------------------
_ROW_TILES = (256, 128, 64, 32, 16, 8)     # capped at 256: keeps live intermediates vreg-friendly
_LANE_TILES = (512, 256, 128)


def _pick_tile(dim, align, prefs):
    """Largest preferred tile that divides `dim` and respects `align`; else full dim."""
    for t in prefs:
        if t <= dim and dim % t == 0 and t % align == 0:
            return t
    return dim


def _vmem_limit_bytes():
    """Generation-aware scoped-VMEM request (~0.75x of physical), with a safe fallback."""
    try:
        info = pltpu.get_tpu_info()
        cap = getattr(info, "vmem_capacity_bytes", None)
        if cap:
            return min(int(cap) * 3 // 4, 96 * 1024 * 1024)
    except Exception:
        pass
    return 32 * 1024 * 1024


_VMEM_LIMIT = _vmem_limit_bytes()


def _cparams(sem):
    return pltpu.CompilerParams(dimension_semantics=sem, vmem_limit_bytes=_VMEM_LIMIT)


# ----------------------------------------------------------------------------------
# Tiled matmul (+ optional fused ReLU) - used by subsampling / projector / fallbacks
# ----------------------------------------------------------------------------------
def _linear_kernel(x_ref, w_ref, b_ref, o_ref, acc_ref, *, activation):
    k = pl.program_id(2)

    @pl.when(k == 0)
    def _():
        acc_ref[...] = jnp.zeros_like(acc_ref)

    acc_ref[...] += jnp.dot(x_ref[...].astype(jnp.bfloat16), w_ref[...],
                            preferred_element_type=jnp.float32)

    @pl.when(k == pl.num_programs(2) - 1)
    def _():
        y = acc_ref[...] + b_ref[...]
        if activation == "relu":
            y = jnp.maximum(y, 0.0)
        o_ref[...] = y.astype(o_ref.dtype)


def pallas_linear(x, w, b, activation="none"):
    """x: [..., K] @ w: [K, N] + b[N]  (bf16 operands, f32 accumulation)."""
    lead = x.shape[:-1]
    K = x.shape[-1]
    N = w.shape[-1]
    M = math.prod(lead) if lead else 1
    tm = _pick_tile(M, 8, _ROW_TILES)
    tn = _pick_tile(N, 128, _LANE_TILES)
    tk = _pick_tile(K, 128, _LANE_TILES)
    out = pl.pallas_call(
        functools.partial(_linear_kernel, activation=activation),
        grid=(M // tm, N // tn, K // tk),
        in_specs=[pl.BlockSpec((tm, tk), lambda i, j, k: (i, k)),
                  pl.BlockSpec((tk, tn), lambda i, j, k: (k, j)),
                  pl.BlockSpec((1, tn), lambda i, j, k: (0, j))],
        out_specs=pl.BlockSpec((tm, tn), lambda i, j, k: (i, j)),
        out_shape=jax.ShapeDtypeStruct((M, N), x.dtype),
        scratch_shapes=[pltpu.VMEM((tm, tn), jnp.float32)],
        compiler_params=_cparams(("parallel", "parallel", "arbitrary")),
    )(x.reshape(M, K), w.astype(jnp.bfloat16), b.reshape(1, N).astype(jnp.float32))
    return out.reshape(*lead, N)


# ----------------------------------------------------------------------------------
# Row-tiled LayerNorm / log_softmax
# ----------------------------------------------------------------------------------
def _layernorm_kernel(x_ref, g_ref, b_ref, o_ref, *, eps):
    x = x_ref[...].astype(jnp.float32)
    mean = jnp.mean(x, axis=-1, keepdims=True)
    var = jnp.mean(jnp.square(x - mean), axis=-1, keepdims=True)
    y = (x - mean) * jax.lax.rsqrt(var + eps)
    o_ref[...] = (y * g_ref[...] + b_ref[...]).astype(o_ref.dtype)


def pallas_layernorm(x, g, b, eps=1e-5):
    lead = x.shape[:-1]
    F = x.shape[-1]
    M = math.prod(lead)
    tm = _pick_tile(M, 8, _ROW_TILES)
    out = pl.pallas_call(
        functools.partial(_layernorm_kernel, eps=eps),
        grid=(M // tm,),
        in_specs=[pl.BlockSpec((tm, F), lambda i: (i, 0)),
                  pl.BlockSpec((1, F), lambda i: (0, 0)),
                  pl.BlockSpec((1, F), lambda i: (0, 0))],
        out_specs=pl.BlockSpec((tm, F), lambda i: (i, 0)),
        out_shape=jax.ShapeDtypeStruct((M, F), x.dtype),
        compiler_params=_cparams(("parallel",)),
    )(x.reshape(M, F), g.reshape(1, F), b.reshape(1, F))
    return out.reshape(*lead, F)


def _log_softmax_kernel(x_ref, o_ref):
    x = x_ref[...].astype(jnp.float32)
    m = jnp.max(x, axis=-1, keepdims=True)
    lse = jnp.log(jnp.sum(jnp.exp(x - m), axis=-1, keepdims=True)) + m
    o_ref[...] = (x - lse).astype(o_ref.dtype)


def pallas_log_softmax(x):
    lead = x.shape[:-1]
    V = x.shape[-1]
    M = math.prod(lead)
    tm = _pick_tile(M, 8, (128, 64, 32, 16, 8))
    out = pl.pallas_call(
        _log_softmax_kernel,
        grid=(M // tm,),
        in_specs=[pl.BlockSpec((tm, V), lambda i: (i, 0))],
        out_specs=pl.BlockSpec((tm, V), lambda i: (i, 0)),
        out_shape=jax.ShapeDtypeStruct((M, V), x.dtype),
        compiler_params=_cparams(("parallel",)),
    )(x.reshape(M, V))
    return out.reshape(*lead, V)


# ----------------------------------------------------------------------------------
# Fused FeedForward block: LN -> W1 -> SiLU -> W2 (+ x*res_scale), Hf K-tiled
# ----------------------------------------------------------------------------------
def _ffn_kernel(x_ref, g_ref, bln_ref, w1_ref, b1_ref, w2_ref, b2_ref, o_ref,
                xn_scr, acc_scr, *, eps, res_scale):
    j = pl.program_id(1)

    @pl.when(j == 0)
    def _():
        x = x_ref[...].astype(jnp.float32)
        mean = jnp.mean(x, axis=-1, keepdims=True)
        var = jnp.mean(jnp.square(x - mean), axis=-1, keepdims=True)
        xn_scr[...] = ((x - mean) * jax.lax.rsqrt(var + eps) * g_ref[...]
                       + bln_ref[...]).astype(xn_scr.dtype)
        acc_scr[...] = jnp.zeros_like(acc_scr)

    h = jnp.dot(xn_scr[...], w1_ref[...], preferred_element_type=jnp.float32) + b1_ref[...]
    h = (h * jax.nn.sigmoid(h)).astype(jnp.bfloat16)          # SiLU, bf16 back to the MXU
    acc_scr[...] += jnp.dot(h, w2_ref[...], preferred_element_type=jnp.float32)

    @pl.when(j == pl.num_programs(1) - 1)
    def _():
        y = acc_scr[...] + b2_ref[...]
        # reference: spectrogram * 0.5 + ffn(spectrogram)  (skip path scaled)
        o_ref[...] = (res_scale * x_ref[...].astype(jnp.float32) + y).astype(o_ref.dtype)


def fused_ffn(x, p, res_scale):
    B, S, C = x.shape
    Hf = p["w1"].shape[1]
    M = B * S
    tm = _pick_tile(M, 8, _ROW_TILES)
    tc = _pick_tile(Hf, 128, _LANE_TILES)          # K-tile the hidden dim: bounded weight residency
    out = pl.pallas_call(
        functools.partial(_ffn_kernel, eps=1e-5, res_scale=res_scale),
        grid=(M // tm, Hf // tc),
        in_specs=[pl.BlockSpec((tm, C), lambda i, j: (i, 0)),
                  pl.BlockSpec((1, C), lambda i, j: (0, 0)),
                  pl.BlockSpec((1, C), lambda i, j: (0, 0)),
                  pl.BlockSpec((C, tc), lambda i, j: (0, j)),
                  pl.BlockSpec((1, tc), lambda i, j: (0, j)),
                  pl.BlockSpec((tc, C), lambda i, j: (j, 0)),
                  pl.BlockSpec((1, C), lambda i, j: (0, 0))],
        out_specs=pl.BlockSpec((tm, C), lambda i, j: (i, 0)),
        out_shape=jax.ShapeDtypeStruct((M, C), x.dtype),
        scratch_shapes=[pltpu.VMEM((tm, C), jnp.bfloat16),
                        pltpu.VMEM((tm, C), jnp.float32)],
        compiler_params=_cparams(("parallel", "arbitrary")),
    )(x.reshape(M, C), p["ln_g"].reshape(1, C), p["ln_b"].reshape(1, C),
      p["w1"].astype(jnp.bfloat16), p["b1"].reshape(1, Hf).astype(jnp.float32),
      p["w2"].astype(jnp.bfloat16), p["b2"].reshape(1, C).astype(jnp.float32))
    return out.reshape(B, S, C)


# ----------------------------------------------------------------------------------
# Fused LN + QKV projection + RoPE.  The rotate-half partner is folded into the weight
# (host-side column permutation) and cos / signed-sin are full-width [S, C] tables, so
# the kernel is one matmul + a VPU epilogue.  Outputs are head-major [B, H, S, Dh].
# ----------------------------------------------------------------------------------
def _ln_qkv_rope_kernel(x_ref, g_ref, b_ref, w5_ref, b5_ref, cos_ref, sin_ref,
                        oq_ref, ok_ref, ov_ref, *, eps, n_heads, scale):
    x = x_ref[0].astype(jnp.float32)                          # [ts, C]
    C = x.shape[-1]
    Dh = C // n_heads
    mean = jnp.mean(x, axis=-1, keepdims=True)
    var = jnp.mean(jnp.square(x - mean), axis=-1, keepdims=True)
    xn = ((x - mean) * jax.lax.rsqrt(var + eps) * g_ref[...] + b_ref[...]).astype(jnp.bfloat16)
    z = jnp.dot(xn, w5_ref[...], preferred_element_type=jnp.float32) + b5_ref[...]   # [ts, 5C]
    cos = cos_ref[...]                                        # [ts, C]
    sin = sin_ref[...]                                        # [ts, C] (sign folded)
    q = (z[:, 0:C] * cos + z[:, C:2 * C] * sin) * scale       # q pre-scaled by 1/sqrt(Dh)
    k = z[:, 2 * C:3 * C] * cos + z[:, 3 * C:4 * C] * sin
    v = z[:, 4 * C:5 * C]
    # one-time head split (O(ts*C) write epilogue); the flash kernel itself is loop-free.
    for h in range(n_heads):
        sl = slice(h * Dh, (h + 1) * Dh)
        oq_ref[0, h] = q[:, sl].astype(oq_ref.dtype)
        ok_ref[0, h] = k[:, sl].astype(ok_ref.dtype)
        ov_ref[0, h] = v[:, sl].astype(ov_ref.dtype)


def fused_ln_qkv_rope(x, ln_g, ln_b, w5, b5, cos_c, sin_c, n_heads, scale):
    B, S, C = x.shape
    Dh = C // n_heads
    ts = _pick_tile(S, 8, _ROW_TILES)
    out_sds = jax.ShapeDtypeStruct((B, n_heads, S, Dh), jnp.bfloat16)
    ospec = pl.BlockSpec((1, n_heads, ts, Dh), lambda b, s: (b, 0, s, 0))
    q, k, v = pl.pallas_call(
        functools.partial(_ln_qkv_rope_kernel, eps=1e-5, n_heads=n_heads, scale=scale),
        grid=(B, S // ts),
        in_specs=[pl.BlockSpec((1, ts, C), lambda b, s: (b, s, 0)),
                  pl.BlockSpec((1, C), lambda b, s: (0, 0)),
                  pl.BlockSpec((1, C), lambda b, s: (0, 0)),
                  pl.BlockSpec((C, 5 * C), lambda b, s: (0, 0)),
                  pl.BlockSpec((1, 5 * C), lambda b, s: (0, 0)),
                  pl.BlockSpec((ts, C), lambda b, s: (s, 0)),
                  pl.BlockSpec((ts, C), lambda b, s: (s, 0))],
        out_specs=(ospec, ospec, ospec),
        out_shape=(out_sds, out_sds, out_sds),
        compiler_params=_cparams(("parallel", "parallel")),
    )(x, ln_g.reshape(1, C), ln_b.reshape(1, C), w5, b5, cos_c, sin_c)
    return q, k, v


# ----------------------------------------------------------------------------------
# Flash-style MHSA, head-major: grid (B, H, q-tiles, kv-tiles), online softmax.
# Loop-free body: one lane-dense QK^T and one P@V per grid point.
# ----------------------------------------------------------------------------------
def _flash_kernel(q_ref, k_ref, v_ref, bias_ref, o_ref, m_scr, l_scr, acc_scr):
    ki = pl.program_id(3)

    @pl.when(ki == 0)
    def _():
        m_scr[...] = jnp.full(m_scr.shape, -1e30, jnp.float32)
        l_scr[...] = jnp.zeros_like(l_scr)
        acc_scr[...] = jnp.zeros_like(acc_scr)

    q = q_ref[0, 0]                                           # [tq, Dh] bf16 (roped, pre-scaled)
    k = k_ref[0, 0]                                           # [tk, Dh] bf16
    v = v_ref[0, 0]                                           # [tk, Dh] bf16
    s = jax.lax.dot_general(q, k, (((1,), (1,)), ((), ())),
                            preferred_element_type=jnp.float32)          # [tq, tk]
    s = s + bias_ref[0]                                       # key padding bias [1, tk]
    m_prev = m_scr[...]
    m_new = jnp.maximum(m_prev, jnp.max(s, axis=-1, keepdims=True))
    alpha = jnp.exp(m_prev - m_new)
    p = jnp.exp(s - m_new)
    l_scr[...] = alpha * l_scr[...] + jnp.sum(p, axis=-1, keepdims=True)
    acc_scr[...] = alpha * acc_scr[...] + jnp.dot(p.astype(jnp.bfloat16), v,
                                                  preferred_element_type=jnp.float32)
    m_scr[...] = m_new

    @pl.when(ki == pl.num_programs(3) - 1)
    def _():
        # exact divide (no approx reciprocal) to stay close to reference softmax numerics
        o_ref[0, 0] = (acc_scr[...] / l_scr[...]).astype(o_ref.dtype)


def flash_mhsa(q, k, v, bias):
    B, H, S, Dh = q.shape
    Sk = k.shape[2]
    tq = _pick_tile(S, 8, _ROW_TILES)
    tk = _pick_tile(Sk, 128, _LANE_TILES)
    # NOTE: m/l scratch keep a 1-wide lane (padded to 128 lanes); minor waste, accepted.
    return pl.pallas_call(
        _flash_kernel,
        grid=(B, H, S // tq, Sk // tk),
        in_specs=[pl.BlockSpec((1, 1, tq, Dh), lambda b, h, qi, ki: (b, h, qi, 0)),
                  pl.BlockSpec((1, 1, tk, Dh), lambda b, h, qi, ki: (b, h, ki, 0)),
                  pl.BlockSpec((1, 1, tk, Dh), lambda b, h, qi, ki: (b, h, ki, 0)),
                  pl.BlockSpec((1, 1, tk), lambda b, h, qi, ki: (b, 0, ki))],
        out_specs=pl.BlockSpec((1, 1, tq, Dh), lambda b, h, qi, ki: (b, h, qi, 0)),
        out_shape=jax.ShapeDtypeStruct((B, H, S, Dh), jnp.bfloat16),
        scratch_shapes=[pltpu.VMEM((tq, 1), jnp.float32),
                        pltpu.VMEM((tq, 1), jnp.float32),
                        pltpu.VMEM((tq, Dh), jnp.float32)],
        compiler_params=_cparams(("parallel", "parallel", "parallel", "arbitrary")),
    )(q, k, v, bias)


# ----------------------------------------------------------------------------------
# Attention output projection: reduces over heads on the grid (no HBM transpose),
# fused with the residual add:  out = x + concat_heads(attn) @ Wo + bo
# ----------------------------------------------------------------------------------
def _attn_out_kernel(a_ref, w_ref, b_ref, res_ref, o_ref, acc_ref):
    h = pl.program_id(2)

    @pl.when(h == 0)
    def _():
        acc_ref[...] = jnp.zeros_like(acc_ref)

    acc_ref[...] += jnp.dot(a_ref[0, 0], w_ref[0], preferred_element_type=jnp.float32)

    @pl.when(h == pl.num_programs(2) - 1)
    def _():
        o_ref[0] = (acc_ref[...] + b_ref[...]
                    + res_ref[0].astype(jnp.float32)).astype(o_ref.dtype)


def attn_out_proj(attn, wo_hm, bo, residual):
    B, H, S, Dh = attn.shape
    C = wo_hm.shape[-1]
    tm = _pick_tile(S, 8, _ROW_TILES)
    return pl.pallas_call(
        _attn_out_kernel,
        grid=(B, S // tm, H),
        in_specs=[pl.BlockSpec((1, 1, tm, Dh), lambda b, i, h: (b, h, i, 0)),
                  pl.BlockSpec((1, Dh, C), lambda b, i, h: (h, 0, 0)),
                  pl.BlockSpec((1, C), lambda b, i, h: (0, 0)),
                  pl.BlockSpec((1, tm, C), lambda b, i, h: (b, i, 0))],
        out_specs=pl.BlockSpec((1, tm, C), lambda b, i, h: (b, i, 0)),
        out_shape=jax.ShapeDtypeStruct((B, S, C), residual.dtype),
        scratch_shapes=[pltpu.VMEM((tm, C), jnp.float32)],
        compiler_params=_cparams(("parallel", "parallel", "arbitrary")),
    )(attn, wo_hm, bo.reshape(1, C).astype(jnp.float32), residual)


# ----------------------------------------------------------------------------------
# Fused Convolution block: LN -> pw1+GLU -> depthwise conv + BN(eval) + SiLU -> pw2 (+res)
# ----------------------------------------------------------------------------------
def _conv_block_kernel(x_ref, g_ref, bln_ref, pw1_w_ref, pw1_b_ref, dw_w_ref, dw_b_ref,
                       bn_scale_ref, bn_shift_ref, pw2_w_ref, pw2_b_ref, o_ref, *, eps, K):
    x = x_ref[0].astype(jnp.float32)                          # [S, C]
    S, C = x.shape
    mean = jnp.mean(x, axis=-1, keepdims=True)
    var = jnp.mean(jnp.square(x - mean), axis=-1, keepdims=True)
    xn = ((x - mean) * jax.lax.rsqrt(var + eps) * g_ref[...] + bln_ref[...]).astype(jnp.bfloat16)
    h = jnp.dot(xn, pw1_w_ref[...], preferred_element_type=jnp.float32) + pw1_b_ref[...]
    h = h[:, :C] * jax.nn.sigmoid(h[:, C:])                   # GLU

    pad_l = (K - 1) // 2
    pad_r = (K - 1) - pad_l
    parts = []
    if pad_l:
        parts.append(jnp.zeros((pad_l, C), jnp.float32))
    parts.append(h)
    if pad_r:
        parts.append(jnp.zeros((pad_r, C), jnp.float32))
    hp = jnp.concatenate(parts, axis=0) if len(parts) > 1 else h   # [S+K-1, C]

    # TODO(synk): replace padded sublane slices with pltpu.roll taps / halo time-tiling
    #             (grid over the time axis) for long sequences on v7x's 64 MiB VMEM.
    w = dw_w_ref[...]                                         # [K, C]
    acc = jnp.zeros((S, C), jnp.float32)
    for kk in range(K):                                       # unrolled depthwise taps
        acc = acc + hp[kk:kk + S, :] * w[kk:kk + 1, :]
    acc = acc + dw_b_ref[...]
    y = acc * bn_scale_ref[...] + bn_shift_ref[...]           # BatchNorm (eval, pre-folded)
    y = y * jax.nn.sigmoid(y)                                 # SiLU
    y = jnp.dot(y.astype(jnp.bfloat16), pw2_w_ref[...],
                preferred_element_type=jnp.float32) + pw2_b_ref[...]
    o_ref[0] = (x + y).astype(o_ref.dtype)                    # residual (scale 1.0)


def fused_conv_block(x, p, K_dw):
    B, S, C = x.shape
    inv_std = 1.0 / jnp.sqrt(p["bn_var"] + 1e-5)
    bn_scale = (p["bn_w"] * inv_std).reshape(1, C)
    bn_shift = (p["bn_b"] - p["bn_mean"] * p["bn_w"] * inv_std).reshape(1, C)
    return pl.pallas_call(
        functools.partial(_conv_block_kernel, eps=1e-5, K=K_dw),
        grid=(B,),
        in_specs=[pl.BlockSpec((1, S, C), lambda b: (b, 0, 0)),
                  pl.BlockSpec((1, C), lambda b: (0, 0)),
                  pl.BlockSpec((1, C), lambda b: (0, 0)),
                  pl.BlockSpec((C, 2 * C), lambda b: (0, 0)),
                  pl.BlockSpec((1, 2 * C), lambda b: (0, 0)),
                  pl.BlockSpec((K_dw, C), lambda b: (0, 0)),
                  pl.BlockSpec((1, C), lambda b: (0, 0)),
                  pl.BlockSpec((1, C), lambda b: (0, 0)),
                  pl.BlockSpec((1, C), lambda b: (0, 0)),
                  pl.BlockSpec((C, C), lambda b: (0, 0)),
                  pl.BlockSpec((1, C), lambda b: (0, 0))],
        out_specs=pl.BlockSpec((1, S, C), lambda b: (b, 0, 0)),
        out_shape=jax.ShapeDtypeStruct((B, S, C), x.dtype),
        compiler_params=_cparams(("parallel",)),
    )(x, p["ln_g"].reshape(1, C), p["ln_b"].reshape(1, C),
      p["pw1_w"].astype(jnp.bfloat16), p["pw1_b"].reshape(1, 2 * C),
      p["dw_w"], p["dw_b"].reshape(1, C),
      bn_scale, bn_shift,
      p["pw2_w"].astype(jnp.bfloat16), p["pw2_b"].reshape(1, C))


# ----------------------------------------------------------------------------------
# Fused logits + log_softmax (VMEM-bounded fast path), tiled fallback otherwise
# ----------------------------------------------------------------------------------
def _logits_logsoftmax_kernel(x_ref, w_ref, b_ref, o_ref):
    y = jnp.dot(x_ref[...].astype(jnp.bfloat16), w_ref[...],
                preferred_element_type=jnp.float32) + b_ref[...]
    m = jnp.max(y, axis=-1, keepdims=True)
    lse = jnp.log(jnp.sum(jnp.exp(y - m), axis=-1, keepdims=True)) + m
    o_ref[...] = (y - lse).astype(o_ref.dtype)


def fused_logits_log_softmax(x, w, b):
    lead = x.shape[:-1]
    C = x.shape[-1]
    V = w.shape[-1]
    M = math.prod(lead)
    tm = _pick_tile(M, 8, (128, 64, 32, 16, 8))    # cap rows: keep [tm, V] f32 logits small
    fused_bytes = 2 * (C * V * 2) + 3 * (tm * V * 4)   # 2x-buffered bf16 weight + f32 logits/out
    if fused_bytes <= _VMEM_LIMIT // 4:
        out = pl.pallas_call(
            _logits_logsoftmax_kernel,
            grid=(M // tm,),
            in_specs=[pl.BlockSpec((tm, C), lambda i: (i, 0)),
                      pl.BlockSpec((C, V), lambda i: (0, 0)),
                      pl.BlockSpec((1, V), lambda i: (0, 0))],
            out_specs=pl.BlockSpec((tm, V), lambda i: (i, 0)),
            out_shape=jax.ShapeDtypeStruct((M, V), x.dtype),
            compiler_params=_cparams(("parallel",)),
        )(x.reshape(M, C), w.astype(jnp.bfloat16), b.reshape(1, V).astype(jnp.float32))
        return out.reshape(*lead, V)
    logits = pallas_linear(x, w, b)
    return pallas_log_softmax(logits)


# ----------------------------------------------------------------------------------
# JAX glue: im2col (subsampling), attention block, conformer block, full forward
# ----------------------------------------------------------------------------------
def im2col(x, k, stride, pad):
    """x: [B, H, W, Cin] -> ([B*Ho*Wo, k*k*Cin], Ho, Wo); patch order (ki, kj, cin)."""
    B, H, W, Cin = x.shape
    xp = jnp.pad(x, ((0, 0), (pad, pad), (pad, pad), (0, 0)))
    Ho = (H + 2 * pad - k) // stride + 1
    Wo = (W + 2 * pad - k) // stride + 1
    patches = []
    for ki in range(k):
        for kj in range(k):
            patches.append(xp[:, ki:ki + stride * Ho:stride, kj:kj + stride * Wo:stride, :])
    col = jnp.stack(patches, axis=3)                          # [B, Ho, Wo, k*k, Cin]
    return col.reshape(B * Ho * Wo, k * k * Cin), Ho, Wo


def _pad_seq(a, target, axis, value=0.0):
    pad = target - a.shape[axis]
    if pad <= 0:
        return a
    cfg = [(0, 0)] * a.ndim
    cfg[axis] = (0, pad)
    return jnp.pad(a, cfg, constant_values=value)


def attention_block(p, x, bias, cos_c, sin_c, n_heads):
    B, S, C = x.shape
    Dh = C // n_heads
    d = Dh // 2
    scale = 1.0 / math.sqrt(Dh)

    # fold the rotate-half "partner" into the weight (host-side column permutation):
    # W5 = [Wq | Wq_rot | Wk | Wk_rot | Wv], so the kernel applies RoPE full-width with
    # no per-head slicing and no lane rolls.
    wq, wk, wv = p["w_qkv"][:, :C], p["w_qkv"][:, C:2 * C], p["w_qkv"][:, 2 * C:]
    bq, bk, bv = p["b_qkv"][:C], p["b_qkv"][C:2 * C], p["b_qkv"][2 * C:]
    perm = jnp.asarray([h * Dh + (j + d) % Dh for h in range(n_heads) for j in range(Dh)],
                       dtype=jnp.int32)
    w5 = jnp.concatenate([wq, wq[:, perm], wk, wk[:, perm], wv], axis=1).astype(jnp.bfloat16)
    b5 = jnp.concatenate([bq, bq[perm], bk, bk[perm], bv]).reshape(1, 5 * C).astype(jnp.float32)

    q, k, v = fused_ln_qkv_rope(x, p["ln_g"], p["ln_b"], w5, b5, cos_c, sin_c, n_heads, scale)

    # pad the sequence to a multiple of 128 (attention only) so the kv axis pipelines;
    # padded keys get -1e9 bias, padded query rows are sliced off afterwards.
    S_run = S
    if S > 128 and S % 128 != 0:
        S_run = ((S + 127) // 128) * 128
    if S_run != S:
        q = _pad_seq(q, S_run, 2)
        k = _pad_seq(k, S_run, 2)
        v = _pad_seq(v, S_run, 2)
        bias = _pad_seq(bias, S_run, 2, value=-1e9)

    attn = flash_mhsa(q, k, v, bias)                          # [B, H, S_run, Dh] bf16
    if S_run != S:
        attn = attn[:, :, :S, :]

    wo_hm = p["wo"].reshape(n_heads, Dh, C).astype(jnp.bfloat16)
    return attn_out_proj(attn, wo_hm, p["bo"], x)             # x + attn @ Wo + bo


def conformer_block(p, x, bias, cos_c, sin_c, n_heads, K_dw):
    x = fused_ffn(x, p["ffn1"], res_scale=0.5)                # x*0.5 + FFN1(x)
    x = attention_block(p["attn"], x, bias, cos_c, sin_c, n_heads)  # x + Attn(x)
    x = fused_conv_block(x, p["conv"], K_dw)                  # x + Conv(x)
    x = fused_ffn(x, p["ffn2"], res_scale=0.5)                # x*0.5 + FFN2(x)
    x = pallas_layernorm(x, p["ln_g"], p["ln_b"])
    return x


def conformer_forward(params, spectrogram, spectrogram_length, *, n_heads, K_dw, C):
    # spectrogram: [B, n_input_features, T]  ->  transpose(1, 2)
    x = jnp.transpose(spectrogram, (0, 2, 1))                 # [B, T, F_in]
    B, T, F_in = x.shape

    # --- SubsamplingBlock: Conv2d(1,C,3,s2,p1)+ReLU, Conv2d(C,C,3,s2,p1)+ReLU ---
    # TODO(synk): exact SubsamplingBlock definition not provided; standard 2x Conv2d/s2 used.
    x4 = x[:, :, :, None]                                     # [B, T, F_in, 1] channel-last
    col1, To1, Fo1 = im2col(x4, 3, 2, 1)
    h = pallas_linear(col1, params["sub"]["w1"], params["sub"]["b1"], activation="relu")
    h = h.reshape(B, To1, Fo1, C)
    col2, To2, Fo2 = im2col(h, 3, 2, 1)
    h = pallas_linear(col2, params["sub"]["w2"], params["sub"]["b2"], activation="relu")
    h = h.reshape(B, To2, Fo2, C)
    x = jnp.transpose(h, (0, 1, 3, 2)).reshape(B, To2, C * Fo2)  # flatten (channel, freq)

    def sub_len(l):
        return (l + 2 * 1 - 3) // 2 + 1

    lengths = sub_len(sub_len(spectrogram_length))

    # --- projector ---
    x = pallas_linear(x, params["proj"]["w"], params["proj"]["b"])  # [B, S, C]
    S = x.shape[1]

    # padding mask -> additive key bias, shaped [B, 1, S] for lane-dense tiling
    valid = jnp.arange(S)[None, :] < lengths[:, None]
    bias = jnp.where(valid, 0.0, -1e9).astype(jnp.float32).reshape(B, 1, S)

    # rotary tables broadcast to full width [S, C] (identical per head, sign of
    # the rotate-half folded into the sin table)
    Dh = C // n_heads
    d = Dh // 2
    inv_freq = 1.0 / (10000.0 ** (jnp.arange(0, d, dtype=jnp.float32) * 2.0 / Dh))
    ang = jnp.arange(S, dtype=jnp.float32)[:, None] * inv_freq[None, :]   # [S, Dh/2]
    cos_h = jnp.concatenate([jnp.cos(ang), jnp.cos(ang)], axis=-1)        # [S, Dh]
    sin_h = jnp.concatenate([-jnp.sin(ang), jnp.sin(ang)], axis=-1)       # [S, Dh]
    cos_c = jnp.tile(cos_h, (1, n_heads))                                 # [S, C]
    sin_c = jnp.tile(sin_h, (1, n_heads))                                 # [S, C]

    for layer_p in params["layers"]:
        x = conformer_block(layer_p, x, bias, cos_c, sin_c, n_heads, K_dw)

    log_probs = fused_logits_log_softmax(x, params["logits"]["w"], params["logits"]["b"])
    return {"log_probs": log_probs, "log_probs_length": lengths}


# ----------------------------------------------------------------------------------
# Deterministic parameter init (synthetic; NOT a checkpoint load)
# ----------------------------------------------------------------------------------
def init_params(key, F_in, C, H_ffn, n_heads, n_layers, K_dw, n_tokens):
    keys = iter(jax.random.split(key, 256))

    def w(shape, scale=0.05):
        return scale * jax.random.normal(next(keys), shape, jnp.float32)

    zeros = lambda s: jnp.zeros(s, jnp.float32)
    ones = lambda s: jnp.ones(s, jnp.float32)

    def ffn_p():
        return {"ln_g": ones((C,)), "ln_b": zeros((C,)),
                "w1": w((C, H_ffn)), "b1": zeros((H_ffn,)),
                "w2": w((H_ffn, C)), "b2": zeros((C,))}

    params = {
        "sub": {"w1": w((9 * 1, C)), "b1": zeros((C,)),
                "w2": w((9 * C, C)), "b2": zeros((C,))},
        "proj": {"w": w((C * (F_in // 4), C)), "b": zeros((C,))},
        "layers": [],
        "logits": {"w": w((C, n_tokens)), "b": zeros((n_tokens,))},
    }
    for _ in range(n_layers):
        params["layers"].append({
            "ffn1": ffn_p(),
            "attn": {"ln_g": ones((C,)), "ln_b": zeros((C,)),
                     "w_qkv": w((C, 3 * C)), "b_qkv": zeros((3 * C,)),
                     "wo": w((C, C)), "bo": zeros((C,))},
            "conv": {"ln_g": ones((C,)), "ln_b": zeros((C,)),
                     "pw1_w": w((C, 2 * C)), "pw1_b": zeros((2 * C,)),
                     "dw_w": w((K_dw, C)), "dw_b": zeros((C,)),
                     "bn_w": ones((C,)), "bn_b": zeros((C,)),
                     "bn_mean": zeros((C,)), "bn_var": ones((C,)),
                     "pw2_w": w((C, C)), "pw2_b": zeros((C,))},
            "ffn2": ffn_p(),
            "ln_g": ones((C,)), "ln_b": zeros((C,)),
        })
    return params


# ----------------------------------------------------------------------------------
if __name__ == "__main__":
    # small shapes consistent with the module
    F_in, C, H_ffn, n_heads, n_layers, K_dw, n_tokens = 16, 32, 64, 4, 2, 3, 16
    B, T = 2, 16

    key = jax.random.PRNGKey(0)
    k_param, k_spec = jax.random.split(key)
    params = init_params(k_param, F_in, C, H_ffn, n_heads, n_layers, K_dw, n_tokens)

    spectrogram = jax.random.normal(k_spec, (B, F_in, T), jnp.float32)
    spectrogram_length = jnp.array([16, 12], dtype=jnp.int32)

    fwd = jax.jit(functools.partial(conformer_forward, n_heads=n_heads, K_dw=K_dw, C=C))
    out = fwd(params, spectrogram, spectrogram_length)
    jax.block_until_ready(out["log_probs"])

    assert out["log_probs"].shape == (B, T // 4, n_tokens)
    assert out["log_probs_length"].shape == (B,)
    assert bool(jnp.all(jnp.isfinite(out["log_probs"])))
    print("KERNEL_OK")
</pallas_src>

<mosaic_0001>
module attributes {stable_mosaic.version = 11 : i64} {
  func.func @_linear_kernel(%arg0: i32, %arg1: i32, %arg2: i32, %arg3: memref<128x9xf32, #tpu.memory_space<vmem>>, %arg4: memref<9x32xbf16, #tpu.memory_space<vmem>>, %arg5: memref<1x32xf32, #tpu.memory_space<vmem>>, %arg6: memref<128x32xf32, #tpu.memory_space<vmem>>, %arg7: memref<128x32xf32, #tpu.memory_space<vmem>>) attributes {dimension_semantics = [#tpu.dimension_semantics<parallel>, #tpu.dimension_semantics<parallel>, #tpu.dimension_semantics<arbitrary>], iteration_bounds = array<i64: 1, 1, 1>, scalar_prefetch = 0 : i64, scratch_operands = 1 : i64, tpu.core_type = #tpu.core_type<tc>, window_params = [{transform_indices = @transform_0, window_bounds = array<i64: 128, 9>}, {transform_indices = @transform_1, window_bounds = array<i64: 9, 32>}, {transform_indices = @transform_2, window_bounds = array<i64: 1, 32>}, {transform_indices = @transform_3, window_bounds = array<i64: 128, 32>}]} {
    %c0_i32 = arith.constant 0 : i32
    %0 = arith.cmpi eq, %arg2, %c0_i32 : i32
    %1 = arith.extui %0 : i1 to i32
    %c0_i32_0 = arith.constant 0 : i32
    %2 = arith.cmpi ne, %1, %c0_i32_0 : i32
    scf.if %2 {
      %cst_10 = arith.constant 0.000000e+00 : f32
      %13 = vector.broadcast %cst_10 : f32 to vector<128x32xf32>
      %c0_11 = arith.constant 0 : index
      %c0_12 = arith.constant 0 : index
      %14 = vector.load %arg7[%c0_11, %c0_12] : memref<128x32xf32, #tpu.memory_space<vmem>>, vector<128x32xf32>
      tpu.vector_store %arg7[%c0_11, %c0_12], %13 {strides = array<i32>} : memref<128x32xf32, #tpu.memory_space<vmem>>, vector<128x32xf32>,
    } else {
    }
    %c0 = arith.constant 0 : index
    %c0_1 = arith.constant 0 : index
    %3 = vector.load %arg7[%c0, %c0_1] : memref<128x32xf32, #tpu.memory_space<vmem>>, vector<128x32xf32>
    %c0_2 = arith.constant 0 : index
    %c0_3 = arith.constant 0 : index
    %4 = vector.load %arg3[%c0_2, %c0_3] : memref<128x9xf32, #tpu.memory_space<vmem>>, vector<128x9xf32>
    %5 = arith.truncf %4 : vector<128x9xf32> to vector<128x9xbf16>
    %c0_4 = arith.constant 0 : index
    %c0_5 = arith.constant 0 : index
    %6 = vector.load %arg4[%c0_4, %c0_5] : memref<9x32xbf16, #tpu.memory_space<vmem>>, vector<9x32xbf16>
    %cst = arith.constant dense<0.000000e+00> : vector<128x32xf32>
    %7 = tpu.matmul %5, %6, %cst {dimension_numbers = #tpu.dot_dimension_numbers<[1], [0], [0], [1], [0, 0, 1, 1], [], []>} : vector<128x9xbf16>, vector<9x32xbf16>, vector<128x32xf32> -> vector<128x32xf32>
    %8 = arith.addf %3, %7 : vector<128x32xf32>
    %c0_6 = arith.constant 0 : index
    %c0_7 = arith.constant 0 : index
    %9 = vector.load %arg7[%c0_6, %c0_7] : memref<128x32xf32, #tpu.memory_space<vmem>>, vector<128x32xf32>
    tpu.vector_store %arg7[%c0_6, %c0_7], %8 {strides = array<i32>} : memref<128x32xf32, #tpu.memory_space<vmem>>, vector<128x32xf32>,
    %c0_i32_8 = arith.constant 0 : i32
    %10 = arith.cmpi eq, %arg2, %c0_i32_8 : i32
    %11 = arith.extui %10 : i1 to i32
    %c0_i32_9 = arith.constant 0 : i32
    %12 = arith.cmpi ne, %11, %c0_i32_9 : i32
    scf.if %12 {
      %c0_10 = arith.constant 0 : index
      %c0_11 = arith.constant 0 : index
      %13 = vector.load %arg7[%c0_10, %c0_11] : memref<128x32xf32, #tpu.memory_space<vmem>>, vector<128x32xf32>
      %c0_12 = arith.constant 0 : index
      %c0_13 = arith.constant 0 : index
      %14 = vector.load %arg5[%c0_12, %c0_13] : memref<1x32xf32, #tpu.memory_space<vmem>>, vector<1x32xf32>
      %15 = vector.broadcast %14 : vector<1x32xf32> to vector<128x32xf32>
      %16 = arith.addf %13, %15 : vector<128x32xf32>
      %cst_14 = arith.constant 0.000000e+00 : f32
      %17 = vector.broadcast %cst_14 : f32 to vector<128x32xf32>
      %18 = arith.maximumf %16, %17 : vector<128x32xf32>
      %c0_15 = arith.constant 0 : index
      %c0_16 = arith.constant 0 : index
      %19 = vector.load %arg6[%c0_15, %c0_16] : memref<128x32xf32, #tpu.memory_space<vmem>>, vector<128x32xf32>
      tpu.vector_store %arg6[%c0_15, %c0_16], %18 {strides = array<i32>} : memref<128x32xf32, #tpu.memory_space<vmem>>, vector<128x32xf32>,
    } else {
    }
    return
  }
  func.func @transform_0(%arg0: i32, %arg1: i32, %arg2: i32) -> (i32, i32) {
    %c0_i32 = arith.constant 0 : i32
    return %arg0, %arg2 : i32, i32
  }
  func.func @transform_1(%arg0: i32, %arg1: i32, %arg2: i32) -> (i32, i32) {
    %c0_i32 = arith.constant 0 : i32
    return %arg2, %arg1 : i32, i32
  }
  func.func @transform_2(%arg0: i32, %arg1: i32, %arg2: i32) -> (i32, i32) {
    %c0_i32 = arith.constant 0 : i32
    %c0_i32_0 = arith.constant 0 : i32
    return %c0_i32, %arg1 : i32, i32
  }
  func.func @transform_3(%arg0: i32, %arg1: i32, %arg2: i32) -> (i32, i32) {
    %c0_i32 = arith.constant 0 : i32
    return %arg0, %arg1 : i32, i32
  }
}

module attributes {stable_mosaic.version = 11 : i64} {
  func.func @_linear_kernel(%arg0: i32, %arg1: i32, %arg2: i32, %arg3: memref<32x288xf32, #tpu.memory_space<vmem>>, %arg4: memref<288x32xbf16, #tpu.memory_space<vmem>>, %arg5: memref<1x32xf32, #tpu.memory_space<vmem>>, %arg6: memref<32x32xf32, #tpu.memory_space<vmem>>, %arg7: memref<32x32xf32, #tpu.memory_space<vmem>>) attributes {dimension_semantics = [#tpu.dimension_semantics<parallel>, #tpu.dimension_semantics<parallel>, #tpu.dimension_semantics<arbitrary>], iteration_bounds = array<i64: 1, 1, 1>, scalar_prefetch = 0 : i64, scratch_operands = 1 : i64, tpu.core_type = #tpu.core_type<tc>, window_params = [{transform_indices = @transform_0, window_bounds = array<i64: 32, 288>}, {transform_indices = @transform_1, window_bounds = array<i64: 288, 32>}, {transform_indices = @transform_2, window_bounds = array<i64: 1, 32>}, {transform_indices = @transform_3, window_bounds = array<i64: 32, 32>}]} {
    %c0_i32 = arith.constant 0 : i32
    %0 = arith.cmpi eq, %arg2, %c0_i32 : i32
    %1 = arith.extui %0 : i1 to i32
    %c0_i32_0 = arith.constant 0 : i32
    %2 = arith.cmpi ne, %1, %c0_i32_0 : i32
    scf.if %2 {
      %cst_10 = arith.constant 0.000000e+00 : f32
      %13 = vector.broadcast %cst_10 : f32 to vector<32x32xf32>
      %c0_11 = arith.constant 0 : index
      %c0_12 = arith.constant 0 : index
      %14 = vector.load %arg7[%c0_11, %c0_12] : memref<32x32xf32, #tpu.memory_space<vmem>>, vector<32x32xf32>
      tpu.vector_store %arg7[%c0_11, %c0_12], %13 {strides = array<i32>} : memref<32x32xf32, #tpu.memory_space<vmem>>, vector<32x32xf32>,
    } else {
    }
    %c0 = arith.constant 0 : index
    %c0_1 = arith.constant 0 : index
    %3 = vector.load %arg7[%c0, %c0_1] : memref<32x32xf32, #tpu.memory_space<vmem>>, vector<32x32xf32>
    %c0_2 = arith.constant 0 : index
    %c0_3 = arith.constant 0 : index
    %4 = vector.load %arg3[%c0_2, %c0_3] : memref<32x288xf32, #tpu.memory_space<vmem>>, vector<32x288xf32>
    %5 = arith.truncf %4 : vector<32x288xf32> to vector<32x288xbf16>
    %c0_4 = arith.constant 0 : index
    %c0_5 = arith.constant 0 : index
    %6 = vector.load %arg4[%c0_4, %c0_5] : memref<288x32xbf16, #tpu.memory_space<vmem>>, vector<288x32xbf16>
    %cst = arith.constant dense<0.000000e+00> : vector<32x32xf32>
    %7 = tpu.matmul %5, %6, %cst {dimension_numbers = #tpu.dot_dimension_numbers<[1], [0], [0], [1], [0, 0, 1, 1], [], []>} : vector<32x288xbf16>, vector<288x32xbf16>, vector<32x32xf32> -> vector<32x32xf32>
    %8 = arith.addf %3, %7 : vector<32x32xf32>
    %c0_6 = arith.constant 0 : index
    %c0_7 = arith.constant 0 : index
    %9 = vector.load %arg7[%c0_6, %c0_7] : memref<32x32xf32, #tpu.memory_space<vmem>>, vector<32x32xf32>
    tpu.vector_store %arg7[%c0_6, %c0_7], %8 {strides = array<i32>} : memref<32x32xf32, #tpu.memory_space<vmem>>, vector<32x32xf32>,
    %c0_i32_8 = arith.constant 0 : i32
    %10 = arith.cmpi eq, %arg2, %c0_i32_8 : i32
    %11 = arith.extui %10 : i1 to i32
    %c0_i32_9 = arith.constant 0 : i32
    %12 = arith.cmpi ne, %11, %c0_i32_9 : i32
    scf.if %12 {
      %c0_10 = arith.constant 0 : index
      %c0_11 = arith.constant 0 : index
      %13 = vector.load %arg7[%c0_10, %c0_11] : memref<32x32xf32, #tpu.memory_space<vmem>>, vector<32x32xf32>
      %c0_12 = arith.constant 0 : index
      %c0_13 = arith.constant 0 : index
      %14 = vector.load %arg5[%c0_12, %c0_13] : memref<1x32xf32, #tpu.memory_space<vmem>>, vector<1x32xf32>
      %15 = vector.broadcast %14 : vector<1x32xf32> to vector<32x32xf32>
      %16 = arith.addf %13, %15 : vector<32x32xf32>
      %cst_14 = arith.constant 0.000000e+00 : f32
      %17 = vector.broadcast %cst_14 : f32 to vector<32x32xf32>
      %18 = arith.maximumf %16, %17 : vector<32x32xf32>
      %c0_15 = arith.constant 0 : index
      %c0_16 = arith.constant 0 : index
      %19 = vector.load %arg6[%c0_15, %c0_16] : memref<32x32xf32, #tpu.memory_space<vmem>>, vector<32x32xf32>
      tpu.vector_store %arg6[%c0_15, %c0_16], %18 {strides = array<i32>} : memref<32x32xf32, #tpu.memory_space<vmem>>, vector<32x32xf32>,
    } else {
    }
    return
  }
  func.func @transform_0(%arg0: i32, %arg1: i32, %arg2: i32) -> (i32, i32) {
    %c0_i32 = arith.constant 0 : i32
    return %arg0, %arg2 : i32, i32
  }
  func.func @transform_1(%arg0: i32, %arg1: i32, %arg2: i32) -> (i32, i32) {
    %c0_i32 = arith.constant 0 : i32
    return %arg2, %arg1 : i32, i32
  }
  func.func @transform_2(%arg0: i32, %arg1: i32, %arg2: i32) -> (i32, i32) {
    %c0_i32 = arith.constant 0 : i32
    %c0_i32_0 = arith.constant 0 : i32
    return %c0_i32, %arg1 : i32, i32
  }
  func.func @transform_3(%arg0: i32, %arg1: i32, %arg2: i32) -> (i32, i32) {
    %c0_i32 = arith.constant 0 : i32
    return %arg0, %arg1 : i32, i32
  }
}

module attributes {stable_mosaic.version = 11 : i64} {
  func.func @_linear_kernel(%arg0: i32, %arg1: i32, %arg2: i32, %arg3: memref<8x128xf32, #tpu.memory_space<vmem>>, %arg4: memref<128x32xbf16, #tpu.memory_space<vmem>>, %arg5: memref<1x32xf32, #tpu.memory_space<vmem>>, %arg6: memref<8x32xf32, #tpu.memory_space<vmem>>, %arg7: memref<8x32xf32, #tpu.memory_space<vmem>>) attributes {dimension_semantics = [#tpu.dimension_semantics<parallel>, #tpu.dimension_semantics<parallel>, #tpu.dimension_semantics<arbitrary>], iteration_bounds = array<i64: 1, 1, 1>, scalar_prefetch = 0 : i64, scratch_operands = 1 : i64, tpu.core_type = #tpu.core_type<tc>, window_params = [{transform_indices = @transform_0, window_bounds = array<i64: 8, 128>}, {transform_indices = @transform_1, window_bounds = array<i64: 128, 32>}, {transform_indices = @transform_2, window_bounds = array<i64: 1, 32>}, {transform_indices = @transform_3, window_bounds = array<i64: 8, 32>}]} {
    %c0_i32 = arith.constant 0 : i32
    %0 = arith.cmpi eq, %arg2, %c0_i32 : i32
    %1 = arith.extui %0 : i1 to i32
    %c0_i32_0 = arith.constant 0 : i32
    %2 = arith.cmpi ne, %1, %c0_i32_0 : i32
    scf.if %2 {
      %cst_10 = arith.constant 0.000000e+00 : f32
      %13 = vector.broadcast %cst_10 : f32 to vector<8x32xf32>
      %c0_11 = arith.constant 0 : index
      %c0_12 = arith.constant 0 : index
      %14 = vector.load %arg7[%c0_11, %c0_12] : memref<8x32xf32, #tpu.memory_space<vmem>>, vector<8x32xf32>
      tpu.vector_store %arg7[%c0_11, %c0_12], %13 {strides = array<i32>} : memref<8x32xf32, #tpu.memory_space<vmem>>, vector<8x32xf32>,
    } else {
    }
    %c0 = arith.constant 0 : index
    %c0_1 = arith.constant 0 : index
    %3 = vector.load %arg7[%c0, %c0_1] : memref<8x32xf32, #tpu.memory_space<vmem>>, vector<8x32xf32>
    %c0_2 = arith.constant 0 : index
    %c0_3 = arith.constant 0 : index
    %4 = vector.load %arg3[%c0_2, %c0_3] : memref<8x128xf32, #tpu.memory_space<vmem>>, vector<8x128xf32>
    %5 = arith.truncf %4 : vector<8x128xf32> to vector<8x128xbf16>
    %c0_4 = arith.constant 0 : index
    %c0_5 = arith.constant 0 : index
    %6 = vector.load %arg4[%c0_4, %c0_5] : memref<128x32xbf16, #tpu.memory_space<vmem>>, vector<128x32xbf16>
    %cst = arith.constant dense<0.000000e+00> : vector<8x32xf32>
    %7 = tpu.matmul %5, %6, %cst {dimension_numbers = #tpu.dot_dimension_numbers<[1], [0], [0], [1], [0, 0, 1, 1], [], []>} : vector<8x128xbf16>, vector<128x32xbf16>, vector<8x32xf32> -> vector<8x32xf32>
    %8 = arith.addf %3, %7 : vector<8x32xf32>
    %c0_6 = arith.constant 0 : index
    %c0_7 = arith.constant 0 : index
    %9 = vector.load %arg7[%c0_6, %c0_7] : memref<8x32xf32, #tpu.memory_space<vmem>>, vector<8x32xf32>
    tpu.vector_store %arg7[%c0_6, %c0_7], %8 {strides = array<i32>} : memref<8x32xf32, #tpu.memory_space<vmem>>, vector<8x32xf32>,
    %c0_i32_8 = arith.constant 0 : i32
    %10 = arith.cmpi eq, %arg2, %c0_i32_8 : i32
    %11 = arith.extui %10 : i1 to i32
    %c0_i32_9 = arith.constant 0 : i32
    %12 = arith.cmpi ne, %11, %c0_i32_9 : i32
    scf.if %12 {
      %c0_10 = arith.constant 0 : index
      %c0_11 = arith.constant 0 : index
      %13 = vector.load %arg7[%c0_10, %c0_11] : memref<8x32xf32, #tpu.memory_space<vmem>>, vector<8x32xf32>
      %c0_12 = arith.constant 0 : index
      %c0_13 = arith.constant 0 : index
      %14 = vector.load %arg5[%c0_12, %c0_13] : memref<1x32xf32, #tpu.memory_space<vmem>>, vector<1x32xf32>
      %15 = vector.broadcast %14 : vector<1x32xf32> to vector<8x32xf32>
      %16 = arith.addf %13, %15 : vector<8x32xf32>
      %c0_14 = arith.constant 0 : index
      %c0_15 = arith.constant 0 : index
      %17 = vector.load %arg6[%c0_14, %c0_15] : memref<8x32xf32, #tpu.memory_space<vmem>>, vector<8x32xf32>
      tpu.vector_store %arg6[%c0_14, %c0_15], %16 {strides = array<i32>} : memref<8x32xf32, #tpu.memory_space<vmem>>, vector<8x32xf32>,
    } else {
    }
    return
  }
  func.func @transform_0(%arg0: i32, %arg1: i32, %arg2: i32) -> (i32, i32) {
    %c0_i32 = arith.constant 0 : i32
    return %arg0, %arg2 : i32, i32
  }
  func.func @transform_1(%arg0: i32, %arg1: i32, %arg2: i32) -> (i32, i32) {
    %c0_i32 = arith.constant 0 : i32
    return %arg2, %arg1 : i32, i32
  }
  func.func @transform_2(%arg0: i32, %arg1: i32, %arg2: i32) -> (i32, i32) {
    %c0_i32 = arith.constant 0 : i32
    %c0_i32_0 = arith.constant 0 : i32
    return %c0_i32, %arg1 : i32, i32
  }
  func.func @transform_3(%arg0: i32, %arg1: i32, %arg2: i32) -> (i32, i32) {
    %c0_i32 = arith.constant 0 : i32
    return %arg0, %arg1 : i32, i32
  }
}

module attributes {stable_mosaic.version = 11 : i64} {
  func.func @_ffn_kernel(%arg0: i32, %arg1: i32, %arg2: memref<8x32xf32, #tpu.memory_space<vmem>>, %arg3: memref<1x32xf32, #tpu.memory_space<vmem>>, %arg4: memref<1x32xf32, #tpu.memory_space<vmem>>, %arg5: memref<32x64xbf16, #tpu.memory_space<vmem>>, %arg6: memref<1x64xf32, #tpu.memory_space<vmem>>, %arg7: memref<64x32xbf16, #tpu.memory_space<vmem>>, %arg8: memref<1x32xf32, #tpu.memory_space<vmem>>, %arg9: memref<8x32xf32, #tpu.memory_space<vmem>>, %arg10: memref<8x32xbf16, #tpu.memory_space<vmem>>, %arg11: memref<8x32xf32, #tpu.memory_space<vmem>>) attributes {dimension_semantics = [#tpu.dimension_semantics<parallel>, #tpu.dimension_semantics<arbitrary>], iteration_bounds = array<i64: 1, 1>, scalar_prefetch = 0 : i64, scratch_operands = 2 : i64, tpu.core_type = #tpu.core_type<tc>, window_params = [{transform_indices = @transform_0, window_bounds = array<i64: 8, 32>}, {pipeline_mode = #tpu.pipeline_mode<synchronous>, transform_indices = @transform_1, window_bounds = array<i64: 1, 32>}, {pipeline_mode = #tpu.pipeline_mode<synchronous>, transform_indices = @transform_2, window_bounds = array<i64: 1, 32>}, {transform_indices = @transform_3, window_bounds = array<i64: 32, 64>}, {transform_indices = @transform_4, window_bounds = array<i64: 1, 64>}, {transform_indices = @transform_5, window_bounds = array<i64: 64, 32>}, {pipeline_mode = #tpu.pipeline_mode<synchronous>, transform_indices = @transform_6, window_bounds = array<i64: 1, 32>}, {transform_indices = @transform_7, window_bounds = array<i64: 8, 32>}]} {
    %c0_i32 = arith.constant 0 : i32
    %0 = arith.cmpi eq, %arg1, %c0_i32 : i32
    %1 = arith.extui %0 : i1 to i32
    %c0_i32_0 = arith.constant 0 : i32
    %2 = arith.cmpi ne, %1, %c0_i32_0 : i32
    scf.if %2 {
      %c0_16 = arith.constant 0 : index
      %c0_17 = arith.constant 0 : index
      %24 = vector.load %arg2[%c0_16, %c0_17] : memref<8x32xf32, #tpu.memory_space<vmem>>, vector<8x32xf32>
      %cst_18 = arith.constant dense<0.000000e+00> : vector<8xf32>
      %25 = vector.multi_reduction <add>, %24, %cst_18 [1] : vector<8x32xf32> to vector<8xf32>
      %26 = vector.shape_cast %25 : vector<8xf32> to vector<8x1xf32>
      %cst_19 = arith.constant 3.200000e+01 : f32
      %27 = vector.broadcast %cst_19 : f32 to vector<8x1xf32>
      %28 = arith.divf %26, %27 : vector<8x1xf32>
      %29 = vector.broadcast %28 : vector<8x1xf32> to vector<8x32xf32>
      %30 = arith.subf %24, %29 : vector<8x32xf32>
      %31 = arith.mulf %30, %30 : vector<8x32xf32>
      %cst_20 = arith.constant dense<0.000000e+00> : vector<8xf32>
      %32 = vector.multi_reduction <add>, %31, %cst_20 [1] : vector<8x32xf32> to vector<8xf32>
      %33 = vector.shape_cast %32 : vector<8xf32> to vector<8x1xf32>
      %cst_21 = arith.constant 3.200000e+01 : f32
      %34 = vector.broadcast %cst_21 : f32 to vector<8x1xf32>
      %35 = arith.divf %33, %34 : vector<8x1xf32>
      %36 = vector.broadcast %28 : vector<8x1xf32> to vector<8x32xf32>
      %37 = arith.subf %24, %36 : vector<8x32xf32>
      %cst_22 = arith.constant 9.99999974E-6 : f32
      %38 = vector.broadcast %cst_22 : f32 to vector<8x1xf32>
      %39 = arith.addf %35, %38 : vector<8x1xf32>
      %40 = math.rsqrt %39 : vector<8x1xf32>
      %41 = vector.broadcast %40 : vector<8x1xf32> to vector<8x32xf32>
      %42 = arith.mulf %37, %41 : vector<8x32xf32>
      %c0_23 = arith.constant 0 : index
      %c0_24 = arith.constant 0 : index
      %43 = vector.load %arg3[%c0_23, %c0_24] : memref<1x32xf32, #tpu.memory_space<vmem>>, vector<1x32xf32>
      %44 = vector.broadcast %43 : vector<1x32xf32> to vector<8x32xf32>
      %45 = arith.mulf %42, %44 : vector<8x32xf32>
      %c0_25 = arith.constant 0 : index
      %c0_26 = arith.constant 0 : index
      %46 = vector.load %arg4[%c0_25, %c0_26] : memref<1x32xf32, #tpu.memory_space<vmem>>, vector<1x32xf32>
      %47 = vector.broadcast %46 : vector<1x32xf32> to vector<8x32xf32>
      %48 = arith.addf %45, %47 : vector<8x32xf32>
      %49 = arith.truncf %48 : vector<8x32xf32> to vector<8x32xbf16>
      %c0_27 = arith.constant 0 : index
      %c0_28 = arith.constant 0 : index
      %50 = vector.load %arg10[%c0_27, %c0_28] : memref<8x32xbf16, #tpu.memory_space<vmem>>, vector<8x32xbf16>
      tpu.vector_store %arg10[%c0_27, %c0_28], %49 {strides = array<i32>} : memref<8x32xbf16, #tpu.memory_space<vmem>>, vector<8x32xbf16>,
      %cst_29 = arith.constant 0.000000e+00 : f32
      %51 = vector.broadcast %cst_29 : f32 to vector<8x32xf32>
      %c0_30 = arith.constant 0 : index
      %c0_31 = arith.constant 0 : index
      %52 = vector.load %arg11[%c0_30, %c0_31] : memref<8x32xf32, #tpu.memory_space<vmem>>, vector<8x32xf32>
      tpu.vector_store %arg11[%c0_30, %c0_31], %51 {strides = array<i32>} : memref<8x32xf32, #tpu.memory_space<vmem>>, vector<8x32xf32>,
    } else {
    }
    %c0 = arith.constant 0 : index
    %c0_1 = arith.constant 0 : index
    %3 = vector.load %arg10[%c0, %c0_1] : memref<8x32xbf16, #tpu.memory_space<vmem>>, vector<8x32xbf16>
    %c0_2 = arith.constant 0 : index
    %c0_3 = arith.constant 0 : index
    %4 = vector.load %arg5[%c0_2, %c0_3] : memref<32x64xbf16, #tpu.memory_space<vmem>>, vector<32x64xbf16>
    %cst = arith.constant dense<0.000000e+00> : vector<8x64xf32>
    %5 = tpu.matmul %3, %4, %cst {dimension_numbers = #tpu.dot_dimension_numbers<[1], [0], [0], [1], [0, 0, 1, 1], [], []>} : vector<8x32xbf16>, vector<32x64xbf16>, vector<8x64xf32> -> vector<8x64xf32>
    %c0_4 = arith.constant 0 : index
    %c0_5 = arith.constant 0 : index
    %6 = vector.load %arg6[%c0_4, %c0_5] : memref<1x64xf32, #tpu.memory_space<vmem>>, vector<1x64xf32>
    %7 = vector.broadcast %6 : vector<1x64xf32> to vector<8x64xf32>
    %8 = arith.addf %5, %7 : vector<8x64xf32>
    %9 = arith.negf %8 : vector<8x64xf32>
    %10 = math.exp %9 : vector<8x64xf32>
    %cst_6 = arith.constant 1.000000e+00 : f32
    %11 = vector.broadcast %cst_6 : f32 to vector<8x64xf32>
    %12 = arith.addf %11, %10 : vector<8x64xf32>
    %13 = arith.divf %11, %12 : vector<8x64xf32>
    %14 = arith.mulf %8, %13 : vector<8x64xf32>
    %15 = arith.truncf %14 : vector<8x64xf32> to vector<8x64xbf16>
    %c0_7 = arith.constant 0 : index
    %c0_8 = arith.constant 0 : index
    %16 = vector.load %arg11[%c0_7, %c0_8] : memref<8x32xf32, #tpu.memory_space<vmem>>, vector<8x32xf32>
    %c0_9 = arith.constant 0 : index
    %c0_10 = arith.constant 0 : index
    %17 = vector.load %arg7[%c0_9, %c0_10] : memref<64x32xbf16, #tpu.memory_space<vmem>>, vector<64x32xbf16>
    %cst_11 = arith.constant dense<0.000000e+00> : vector<8x32xf32>
    %18 = tpu.matmul %15, %17, %cst_11 {dimension_numbers = #tpu.dot_dimension_numbers<[1], [0], [0], [1], [0, 0, 1, 1], [], []>} : vector<8x64xbf16>, vector<64x32xbf16>, vector<8x32xf32> -> vector<8x32xf32>
    %19 = arith.addf %16, %18 : vector<8x32xf32>
    %c0_12 = arith.constant 0 : index
    %c0_13 = arith.constant 0 : index
    %20 = vector.load %arg11[%c0_12, %c0_13] : memref<8x32xf32, #tpu.memory_space<vmem>>, vector<8x32xf32>
    tpu.vector_store %arg11[%c0_12, %c0_13], %19 {strides = array<i32>} : memref<8x32xf32, #tpu.memory_space<vmem>>, vector<8x32xf32>,
    %c0_i32_14 = arith.constant 0 : i32
    %21 = arith.cmpi eq, %arg1, %c0_i32_14 : i32
    %22 = arith.extui %21 : i1 to i32
    %c0_i32_15 = arith.constant 0 : i32
    %23 = arith.cmpi ne, %22, %c0_i32_15 : i32
    scf.if %23 {
      %c0_16 = arith.constant 0 : index
      %c0_17 = arith.constant 0 : index
      %24 = vector.load %arg11[%c0_16, %c0_17] : memref<8x32xf32, #tpu.memory_space<vmem>>, vector<8x32xf32>
      %c0_18 = arith.constant 0 : index
      %c0_19 = arith.constant 0 : index
      %25 = vector.load %arg8[%c0_18, %c0_19] : memref<1x32xf32, #tpu.memory_space<vmem>>, vector<1x32xf32>
      %26 = vector.broadcast %25 : vector<1x32xf32> to vector<8x32xf32>
      %27 = arith.addf %24, %26 : vector<8x32xf32>
      %c0_20 = arith.constant 0 : index
      %c0_21 = arith.constant 0 : index
      %28 = vector.load %arg2[%c0_20, %c0_21] : memref<8x32xf32, #tpu.memory_space<vmem>>, vector<8x32xf32>
      %cst_22 = arith.constant 5.000000e-01 : f32
      %29 = vector.broadcast %cst_22 : f32 to vector<8x32xf32>
      %30 = arith.mulf %29, %28 : vector<8x32xf32>
      %31 = arith.addf %30, %27 : vector<8x32xf32>
      %c0_23 = arith.constant 0 : index
      %c0_24 = arith.constant 0 : index
      %32 = vector.load %arg9[%c0_23, %c0_24] : memref<8x32xf32, #tpu.memory_space<vmem>>, vector<8x32xf32>
      tpu.vector_store %arg9[%c0_23, %c0_24], %31 {strides = array<i32>} : memref<8x32xf32, #tpu.memory_space<vmem>>, vector<8x32xf32>,
    } else {
    }
    return
  }
  func.func @transform_0(%arg0: i32, %arg1: i32) -> (i32, i32) {
    %c0_i32 = arith.constant 0 : i32
    %c0_i32_0 = arith.constant 0 : i32
    return %arg0, %c0_i32 : i32, i32
  }
  func.func @transform_1(%arg0: i32, %arg1: i32) -> (i32, i32) {
    %c0_i32 = arith.constant 0 : i32
    %c0_i32_0 = arith.constant 0 : i32
    %c0_i32_1 = arith.constant 0 : i32
    return %c0_i32, %c0_i32_0 : i32, i32
  }
  func.func @transform_2(%arg0: i32, %arg1: i32) -> (i32, i32) {
    %c0_i32 = arith.constant 0 : i32
    %c0_i32_0 = arith.constant 0 : i32
    %c0_i32_1 = arith.constant 0 : i32
    return %c0_i32, %c0_i32_0 : i32, i32
  }
  func.func @transform_3(%arg0: i32, %arg1: i32) -> (i32, i32) {
    %c0_i32 = arith.constant 0 : i32
    %c0_i32_0 = arith.constant 0 : i32
    return %c0_i32, %arg1 : i32, i32
  }
  func.func @transform_4(%arg0: i32, %arg1: i32) -> (i32, i32) {
    %c0_i32 = arith.constant 0 : i32
    %c0_i32_0 = arith.constant 0 : i32
    return %c0_i32, %arg1 : i32, i32
  }
  func.func @transform_5(%arg0: i32, %arg1: i32) -> (i32, i32) {
    %c0_i32 = arith.constant 0 : i32
    %c0_i32_0 = arith.constant 0 : i32
    return %arg1, %c0_i32 : i32, i32
  }
  func.func @transform_6(%arg0: i32, %arg1: i32) -> (i32, i32) {
    %c0_i32 = arith.constant 0 : i32
    %c0_i32_0 = arith.constant 0 : i32
    %c0_i32_1 = arith.constant 0 : i32
    return %c0_i32, %c0_i32_0 : i32, i32
  }
  func.func @transform_7(%arg0: i32, %arg1: i32) -> (i32, i32) {
    %c0_i32 = arith.constant 0 : i32
    %c0_i32_0 = arith.constant 0 : i32
    return %arg0, %c0_i32 : i32, i32
  }
}

module attributes {stable_mosaic.version = 11 : i64} {
  func.func @_ln_qkv_rope_kernel(%arg0: i32, %arg1: i32, %arg2: memref<1x4x32xf32, #tpu.memory_space<vmem>>, %arg3: memref<1x32xf32, #tpu.memory_space<vmem>>, %arg4: memref<1x32xf32, #tpu.memory_space<vmem>>, %arg5: memref<32x160xbf16, #tpu.memory_space<vmem>>, %arg6: memref<1x160xf32, #tpu.memory_space<vmem>>, %arg7: memref<4x32xf32, #tpu.memory_space<vmem>>, %arg8: memref<4x32xf32, #tpu.memory_space<vmem>>, %arg9: memref<1x4x4x8xbf16, #tpu.memory_space<vmem>>, %arg10: memref<1x4x4x8xbf16, #tpu.memory_space<vmem>>, %arg11: memref<1x4x4x8xbf16, #tpu.memory_space<vmem>>) attributes {dimension_semantics = [#tpu.dimension_semantics<parallel>, #tpu.dimension_semantics<parallel>], iteration_bounds = array<i64: 2, 1>, scalar_prefetch = 0 : i64, scratch_operands = 0 : i64, tpu.core_type = #tpu.core_type<tc>, window_params = [{transform_indices = @transform_0, window_bounds = array<i64: 1, 4, 32>}, {pipeline_mode = #tpu.pipeline_mode<synchronous>, transform_indices = @transform_1, window_bounds = array<i64: 1, 32>}, {pipeline_mode = #tpu.pipeline_mode<synchronous>, transform_indices = @transform_2, window_bounds = array<i64: 1, 32>}, {pipeline_mode = #tpu.pipeline_mode<synchronous>, transform_indices = @transform_3, window_bounds = array<i64: 32, 160>}, {pipeline_mode = #tpu.pipeline_mode<synchronous>, transform_indices = @transform_4, window_bounds = array<i64: 1, 160>}, {transform_indices = @transform_5, window_bounds = array<i64: 4, 32>}, {transform_indices = @transform_6, window_bounds = array<i64: 4, 32>}, {transform_indices = @transform_7, window_bounds = array<i64: 1, 4, 4, 8>}, {transform_indices = @transform_8, window_bounds = array<i64: 1, 4, 4, 8>}, {transform_indices = @transform_9, window_bounds = array<i64: 1, 4, 4, 8>}]} {
    %c0 = arith.constant 0 : index
    %c0_0 = arith.constant 0 : index
    %c0_1 = arith.constant 0 : index
    %0 = vector.load %arg2[%c0, %c0_0, %c0_1] : memref<1x4x32xf32, #tpu.memory_space<vmem>>, vector<1x4x32xf32>
    %1 = vector.shape_cast %0 : vector<1x4x32xf32> to vector<4x32xf32>
    %cst = arith.constant dense<0.000000e+00> : vector<4xf32>
    %2 = vector.multi_reduction <add>, %1, %cst [1] : vector<4x32xf32> to vector<4xf32>
    %3 = vector.shape_cast %2 : vector<4xf32> to vector<4x1xf32>
    %cst_2 = arith.constant 3.200000e+01 : f32
    %4 = vector.broadcast %cst_2 : f32 to vector<4x1xf32>
    %5 = arith.divf %3, %4 : vector<4x1xf32>
    %6 = vector.broadcast %5 : vector<4x1xf32> to vector<4x32xf32>
    %7 = arith.subf %1, %6 : vector<4x32xf32>
    %8 = arith.mulf %7, %7 : vector<4x32xf32>
    %cst_3 = arith.constant dense<0.000000e+00> : vector<4xf32>
    %9 = vector.multi_reduction <add>, %8, %cst_3 [1] : vector<4x32xf32> to vector<4xf32>
    %10 = vector.shape_cast %9 : vector<4xf32> to vector<4x1xf32>
    %cst_4 = arith.constant 3.200000e+01 : f32
    %11 = vector.broadcast %cst_4 : f32 to vector<4x1xf32>
    %12 = arith.divf %10, %11 : vector<4x1xf32>
    %13 = vector.broadcast %5 : vector<4x1xf32> to vector<4x32xf32>
    %14 = arith.subf %1, %13 : vector<4x32xf32>
    %cst_5 = arith.constant 9.99999974E-6 : f32
    %15 = vector.broadcast %cst_5 : f32 to vector<4x1xf32>
    %16 = arith.addf %12, %15 : vector<4x1xf32>
    %17 = math.rsqrt %16 : vector<4x1xf32>
    %18 = vector.broadcast %17 : vector<4x1xf32> to vector<4x32xf32>
    %19 = arith.mulf %14, %18 : vector<4x32xf32>
    %c0_6 = arith.constant 0 : index
    %c0_7 = arith.constant 0 : index
    %20 = vector.load %arg3[%c0_6, %c0_7] : memref<1x32xf32, #tpu.memory_space<vmem>>, vector<1x32xf32>
    %21 = vector.broadcast %20 : vector<1x32xf32> to vector<4x32xf32>
    %22 = arith.mulf %19, %21 : vector<4x32xf32>
    %c0_8 = arith.constant 0 : index
    %c0_9 = arith.constant 0 : index
    %23 = vector.load %arg4[%c0_8, %c0_9] : memref<1x32xf32, #tpu.memory_space<vmem>>, vector<1x32xf32>
    %24 = vector.broadcast %23 : vector<1x32xf32> to vector<4x32xf32>
    %25 = arith.addf %22, %24 : vector<4x32xf32>
    %26 = arith.truncf %25 : vector<4x32xf32> to vector<4x32xbf16>
    %c0_10 = arith.constant 0 : index
    %c0_11 = arith.constant 0 : index
    %27 = vector.load %arg5[%c0_10, %c0_11] : memref<32x160xbf16, #tpu.memory_space<vmem>>, vector<32x160xbf16>
    %cst_12 = arith.constant dense<0.000000e+00> : vector<4x160xf32>
    %28 = tpu.matmul %26, %27, %cst_12 {dimension_numbers = #tpu.dot_dimension_numbers<[1], [0], [0], [1], [0, 0, 1, 1], [], []>} : vector<4x32xbf16>, vector<32x160xbf16>, vector<4x160xf32> -> vector<4x160xf32>
    %c0_13 = arith.constant 0 : index
    %c0_14 = arith.constant 0 : index
    %29 = vector.load %arg6[%c0_13, %c0_14] : memref<1x160xf32, #tpu.memory_space<vmem>>, vector<1x160xf32>
    %30 = vector.broadcast %29 : vector<1x160xf32> to vector<4x160xf32>
    %31 = arith.addf %28, %30 : vector<4x160xf32>
    %c0_15 = arith.constant 0 : index
    %c0_16 = arith.constant 0 : index
    %32 = vector.load %arg7[%c0_15, %c0_16] : memref<4x32xf32, #tpu.memory_space<vmem>>, vector<4x32xf32>
    %c0_17 = arith.constant 0 : index
    %c0_18 = arith.constant 0 : index
    %33 = vector.load %arg8[%c0_17, %c0_18] : memref<4x32xf32, #tpu.memory_space<vmem>>, vector<4x32xf32>
    %34 = vector.extract_strided_slice %31 {offsets = [0, 0], sizes = [4, 32], strides = [1, 1]} : vector<4x160xf32> to vector<4x32xf32>
    %35 = arith.mulf %34, %32 : vector<4x32xf32>
    %36 = vector.extract_strided_slice %31 {offsets = [0, 32], sizes = [4, 32], strides = [1, 1]} : vector<4x160xf32> to vector<4x32xf32>
    %37 = arith.mulf %36, %33 : vector<4x32xf32>
    %38 = arith.addf %35, %37 : vector<4x32xf32>
    %cst_19 = arith.constant 0.353553385 : f32
    %39 = vector.broadcast %cst_19 : f32 to vector<4x32xf32>
    %40 = arith.mulf %38, %39 : vector<4x32xf32>
    %41 = vector.extract_strided_slice %31 {offsets = [0, 64], sizes = [4, 32], strides = [1, 1]} : vector<4x160xf32> to vector<4x32xf32>
    %42 = arith.mulf %41, %32 : vector<4x32xf32>
    %43 = vector.extract_strided_slice %31 {offsets = [0, 96], sizes = [4, 32], strides = [1, 1]} : vector<4x160xf32> to vector<4x32xf32>
    %44 = arith.mulf %43, %33 : vector<4x32xf32>
    %45 = arith.addf %42, %44 : vector<4x32xf32>
    %46 = vector.extract_strided_slice %31 {offsets = [0, 128], sizes = [4, 32], strides = [1, 1]} : vector<4x160xf32> to vector<4x32xf32>
    %47 = vector.extract_strided_slice %40 {offsets = [0, 0], sizes = [4, 8], strides = [1, 1]} : vector<4x32xf32> to vector<4x8xf32>
    %48 = arith.truncf %47 : vector<4x8xf32> to vector<4x8xbf16>
    %c0_20 = arith.constant 0 : index
    %c0_21 = arith.constant 0 : index
    %c0_22 = arith.constant 0 : index
    %c0_23 = arith.constant 0 : index
    %49 = vector.load %arg9[%c0_20, %c0_21, %c0_22, %c0_23] : memref<1x4x4x8xbf16, #tpu.memory_space<vmem>>, vector<1x1x4x8xbf16>
    %50 = vector.shape_cast %49 : vector<1x1x4x8xbf16> to vector<4x8xbf16>
    %51 = vector.shape_cast %48 : vector<4x8xbf16> to vector<1x1x4x8xbf16>
    tpu.vector_store %arg9[%c0_20, %c0_21, %c0_22, %c0_23], %51 {strides = array<i32>} : memref<1x4x4x8xbf16, #tpu.memory_space<vmem>>, vector<1x1x4x8xbf16>,
    %52 = vector.extract_strided_slice %45 {offsets = [0, 0], sizes = [4, 8], strides = [1, 1]} : vector<4x32xf32> to vector<4x8xf32>
    %53 = arith.truncf %52 : vector<4x8xf32> to vector<4x8xbf16>
    %c0_24 = arith.constant 0 : index
    %c0_25 = arith.constant 0 : index
    %c0_26 = arith.constant 0 : index
    %c0_27 = arith.constant 0 : index
    %54 = vector.load %arg10[%c0_24, %c0_25, %c0_26, %c0_27] : memref<1x4x4x8xbf16, #tpu.memory_space<vmem>>, vector<1x1x4x8xbf16>
    %55 = vector.shape_cast %54 : vector<1x1x4x8xbf16> to vector<4x8xbf16>
    %56 = vector.shape_cast %53 : vector<4x8xbf16> to vector<1x1x4x8xbf16>
    tpu.vector_store %arg10[%c0_24, %c0_25, %c0_26, %c0_27], %56 {strides = array<i32>} : memref<1x4x4x8xbf16, #tpu.memory_space<vmem>>, vector<1x1x4x8xbf16>,
    %57 = vector.extract_strided_slice %46 {offsets = [0, 0], sizes = [4, 8], strides = [1, 1]} : vector<4x32xf32> to vector<4x8xf32>
    %58 = arith.truncf %57 : vector<4x8xf32> to vector<4x8xbf16>
    %c0_28 = arith.constant 0 : index
    %c0_29 = arith.constant 0 : index
    %c0_30 = arith.constant 0 : index
    %c0_31 = arith.constant 0 : index
    %59 = vector.load %arg11[%c0_28, %c0_29, %c0_30, %c0_31] : memref<1x4x4x8xbf16, #tpu.memory_space<vmem>>, vector<1x1x4x8xbf16>
    %60 = vector.shape_cast %59 : vector<1x1x4x8xbf16> to vector<4x8xbf16>
    %61 = vector.shape_cast %58 : vector<4x8xbf16> to vector<1x1x4x8xbf16>
    tpu.vector_store %arg11[%c0_28, %c0_29, %c0_30, %c0_31], %61 {strides = array<i32>} : memref<1x4x4x8xbf16, #tpu.memory_space<vmem>>, vector<1x1x4x8xbf16>,
    %62 = vector.extract_strided_slice %40 {offsets = [0, 8], sizes = [4, 8], strides = [1, 1]} : vector<4x32xf32> to vector<4x8xf32>
    %63 = arith.truncf %62 : vector<4x8xf32> to vector<4x8xbf16>
    %c0_32 = arith.constant 0 : index
    %c1 = arith.constant 1 : index
    %c0_33 = arith.constant 0 : index
    %c0_34 = arith.constant 0 : index
    %64 = vector.load %arg9[%c0_32, %c1, %c0_33, %c0_34] : memref<1x4x4x8xbf16, #tpu.memory_space<vmem>>, vector<1x1x4x8xbf16>
    %65 = vector.shape_cast %64 : vector<1x1x4x8xbf16> to vector<4x8xbf16>
    %66 = vector.shape_cast %63 : vector<4x8xbf16> to vector<1x1x4x8xbf16>
    tpu.vector_store %arg9[%c0_32, %c1, %c0_33, %c0_34], %66 {strides = array<i32>} : memref<1x4x4x8xbf16, #tpu.memory_space<vmem>>, vector<1x1x4x8xbf16>,
    %67 = vector.extract_strided_slice %45 {offsets = [0, 8], sizes = [4, 8], strides = [1, 1]} : vector<4x32xf32> to vector<4x8xf32>
    %68 = arith.truncf %67 : vector<4x8xf32> to vector<4x8xbf16>
    %c0_35 = arith.constant 0 : index
    %c1_36 = arith.constant 1 : index
    %c0_37 = arith.constant 0 : index
    %c0_38 = arith.constant 0 : index
    %69 = vector.load %arg10[%c0_35, %c1_36, %c0_37, %c0_38] : memref<1x4x4x8xbf16, #tpu.memory_space<vmem>>, vector<1x1x4x8xbf16>
    %70 = vector.shape_cast %69 : vector<1x1x4x8xbf16> to vector<4x8xbf16>
    %71 = vector.shape_cast %68 : vector<4x8xbf16> to vector<1x1x4x8xbf16>
    tpu.vector_store %arg10[%c0_35, %c1_36, %c0_37, %c0_38], %71 {strides = array<i32>} : memref<1x4x4x8xbf16, #tpu.memory_space<vmem>>, vector<1x1x4x8xbf16>,
    %72 = vector.extract_strided_slice %46 {offsets = [0, 8], sizes = [4, 8], strides = [1, 1]} : vector<4x32xf32> to vector<4x8xf32>
    %73 = arith.truncf %72 : vector<4x8xf32> to vector<4x8xbf16>
    %c0_39 = arith.constant 0 : index
    %c1_40 = arith.constant 1 : index
    %c0_41 = arith.constant 0 : index
    %c0_42 = arith.constant 0 : index
    %74 = vector.load %arg11[%c0_39, %c1_40, %c0_41, %c0_42] : memref<1x4x4x8xbf16, #tpu.memory_space<vmem>>, vector<1x1x4x8xbf16>
    %75 = vector.shape_cast %74 : vector<1x1x4x8xbf16> to vector<4x8xbf16>
    %76 = vector.shape_cast %73 : vector<4x8xbf16> to vector<1x1x4x8xbf16>
    tpu.vector_store %arg11[%c0_39, %c1_40, %c0_41, %c0_42], %76 {strides = array<i32>} : memref<1x4x4x8xbf16, #tpu.memory_space<vmem>>, vector<1x1x4x8xbf16>,
    %77 = vector.extract_strided_slice %40 {offsets = [0, 16], sizes = [4, 8], strides = [1, 1]} : vector<4x32xf32> to vector<4x8xf32>
    %78 = arith.truncf %77 : vector<4x8xf32> to vector<4x8xbf16>
    %c0_43 = arith.constant 0 : index
    %c2 = arith.constant 2 : index
    %c0_44 = arith.constant 0 : index
    %c0_45 = arith.constant 0 : index
    %79 = vector.load %arg9[%c0_43, %c2, %c0_44, %c0_45] : memref<1x4x4x8xbf16, #tpu.memory_space<vmem>>, vector<1x1x4x8xbf16>
    %80 = vector.shape_cast %79 : vector<1x1x4x8xbf16> to vector<4x8xbf16>
    %81 = vector.shape_cast %78 : vector<4x8xbf16> to vector<1x1x4x8xbf16>
    tpu.vector_store %arg9[%c0_43, %c2, %c0_44, %c0_45], %81 {strides = array<i32>} : memref<1x4x4x8xbf16, #tpu.memory_space<vmem>>, vector<1x1x4x8xbf16>,
    %82 = vector.extract_strided_slice %45 {offsets = [0, 16], sizes = [4, 8], strides = [1, 1]} : vector<4x32xf32> to vector<4x8xf32>
    %83 = arith.truncf %82 : vector<4x8xf32> to vector<4x8xbf16>
    %c0_46 = arith.constant 0 : index
    %c2_47 = arith.constant 2 : index
    %c0_48 = arith.constant 0 : index
    %c0_49 = arith.constant 0 : index
    %84 = vector.load %arg10[%c0_46, %c2_47, %c0_48, %c0_49] : memref<1x4x4x8xbf16, #tpu.memory_space<vmem>>, vector<1x1x4x8xbf16>
    %85 = vector.shape_cast %84 : vector<1x1x4x8xbf16> to vector<4x8xbf16>
    %86 = vector.shape_cast %83 : vector<4x8xbf16> to vector<1x1x4x8xbf16>
    tpu.vector_store %arg10[%c0_46, %c2_47, %c0_48, %c0_49], %86 {strides = array<i32>} : memref<1x4x4x8xbf16, #tpu.memory_space<vmem>>, vector<1x1x4x8xbf16>,
    %87 = vector.extract_strided_slice %46 {offsets = [0, 16], sizes = [4, 8], strides = [1, 1]} : vector<4x32xf32> to vector<4x8xf32>
    %88 = arith.truncf %87 : vector<4x8xf32> to vector<4x8xbf16>
    %c0_50 = arith.constant 0 : index
    %c2_51 = arith.constant 2 : index
    %c0_52 = arith.constant 0 : index
    %c0_53 = arith.constant 0 : index
    %89 = vector.load %arg11[%c0_50, %c2_51, %c0_52, %c0_53] : memref<1x4x4x8xbf16, #tpu.memory_space<vmem>>, vector<1x1x4x8xbf16>
    %90 = vector.shape_cast %89 : vector<1x1x4x8xbf16> to vector<4x8xbf16>
    %91 = vector.shape_cast %88 : vector<4x8xbf16> to vector<1x1x4x8xbf16>
    tpu.vector_store %arg11[%c0_50, %c2_51, %c0_52, %c0_53], %91 {strides = array<i32>} : memref<1x4x4x8xbf16, #tpu.memory_space<vmem>>, vector<1x1x4x8xbf16>,
    %92 = vector.extract_strided_slice %40 {offsets = [0, 24], sizes = [4, 8], strides = [1, 1]} : vector<4x32xf32> to vector<4x8xf32>
    %93 = arith.truncf %92 : vector<4x8xf32> to vector<4x8xbf16>
    %c0_54 = arith.constant 0 : index
    %c3 = arith.constant 3 : index
    %c0_55 = arith.constant 0 : index
    %c0_56 = arith.constant 0 : index
    %94 = vector.load %arg9[%c0_54, %c3, %c0_55, %c0_56] : memref<1x4x4x8xbf16, #tpu.memory_space<vmem>>, vector<1x1x4x8xbf16>
    %95 = vector.shape_cast %94 : vector<1x1x4x8xbf16> to vector<4x8xbf16>
    %96 = vector.shape_cast %93 : vector<4x8xbf16> to vector<1x1x4x8xbf16>
    tpu.vector_store %arg9[%c0_54, %c3, %c0_55, %c0_56], %96 {strides = array<i32>} : memref<1x4x4x8xbf16, #tpu.memory_space<vmem>>, vector<1x1x4x8xbf16>,
    %97 = vector.extract_strided_slice %45 {offsets = [0, 24], sizes = [4, 8], strides = [1, 1]} : vector<4x32xf32> to vector<4x8xf32>
    %98 = arith.truncf %97 : vector<4x8xf32> to vector<4x8xbf16>
    %c0_57 = arith.constant 0 : index
    %c3_58 = arith.constant 3 : index
    %c0_59 = arith.constant 0 : index
    %c0_60 = arith.constant 0 : index
    %99 = vector.load %arg10[%c0_57, %c3_58, %c0_59, %c0_60] : memref<1x4x4x8xbf16, #tpu.memory_space<vmem>>, vector<1x1x4x8xbf16>
    %100 = vector.shape_cast %99 : vector<1x1x4x8xbf16> to vector<4x8xbf16>
    %101 = vector.shape_cast %98 : vector<4x8xbf16> to vector<1x1x4x8xbf16>
    tpu.vector_store %arg10[%c0_57, %c3_58, %c0_59, %c0_60], %101 {strides = array<i32>} : memref<1x4x4x8xbf16, #tpu.memory_space<vmem>>, vector<1x1x4x8xbf16>,
    %102 = vector.extract_strided_slice %46 {offsets = [0, 24], sizes = [4, 8], strides = [1, 1]} : vector<4x32xf32> to vector<4x8xf32>
    %103 = arith.truncf %102 : vector<4x8xf32> to vector<4x8xbf16>
    %c0_61 = arith.constant 0 : index
    %c3_62 = arith.constant 3 : index
    %c0_63 = arith.constant 0 : index
    %c0_64 = arith.constant 0 : index
    %104 = vector.load %arg11[%c0_61, %c3_62, %c0_63, %c0_64] : memref<1x4x4x8xbf16, #tpu.memory_space<vmem>>, vector<1x1x4x8xbf16>
    %105 = vector.shape_cast %104 : vector<1x1x4x8xbf16> to vector<4x8xbf16>
    %106 = vector.shape_cast %103 : vector<4x8xbf16> to vector<1x1x4x8xbf16>
    tpu.vector_store %arg11[%c0_61, %c3_62, %c0_63, %c0_64], %106 {strides = array<i32>} : memref<1x4x4x8xbf16, #tpu.memory_space<vmem>>, vector<1x1x4x8xbf16>,
    return
  }
  func.func @transform_0(%arg0: i32, %arg1: i32) -> (i32, i32, i32) {
    %c0_i32 = arith.constant 0 : i32
    %c0_i32_0 = arith.constant 0 : i32
    return %arg0, %arg1, %c0_i32 : i32, i32, i32
  }
  func.func @transform_1(%arg0: i32, %arg1: i32) -> (i32, i32) {
    %c0_i32 = arith.constant 0 : i32
    %c0_i32_0 = arith.constant 0 : i32
    %c0_i32_1 = arith.constant 0 : i32
    return %c0_i32, %c0_i32_0 : i32, i32
  }
  func.func @transform_2(%arg0: i32, %arg1: i32) -> (i32, i32) {
    %c0_i32 = arith.constant 0 : i32
    %c0_i32_0 = arith.constant 0 : i32
    %c0_i32_1 = arith.constant 0 : i32
    return %c0_i32, %c0_i32_0 : i32, i32
  }
  func.func @transform_3(%arg0: i32, %arg1: i32) -> (i32, i32) {
    %c0_i32 = arith.constant 0 : i32
    %c0_i32_0 = arith.constant 0 : i32
    %c0_i32_1 = arith.constant 0 : i32
    return %c0_i32, %c0_i32_0 : i32, i32
  }
  func.func @transform_4(%arg0: i32, %arg1: i32) -> (i32, i32) {
    %c0_i32 = arith.constant 0 : i32
    %c0_i32_0 = arith.constant 0 : i32
    %c0_i32_1 = arith.constant 0 : i32
    return %c0_i32, %c0_i32_0 : i32, i32
  }
  func.func @transform_5(%arg0: i32, %arg1: i32) -> (i32, i32) {
    %c0_i32 = arith.constant 0 : i32
    %c0_i32_0 = arith.constant 0 : i32
    return %arg1, %c0_i32 : i32, i32
  }
  func.func @transform_6(%arg0: i32, %arg1: i32) -> (i32, i32) {
    %c0_i32 = arith.constant 0 : i32
    %c0_i32_0 = arith.constant 0 : i32
    return %arg1, %c0_i32 : i32, i32
  }
  func.func @transform_7(%arg0: i32, %arg1: i32) -> (i32, i32, i32, i32) {
    %c0_i32 = arith.constant 0 : i32
    %c0_i32_0 = arith.constant 0 : i32
    %c0_i32_1 = arith.constant 0 : i32
    return %arg0, %c0_i32, %arg1, %c0_i32_0 : i32, i32, i32, i32
  }
  func.func @transform_8(%arg0: i32, %arg1: i32) -> (i32, i32, i32, i32) {
    %c0_i32 = arith.constant 0 : i32
    %c0_i32_0 = arith.constant 0 : i32
    %c0_i32_1 = arith.constant 0 : i32
    return %arg0, %c0_i32, %arg1, %c0_i32_0 : i32, i32, i32, i32
  }
  func.func @transform_9(%arg0: i32, %arg1: i32) -> (i32, i32, i32, i32) {
    %c0_i32 = arith.constant 0 : i32
    %c0_i32_0 = arith.constant 0 : i32
    %c0_i32_1 = arith.constant 0 : i32
    return %arg0, %c0_i32, %arg1, %c0_i32_0 : i32, i32, i32, i32
  }
}

module attributes {stable_mosaic.version = 11 : i64} {
  func.func @_flash_kernel(%arg0: i32, %arg1: i32, %arg2: i32, %arg3: i32, %arg4: memref<1x1x4x8xbf16, #tpu.memory_space<vmem>>, %arg5: memref<1x1x4x8xbf16, #tpu.memory_space<vmem>>, %arg6: memref<1x1x4x8xbf16, #tpu.memory_space<vmem>>, %arg7: memref<1x1x4xf32, #tpu.memory_space<vmem>>, %arg8: memref<1x1x4x8xbf16, #tpu.memory_space<vmem>>, %arg9: memref<4x1xf32, #tpu.memory_space<vmem>>, %arg10: memref<4x1xf32, #tpu.memory_space<vmem>>, %arg11: memref<4x8xf32, #tpu.memory_space<vmem>>) attributes {dimension_semantics = [#tpu.dimension_semantics<parallel>, #tpu.dimension_semantics<parallel>, #tpu.dimension_semantics<parallel>, #tpu.dimension_semantics<arbitrary>], iteration_bounds = array<i64: 2, 4, 1, 1>, scalar_prefetch = 0 : i64, scratch_operands = 3 : i64, tpu.core_type = #tpu.core_type<tc>, window_params = [{transform_indices = @transform_0, window_bounds = array<i64: 1, 1, 4, 8>}, {transform_indices = @transform_1, window_bounds = array<i64: 1, 1, 4, 8>}, {transform_indices = @transform_2, window_bounds = array<i64: 1, 1, 4, 8>}, {transform_indices = @transform_3, window_bounds = array<i64: 1, 1, 4>}, {transform_indices = @transform_4, window_bounds = array<i64: 1, 1, 4, 8>}]} {
    %c0_i32 = arith.constant 0 : i32
    %0 = arith.cmpi eq, %arg3, %c0_i32 : i32
    %1 = arith.extui %0 : i1 to i32
    %c0_i32_0 = arith.constant 0 : i32
    %2 = arith.cmpi ne, %1, %c0_i32_0 : i32
    scf.if %2 {
      %cst_32 = arith.constant -1.000000e+30 : f32
      %40 = vector.broadcast %cst_32 : f32 to vector<4x1xf32>
      %c0_33 = arith.constant 0 : index
      %c0_34 = arith.constant 0 : index
      %41 = vector.load %arg9[%c0_33, %c0_34] : memref<4x1xf32, #tpu.memory_space<vmem>>, vector<4x1xf32>
      tpu.vector_store %arg9[%c0_33, %c0_34], %40 {strides = array<i32>} : memref<4x1xf32, #tpu.memory_space<vmem>>, vector<4x1xf32>,
      %cst_35 = arith.constant 0.000000e+00 : f32
      %42 = vector.broadcast %cst_35 : f32 to vector<4x1xf32>
      %c0_36 = arith.constant 0 : index
      %c0_37 = arith.constant 0 : index
      %43 = vector.load %arg10[%c0_36, %c0_37] : memref<4x1xf32, #tpu.memory_space<vmem>>, vector<4x1xf32>
      tpu.vector_store %arg10[%c0_36, %c0_37], %42 {strides = array<i32>} : memref<4x1xf32, #tpu.memory_space<vmem>>, vector<4x1xf32>,
      %cst_38 = arith.constant 0.000000e+00 : f32
      %44 = vector.broadcast %cst_38 : f32 to vector<4x8xf32>
      %c0_39 = arith.constant 0 : index
      %c0_40 = arith.constant 0 : index
      %45 = vector.load %arg11[%c0_39, %c0_40] : memref<4x8xf32, #tpu.memory_space<vmem>>, vector<4x8xf32>
      tpu.vector_store %arg11[%c0_39, %c0_40], %44 {strides = array<i32>} : memref<4x8xf32, #tpu.memory_space<vmem>>, vector<4x8xf32>,
    } else {
    }
    %c0 = arith.constant 0 : index
    %c0_1 = arith.constant 0 : index
    %c0_2 = arith.constant 0 : index
    %c0_3 = arith.constant 0 : index
    %3 = vector.load %arg4[%c0, %c0_1, %c0_2, %c0_3] : memref<1x1x4x8xbf16, #tpu.memory_space<vmem>>, vector<1x1x4x8xbf16>
    %4 = vector.shape_cast %3 : vector<1x1x4x8xbf16> to vector<4x8xbf16>
    %c0_4 = arith.constant 0 : index
    %c0_5 = arith.constant 0 : index
    %c0_6 = arith.constant 0 : index
    %c0_7 = arith.constant 0 : index
    %5 = vector.load %arg5[%c0_4, %c0_5, %c0_6, %c0_7] : memref<1x1x4x8xbf16, #tpu.memory_space<vmem>>, vector<1x1x4x8xbf16>
    %6 = vector.shape_cast %5 : vector<1x1x4x8xbf16> to vector<4x8xbf16>
    %c0_8 = arith.constant 0 : index
    %c0_9 = arith.constant 0 : index
    %c0_10 = arith.constant 0 : index
    %c0_11 = arith.constant 0 : index
    %7 = vector.load %arg6[%c0_8, %c0_9, %c0_10, %c0_11] : memref<1x1x4x8xbf16, #tpu.memory_space<vmem>>, vector<1x1x4x8xbf16>
    %8 = vector.shape_cast %7 : vector<1x1x4x8xbf16> to vector<4x8xbf16>
    %cst = arith.constant dense<0.000000e+00> : vector<4x4xf32>
    %9 = tpu.matmul %4, %6, %cst {dimension_numbers = #tpu.dot_dimension_numbers<[1], [1], [0], [0], [0, 0, 1, 0], [], []>} : vector<4x8xbf16>, vector<4x8xbf16>, vector<4x4xf32> -> vector<4x4xf32>
    %c0_12 = arith.constant 0 : index
    %c0_13 = arith.constant 0 : index
    %c0_14 = arith.constant 0 : index
    %10 = vector.load %arg7[%c0_12, %c0_13, %c0_14] : memref<1x1x4xf32, #tpu.memory_space<vmem>>, vector<1x1x4xf32>
    %11 = vector.shape_cast %10 : vector<1x1x4xf32> to vector<1x4xf32>
    %12 = vector.broadcast %11 : vector<1x4xf32> to vector<4x4xf32>
    %13 = arith.addf %9, %12 : vector<4x4xf32>
    %c0_15 = arith.constant 0 : index
    %c0_16 = arith.constant 0 : index
    %14 = vector.load %arg9[%c0_15, %c0_16] : memref<4x1xf32, #tpu.memory_space<vmem>>, vector<4x1xf32>
    %cst_17 = arith.constant dense<0xFF800000> : vector<4xf32>
    %15 = vector.multi_reduction <maximumf>, %13, %cst_17 [1] : vector<4x4xf32> to vector<4xf32>
    %16 = vector.shape_cast %15 : vector<4xf32> to vector<4x1xf32>
    %17 = arith.maximumf %14, %16 : vector<4x1xf32>
    %18 = arith.subf %14, %17 : vector<4x1xf32>
    %19 = math.exp %18 : vector<4x1xf32>
    %20 = vector.broadcast %17 : vector<4x1xf32> to vector<4x4xf32>
    %21 = arith.subf %13, %20 : vector<4x4xf32>
    %22 = math.exp %21 : vector<4x4xf32>
    %c0_18 = arith.constant 0 : index
    %c0_19 = arith.constant 0 : index
    %23 = vector.load %arg10[%c0_18, %c0_19] : memref<4x1xf32, #tpu.memory_space<vmem>>, vector<4x1xf32>
    %24 = arith.mulf %19, %23 : vector<4x1xf32>
    %cst_20 = arith.constant dense<0.000000e+00> : vector<4xf32>
    %25 = vector.multi_reduction <add>, %22, %cst_20 [1] : vector<4x4xf32> to vector<4xf32>
    %26 = vector.shape_cast %25 : vector<4xf32> to vector<4x1xf32>
    %27 = arith.addf %24, %26 : vector<4x1xf32>
    %c0_21 = arith.constant 0 : index
    %c0_22 = arith.constant 0 : index
    %28 = vector.load %arg10[%c0_21, %c0_22] : memref<4x1xf32, #tpu.memory_space<vmem>>, vector<4x1xf32>
    tpu.vector_store %arg10[%c0_21, %c0_22], %27 {strides = array<i32>} : memref<4x1xf32, #tpu.memory_space<vmem>>, vector<4x1xf32>,
    %c0_23 = arith.constant 0 : index
    %c0_24 = arith.constant 0 : index
    %29 = vector.load %arg11[%c0_23, %c0_24] : memref<4x8xf32, #tpu.memory_space<vmem>>, vector<4x8xf32>
    %30 = vector.broadcast %19 : vector<4x1xf32> to vector<4x8xf32>
    %31 = arith.mulf %30, %29 : vector<4x8xf32>
    %32 = arith.truncf %22 : vector<4x4xf32> to vector<4x4xbf16>
    %cst_25 = arith.constant dense<0.000000e+00> : vector<4x8xf32>
    %33 = tpu.matmul %32, %8, %cst_25 {dimension_numbers = #tpu.dot_dimension_numbers<[1], [0], [0], [1], [0, 0, 1, 1], [], []>} : vector<4x4xbf16>, vector<4x8xbf16>, vector<4x8xf32> -> vector<4x8xf32>
    %34 = arith.addf %31, %33 : vector<4x8xf32>
    %c0_26 = arith.constant 0 : index
    %c0_27 = arith.constant 0 : index
    %35 = vector.load %arg11[%c0_26, %c0_27] : memref<4x8xf32, #tpu.memory_space<vmem>>, vector<4x8xf32>
    tpu.vector_store %arg11[%c0_26, %c0_27], %34 {strides = array<i32>} : memref<4x8xf32, #tpu.memory_space<vmem>>, vector<4x8xf32>,
    %c0_28 = arith.constant 0 : index
    %c0_29 = arith.constant 0 : index
    %36 = vector.load %arg9[%c0_28, %c0_29] : memref<4x1xf32, #tpu.memory_space<vmem>>, vector<4x1xf32>
    tpu.vector_store %arg9[%c0_28, %c0_29], %17 {strides = array<i32>} : memref<4x1xf32, #tpu.memory_space<vmem>>, vector<4x1xf32>,
    %c0_i32_30 = arith.constant 0 : i32
    %37 = arith.cmpi eq, %arg3, %c0_i32_30 : i32
    %38 = arith.extui %37 : i1 to i32
    %c0_i32_31 = arith.constant 0 : i32
    %39 = arith.cmpi ne, %38, %c0_i32_31 : i32
    scf.if %39 {
      %c0_32 = arith.constant 0 : index
      %c0_33 = arith.constant 0 : index
      %40 = vector.load %arg11[%c0_32, %c0_33] : memref<4x8xf32, #tpu.memory_space<vmem>>, vector<4x8xf32>
      %c0_34 = arith.constant 0 : index
      %c0_35 = arith.constant 0 : index
      %41 = vector.load %arg10[%c0_34, %c0_35] : memref<4x1xf32, #tpu.memory_space<vmem>>, vector<4x1xf32>
      %42 = vector.broadcast %41 : vector<4x1xf32> to vector<4x8xf32>
      %43 = arith.divf %40, %42 : vector<4x8xf32>
      %44 = arith.truncf %43 : vector<4x8xf32> to vector<4x8xbf16>
      %c0_36 = arith.constant 0 : index
      %c0_37 = arith.constant 0 : index
      %c0_38 = arith.constant 0 : index
      %c0_39 = arith.constant 0 : index
      %45 = vector.load %arg8[%c0_36, %c0_37, %c0_38, %c0_39] : memref<1x1x4x8xbf16, #tpu.memory_space<vmem>>, vector<1x1x4x8xbf16>
      %46 = vector.shape_cast %45 : vector<1x1x4x8xbf16> to vector<4x8xbf16>
      %47 = vector.shape_cast %44 : vector<4x8xbf16> to vector<1x1x4x8xbf16>
      tpu.vector_store %arg8[%c0_36, %c0_37, %c0_38, %c0_39], %47 {strides = array<i32>} : memref<1x1x4x8xbf16, #tpu.memory_space<vmem>>, vector<1x1x4x8xbf16>,
    } else {
    }
    return
  }
  func.func @transform_0(%arg0: i32, %arg1: i32, %arg2: i32, %arg3: i32) -> (i32, i32, i32, i32) {
    %c0_i32 = arith.constant 0 : i32
    %c0_i32_0 = arith.constant 0 : i32
    return %arg0, %arg1, %arg2, %c0_i32 : i32, i32, i32, i32
  }
  func.func @transform_1(%arg0: i32, %arg1: i32, %arg2: i32, %arg3: i32) -> (i32, i32, i32, i32) {
    %c0_i32 = arith.constant 0 : i32
    %c0_i32_0 = arith.constant 0 : i32
    return %arg0, %arg1, %arg3, %c0_i32 : i32, i32, i32, i32
  }
  func.func @transform_2(%arg0: i32, %arg1: i32, %arg2: i32, %arg3: i32) -> (i32, i32, i32, i32) {
    %c0_i32 = arith.constant 0 : i32
    %c0_i32_0 = arith.constant 0 : i32
    return %arg0, %arg1, %arg3, %c0_i32 : i32, i32, i32, i32
  }
  func.func @transform_3(%arg0: i32, %arg1: i32, %arg2: i32, %arg3: i32) -> (i32, i32, i32) {
    %c0_i32 = arith.constant 0 : i32
    %c0_i32_0 = arith.constant 0 : i32
    return %arg0, %c0_i32, %arg3 : i32, i32, i32
  }
  func.func @transform_4(%arg0: i32, %arg1: i32, %arg2: i32, %arg3: i32) -> (i32, i32, i32, i32) {
    %c0_i32 = arith.constant 0 : i32
    %c0_i32_0 = arith.constant 0 : i32
    return %arg0, %arg1, %arg2, %c0_i32 : i32, i32, i32, i32
  }
}

module attributes {stable_mosaic.version = 11 : i64} {
  func.func @_attn_out_kernel(%arg0: i32, %arg1: i32, %arg2: i32, %arg3: memref<1x1x4x8xbf16, #tpu.memory_space<vmem>>, %arg4: memref<1x8x32xbf16, #tpu.memory_space<vmem>>, %arg5: memref<1x32xf32, #tpu.memory_space<vmem>>, %arg6: memref<1x4x32xf32, #tpu.memory_space<vmem>>, %arg7: memref<1x4x32xf32, #tpu.memory_space<vmem>>, %arg8: memref<4x32xf32, #tpu.memory_space<vmem>>) attributes {dimension_semantics = [#tpu.dimension_semantics<parallel>, #tpu.dimension_semantics<parallel>, #tpu.dimension_semantics<arbitrary>], iteration_bounds = array<i64: 2, 1, 4>, scalar_prefetch = 0 : i64, scratch_operands = 1 : i64, tpu.core_type = #tpu.core_type<tc>, window_params = [{transform_indices = @transform_0, window_bounds = array<i64: 1, 1, 4, 8>}, {transform_indices = @transform_1, window_bounds = array<i64: 1, 8, 32>}, {pipeline_mode = #tpu.pipeline_mode<synchronous>, transform_indices = @transform_2, window_bounds = array<i64: 1, 32>}, {transform_indices = @transform_3, window_bounds = array<i64: 1, 4, 32>}, {transform_indices = @transform_4, window_bounds = array<i64: 1, 4, 32>}]} {
    %c0_i32 = arith.constant 0 : i32
    %0 = arith.cmpi eq, %arg2, %c0_i32 : i32
    %1 = arith.extui %0 : i1 to i32
    %c0_i32_0 = arith.constant 0 : i32
    %2 = arith.cmpi ne, %1, %c0_i32_0 : i32
    scf.if %2 {
      %cst_12 = arith.constant 0.000000e+00 : f32
      %14 = vector.broadcast %cst_12 : f32 to vector<4x32xf32>
      %c0_13 = arith.constant 0 : index
      %c0_14 = arith.constant 0 : index
      %15 = vector.load %arg8[%c0_13, %c0_14] : memref<4x32xf32, #tpu.memory_space<vmem>>, vector<4x32xf32>
      tpu.vector_store %arg8[%c0_13, %c0_14], %14 {strides = array<i32>} : memref<4x32xf32, #tpu.memory_space<vmem>>, vector<4x32xf32>,
    } else {
    }
    %c0 = arith.constant 0 : index
    %c0_1 = arith.constant 0 : index
    %3 = vector.load %arg8[%c0, %c0_1] : memref<4x32xf32, #tpu.memory_space<vmem>>, vector<4x32xf32>
    %c0_2 = arith.constant 0 : index
    %c0_3 = arith.constant 0 : index
    %c0_4 = arith.constant 0 : index
    %c0_5 = arith.constant 0 : index
    %4 = vector.load %arg3[%c0_2, %c0_3, %c0_4, %c0_5] : memref<1x1x4x8xbf16, #tpu.memory_space<vmem>>, vector<1x1x4x8xbf16>
    %5 = vector.shape_cast %4 : vector<1x1x4x8xbf16> to vector<4x8xbf16>
    %c0_6 = arith.constant 0 : index
    %c0_7 = arith.constant 0 : index
    %c0_8 = arith.constant 0 : index
    %6 = vector.load %arg4[%c0_6, %c0_7, %c0_8] : memref<1x8x32xbf16, #tpu.memory_space<vmem>>, vector<1x8x32xbf16>
    %7 = vector.shape_cast %6 : vector<1x8x32xbf16> to vector<8x32xbf16>
    %cst = arith.constant dense<0.000000e+00> : vector<4x32xf32>
    %8 = tpu.matmul %5, %7, %cst {dimension_numbers = #tpu.dot_dimension_numbers<[1], [0], [0], [1], [0, 0, 1, 1], [], []>} : vector<4x8xbf16>, vector<8x32xbf16>, vector<4x32xf32> -> vector<4x32xf32>
    %9 = arith.addf %3, %8 : vector<4x32xf32>
    %c0_9 = arith.constant 0 : index
    %c0_10 = arith.constant 0 : index
    %10 = vector.load %arg8[%c0_9, %c0_10] : memref<4x32xf32, #tpu.memory_space<vmem>>, vector<4x32xf32>
    tpu.vector_store %arg8[%c0_9, %c0_10], %9 {strides = array<i32>} : memref<4x32xf32, #tpu.memory_space<vmem>>, vector<4x32xf32>,
    %c3_i32 = arith.constant 3 : i32
    %11 = arith.cmpi eq, %arg2, %c3_i32 : i32
    %12 = arith.extui %11 : i1 to i32
    %c0_i32_11 = arith.constant 0 : i32
    %13 = arith.cmpi ne, %12, %c0_i32_11 : i32
    scf.if %13 {
      %c0_12 = arith.constant 0 : index
      %c0_13 = arith.constant 0 : index
      %14 = vector.load %arg8[%c0_12, %c0_13] : memref<4x32xf32, #tpu.memory_space<vmem>>, vector<4x32xf32>
      %c0_14 = arith.constant 0 : index
      %c0_15 = arith.constant 0 : index
      %15 = vector.load %arg5[%c0_14, %c0_15] : memref<1x32xf32, #tpu.memory_space<vmem>>, vector<1x32xf32>
      %16 = vector.broadcast %15 : vector<1x32xf32> to vector<4x32xf32>
      %17 = arith.addf %14, %16 : vector<4x32xf32>
      %c0_16 = arith.constant 0 : index
      %c0_17 = arith.constant 0 : index
      %c0_18 = arith.constant 0 : index
      %18 = vector.load %arg6[%c0_16, %c0_17, %c0_18] : memref<1x4x32xf32, #tpu.memory_space<vmem>>, vector<1x4x32xf32>
      %19 = vector.shape_cast %18 : vector<1x4x32xf32> to vector<4x32xf32>
      %20 = arith.addf %17, %19 : vector<4x32xf32>
      %c0_19 = arith.constant 0 : index
      %c0_20 = arith.constant 0 : index
      %c0_21 = arith.constant 0 : index
      %21 = vector.load %arg7[%c0_19, %c0_20, %c0_21] : memref<1x4x32xf32, #tpu.memory_space<vmem>>, vector<1x4x32xf32>
      %22 = vector.shape_cast %21 : vector<1x4x32xf32> to vector<4x32xf32>
      %23 = vector.shape_cast %20 : vector<4x32xf32> to vector<1x4x32xf32>
      tpu.vector_store %arg7[%c0_19, %c0_20, %c0_21], %23 {strides = array<i32>} : memref<1x4x32xf32, #tpu.memory_space<vmem>>, vector<1x4x32xf32>,
    } else {
    }
    return
  }
  func.func @transform_0(%arg0: i32, %arg1: i32, %arg2: i32) -> (i32, i32, i32, i32) {
    %c0_i32 = arith.constant 0 : i32
    %c0_i32_0 = arith.constant 0 : i32
    return %arg0, %arg2, %arg1, %c0_i32 : i32, i32, i32, i32
  }
  func.func @transform_1(%arg0: i32, %arg1: i32, %arg2: i32) -> (i32, i32, i32) {
    %c0_i32 = arith.constant 0 : i32
    %c0_i32_0 = arith.constant 0 : i32
    %c0_i32_1 = arith.constant 0 : i32
    return %arg2, %c0_i32, %c0_i32_0 : i32, i32, i32
  }
  func.func @transform_2(%arg0: i32, %arg1: i32, %arg2: i32) -> (i32, i32) {
    %c0_i32 = arith.constant 0 : i32
    %c0_i32_0 = arith.constant 0 : i32
    %c0_i32_1 = arith.constant 0 : i32
    return %c0_i32, %c0_i32_0 : i32, i32
  }
  func.func @transform_3(%arg0: i32, %arg1: i32, %arg2: i32) -> (i32, i32, i32) {
    %c0_i32 = arith.constant 0 : i32
    %c0_i32_0 = arith.constant 0 : i32
    return %arg0, %arg1, %c0_i32 : i32, i32, i32
  }
  func.func @transform_4(%arg0: i32, %arg1: i32, %arg2: i32) -> (i32, i32, i32) {
    %c0_i32 = arith.constant 0 : i32
    %c0_i32_0 = arith.constant 0 : i32
    return %arg0, %arg1, %c0_i32 : i32, i32, i32
  }
}

module attributes {stable_mosaic.version = 11 : i64} {
  func.func @_conv_block_kernel(%arg0: i32, %arg1: memref<1x4x32xf32, #tpu.memory_space<vmem>>, %arg2: memref<1x32xf32, #tpu.memory_space<vmem>>, %arg3: memref<1x32xf32, #tpu.memory_space<vmem>>, %arg4: memref<32x64xbf16, #tpu.memory_space<vmem>>, %arg5: memref<1x64xf32, #tpu.memory_space<vmem>>, %arg6: memref<3x32xf32, #tpu.memory_space<vmem>>, %arg7: memref<1x32xf32, #tpu.memory_space<vmem>>, %arg8: memref<1x32xf32, #tpu.memory_space<vmem>>, %arg9: memref<1x32xf32, #tpu.memory_space<vmem>>, %arg10: memref<32x32xbf16, #tpu.memory_space<vmem>>, %arg11: memref<1x32xf32, #tpu.memory_space<vmem>>, %arg12: memref<1x4x32xf32, #tpu.memory_space<vmem>>) attributes {dimension_semantics = [#tpu.dimension_semantics<parallel>], iteration_bounds = array<i64: 2>, scalar_prefetch = 0 : i64, scratch_operands = 0 : i64, tpu.core_type = #tpu.core_type<tc>, window_params = [{transform_indices = @transform_0, window_bounds = array<i64: 1, 4, 32>}, {pipeline_mode = #tpu.pipeline_mode<synchronous>, transform_indices = @transform_1, window_bounds = array<i64: 1, 32>}, {pipeline_mode = #tpu.pipeline_mode<synchronous>, transform_indices = @transform_2, window_bounds = array<i64: 1, 32>}, {pipeline_mode = #tpu.pipeline_mode<synchronous>, transform_indices = @transform_3, window_bounds = array<i64: 32, 64>}, {pipeline_mode = #tpu.pipeline_mode<synchronous>, transform_indices = @transform_4, window_bounds = array<i64: 1, 64>}, {pipeline_mode = #tpu.pipeline_mode<synchronous>, transform_indices = @transform_5, window_bounds = array<i64: 3, 32>}, {pipeline_mode = #tpu.pipeline_mode<synchronous>, transform_indices = @transform_6, window_bounds = array<i64: 1, 32>}, {pipeline_mode = #tpu.pipeline_mode<synchronous>, transform_indices = @transform_7, window_bounds = array<i64: 1, 32>}, {pipeline_mode = #tpu.pipeline_mode<synchronous>, transform_indices = @transform_8, window_bounds = array<i64: 1, 32>}, {pipeline_mode = #tpu.pipeline_mode<synchronous>, transform_indices = @transform_9, window_bounds = array<i64: 32, 32>}, {pipeline_mode = #tpu.pipeline_mode<synchronous>, transform_indices = @transform_10, window_bounds = array<i64: 1, 32>}, {transform_indices = @transform_11, window_bounds = array<i64: 1, 4, 32>}]} {
    %c0 = arith.constant 0 : index
    %c0_0 = arith.constant 0 : index
    %c0_1 = arith.constant 0 : index
    %0 = vector.load %arg1[%c0, %c0_0, %c0_1] : memref<1x4x32xf32, #tpu.memory_space<vmem>>, vector<1x4x32xf32>
    %1 = vector.shape_cast %0 : vector<1x4x32xf32> to vector<4x32xf32>
    %cst = arith.constant dense<0.000000e+00> : vector<4xf32>
    %2 = vector.multi_reduction <add>, %1, %cst [1] : vector<4x32xf32> to vector<4xf32>
    %3 = vector.shape_cast %2 : vector<4xf32> to vector<4x1xf32>
    %cst_2 = arith.constant 3.200000e+01 : f32
    %4 = vector.broadcast %cst_2 : f32 to vector<4x1xf32>
    %5 = arith.divf %3, %4 : vector<4x1xf32>
    %6 = vector.broadcast %5 : vector<4x1xf32> to vector<4x32xf32>
    %7 = arith.subf %1, %6 : vector<4x32xf32>
    %8 = arith.mulf %7, %7 : vector<4x32xf32>
    %cst_3 = arith.constant dense<0.000000e+00> : vector<4xf32>
    %9 = vector.multi_reduction <add>, %8, %cst_3 [1] : vector<4x32xf32> to vector<4xf32>
    %10 = vector.shape_cast %9 : vector<4xf32> to vector<4x1xf32>
    %cst_4 = arith.constant 3.200000e+01 : f32
    %11 = vector.broadcast %cst_4 : f32 to vector<4x1xf32>
    %12 = arith.divf %10, %11 : vector<4x1xf32>
    %13 = vector.broadcast %5 : vector<4x1xf32> to vector<4x32xf32>
    %14 = arith.subf %1, %13 : vector<4x32xf32>
    %cst_5 = arith.constant 9.99999974E-6 : f32
    %15 = vector.broadcast %cst_5 : f32 to vector<4x1xf32>
    %16 = arith.addf %12, %15 : vector<4x1xf32>
    %17 = math.rsqrt %16 : vector<4x1xf32>
    %18 = vector.broadcast %17 : vector<4x1xf32> to vector<4x32xf32>
    %19 = arith.mulf %14, %18 : vector<4x32xf32>
    %c0_6 = arith.constant 0 : index
    %c0_7 = arith.constant 0 : index
    %20 = vector.load %arg2[%c0_6, %c0_7] : memref<1x32xf32, #tpu.memory_space<vmem>>, vector<1x32xf32>
    %21 = vector.broadcast %20 : vector<1x32xf32> to vector<4x32xf32>
    %22 = arith.mulf %19, %21 : vector<4x32xf32>
    %c0_8 = arith.constant 0 : index
    %c0_9 = arith.constant 0 : index
    %23 = vector.load %arg3[%c0_8, %c0_9] : memref<1x32xf32, #tpu.memory_space<vmem>>, vector<1x32xf32>
    %24 = vector.broadcast %23 : vector<1x32xf32> to vector<4x32xf32>
    %25 = arith.addf %22, %24 : vector<4x32xf32>
    %26 = arith.truncf %25 : vector<4x32xf32> to vector<4x32xbf16>
    %c0_10 = arith.constant 0 : index
    %c0_11 = arith.constant 0 : index
    %27 = vector.load %arg4[%c0_10, %c0_11] : memref<32x64xbf16, #tpu.memory_space<vmem>>, vector<32x64xbf16>
    %cst_12 = arith.constant dense<0.000000e+00> : vector<4x64xf32>
    %28 = tpu.matmul %26, %27, %cst_12 {dimension_numbers = #tpu.dot_dimension_numbers<[1], [0], [0], [1], [0, 0, 1, 1], [], []>} : vector<4x32xbf16>, vector<32x64xbf16>, vector<4x64xf32> -> vector<4x64xf32>
    %c0_13 = arith.constant 0 : index
    %c0_14 = arith.constant 0 : index
    %29 = vector.load %arg5[%c0_13, %c0_14] : memref<1x64xf32, #tpu.memory_space<vmem>>, vector<1x64xf32>
    %30 = vector.broadcast %29 : vector<1x64xf32> to vector<4x64xf32>
    %31 = arith.addf %28, %30 : vector<4x64xf32>
    %32 = vector.extract_strided_slice %31 {offsets = [0, 0], sizes = [4, 32], strides = [1, 1]} : vector<4x64xf32> to vector<4x32xf32>
    %33 = vector.extract_strided_slice %31 {offsets = [0, 32], sizes = [4, 32], strides = [1, 1]} : vector<4x64xf32> to vector<4x32xf32>
    %34 = arith.negf %33 : vector<4x32xf32>
    %35 = math.exp %34 : vector<4x32xf32>
    %cst_15 = arith.constant 1.000000e+00 : f32
    %36 = vector.broadcast %cst_15 : f32 to vector<4x32xf32>
    %37 = arith.addf %36, %35 : vector<4x32xf32>
    %38 = arith.divf %36, %37 : vector<4x32xf32>
    %39 = arith.mulf %32, %38 : vector<4x32xf32>
    %cst_16 = arith.constant 0.000000e+00 : f32
    %40 = vector.broadcast %cst_16 : f32 to vector<1x32xf32>
    %cst_17 = arith.constant 0.000000e+00 : f32
    %41 = vector.broadcast %cst_17 : f32 to vector<1x32xf32>
    %42 = tpu.concatenate %40, %39, %41 in 0 : vector<1x32xf32>, vector<4x32xf32>, vector<1x32xf32> -> vector<6x32xf32>
    %c0_18 = arith.constant 0 : index
    %c0_19 = arith.constant 0 : index
    %43 = vector.load %arg6[%c0_18, %c0_19] : memref<3x32xf32, #tpu.memory_space<vmem>>, vector<3x32xf32>
    %cst_20 = arith.constant 0.000000e+00 : f32
    %44 = vector.broadcast %cst_20 : f32 to vector<4x32xf32>
    %45 = vector.extract_strided_slice %42 {offsets = [0, 0], sizes = [4, 32], strides = [1, 1]} : vector<6x32xf32> to vector<4x32xf32>
    %46 = vector.extract_strided_slice %43 {offsets = [0, 0], sizes = [1, 32], strides = [1, 1]} : vector<3x32xf32> to vector<1x32xf32>
    %47 = vector.broadcast %46 : vector<1x32xf32> to vector<4x32xf32>
    %48 = arith.mulf %45, %47 : vector<4x32xf32>
    %49 = arith.addf %44, %48 : vector<4x32xf32>
    %50 = vector.extract_strided_slice %42 {offsets = [1, 0], sizes = [4, 32], strides = [1, 1]} : vector<6x32xf32> to vector<4x32xf32>
    %51 = vector.extract_strided_slice %43 {offsets = [1, 0], sizes = [1, 32], strides = [1, 1]} : vector<3x32xf32> to vector<1x32xf32>
    %52 = vector.broadcast %51 : vector<1x32xf32> to vector<4x32xf32>
    %53 = arith.mulf %50, %52 : vector<4x32xf32>
    %54 = arith.addf %49, %53 : vector<4x32xf32>
    %55 = vector.extract_strided_slice %42 {offsets = [2, 0], sizes = [4, 32], strides = [1, 1]} : vector<6x32xf32> to vector<4x32xf32>
    %56 = vector.extract_strided_slice %43 {offsets = [2, 0], sizes = [1, 32], strides = [1, 1]} : vector<3x32xf32> to vector<1x32xf32>
    %57 = vector.broadcast %56 : vector<1x32xf32> to vector<4x32xf32>
    %58 = arith.mulf %55, %57 : vector<4x32xf32>
    %59 = arith.addf %54, %58 : vector<4x32xf32>
    %c0_21 = arith.constant 0 : index
    %c0_22 = arith.constant 0 : index
    %60 = vector.load %arg7[%c0_21, %c0_22] : memref<1x32xf32, #tpu.memory_space<vmem>>, vector<1x32xf32>
    %61 = vector.broadcast %60 : vector<1x32xf32> to vector<4x32xf32>
    %62 = arith.addf %59, %61 : vector<4x32xf32>
    %c0_23 = arith.constant 0 : index
    %c0_24 = arith.constant 0 : index
    %63 = vector.load %arg8[%c0_23, %c0_24] : memref<1x32xf32, #tpu.memory_space<vmem>>, vector<1x32xf32>
    %64 = vector.broadcast %63 : vector<1x32xf32> to vector<4x32xf32>
    %65 = arith.mulf %62, %64 : vector<4x32xf32>
    %c0_25 = arith.constant 0 : index
    %c0_26 = arith.constant 0 : index
    %66 = vector.load %arg9[%c0_25, %c0_26] : memref<1x32xf32, #tpu.memory_space<vmem>>, vector<1x32xf32>
    %67 = vector.broadcast %66 : vector<1x32xf32> to vector<4x32xf32>
    %68 = arith.addf %65, %67 : vector<4x32xf32>
    %69 = arith.negf %68 : vector<4x32xf32>
    %70 = math.exp %69 : vector<4x32xf32>
    %cst_27 = arith.constant 1.000000e+00 : f32
    %71 = vector.broadcast %cst_27 : f32 to vector<4x32xf32>
    %72 = arith.addf %71, %70 : vector<4x32xf32>
    %73 = arith.divf %71, %72 : vector<4x32xf32>
    %74 = arith.mulf %68, %73 : vector<4x32xf32>
    %75 = arith.truncf %74 : vector<4x32xf32> to vector<4x32xbf16>
    %c0_28 = arith.constant 0 : index
    %c0_29 = arith.constant 0 : index
    %76 = vector.load %arg10[%c0_28, %c0_29] : memref<32x32xbf16, #tpu.memory_space<vmem>>, vector<32x32xbf16>
    %cst_30 = arith.constant dense<0.000000e+00> : vector<4x32xf32>
    %77 = tpu.matmul %75, %76, %cst_30 {dimension_numbers = #tpu.dot_dimension_numbers<[1], [0], [0], [1], [0, 0, 1, 1], [], []>} : vector<4x32xbf16>, vector<32x32xbf16>, vector<4x32xf32> -> vector<4x32xf32>
    %c0_31 = arith.constant 0 : index
    %c0_32 = arith.constant 0 : index
    %78 = vector.load %arg11[%c0_31, %c0_32] : memref<1x32xf32, #tpu.memory_space<vmem>>, vector<1x32xf32>
    %79 = vector.broadcast %78 : vector<1x32xf32> to vector<4x32xf32>
    %80 = arith.addf %77, %79 : vector<4x32xf32>
    %81 = arith.addf %1, %80 : vector<4x32xf32>
    %c0_33 = arith.constant 0 : index
    %c0_34 = arith.constant 0 : index
    %c0_35 = arith.constant 0 : index
    %82 = vector.load %arg12[%c0_33, %c0_34, %c0_35] : memref<1x4x32xf32, #tpu.memory_space<vmem>>, vector<1x4x32xf32>
    %83 = vector.shape_cast %82 : vector<1x4x32xf32> to vector<4x32xf32>
    %84 = vector.shape_cast %81 : vector<4x32xf32> to vector<1x4x32xf32>
    tpu.vector_store %arg12[%c0_33, %c0_34, %c0_35], %84 {strides = array<i32>} : memref<1x4x32xf32, #tpu.memory_space<vmem>>, vector<1x4x32xf32>,
    return
  }
  func.func @transform_0(%arg0: i32) -> (i32, i32, i32) {
    %c0_i32 = arith.constant 0 : i32
    %c0_i32_0 = arith.constant 0 : i32
    %c0_i32_1 = arith.constant 0 : i32
    return %arg0, %c0_i32, %c0_i32_0 : i32, i32, i32
  }
  func.func @transform_1(%arg0: i32) -> (i32, i32) {
    %c0_i32 = arith.constant 0 : i32
    %c0_i32_0 = arith.constant 0 : i32
    %c0_i32_1 = arith.constant 0 : i32
    return %c0_i32, %c0_i32_0 : i32, i32
  }
  func.func @transform_2(%arg0: i32) -> (i32, i32) {
    %c0_i32 = arith.constant 0 : i32
    %c0_i32_0 = arith.constant 0 : i32
    %c0_i32_1 = arith.constant 0 : i32
    return %c0_i32, %c0_i32_0 : i32, i32
  }
  func.func @transform_3(%arg0: i32) -> (i32, i32) {
    %c0_i32 = arith.constant 0 : i32
    %c0_i32_0 = arith.constant 0 : i32
    %c0_i32_1 = arith.constant 0 : i32
    return %c0_i32, %c0_i32_0 : i32, i32
  }
  func.func @transform_4(%arg0: i32) -> (i32, i32) {
    %c0_i32 = arith.constant 0 : i32
    %c0_i32_0 = arith.constant 0 : i32
    %c0_i32_1 = arith.constant 0 : i32
    return %c0_i32, %c0_i32_0 : i32, i32
  }
  func.func @transform_5(%arg0: i32) -> (i32, i32) {
    %c0_i32 = arith.constant 0 : i32
    %c0_i32_0 = arith.constant 0 : i32
    %c0_i32_1 = arith.constant 0 : i32
    return %c0_i32, %c0_i32_0 : i32, i32
  }
  func.func @transform_6(%arg0: i32) -> (i32, i32) {
    %c0_i32 = arith.constant 0 : i32
    %c0_i32_0 = arith.constant 0 : i32
    %c0_i32_1 = arith.constant 0 : i32
    return %c0_i32, %c0_i32_0 : i32, i32
  }
  func.func @transform_7(%arg0: i32) -> (i32, i32) {
    %c0_i32 = arith.constant 0 : i32
    %c0_i32_0 = arith.constant 0 : i32
    %c0_i32_1 = arith.constant 0 : i32
    return %c0_i32, %c0_i32_0 : i32, i32
  }
  func.func @transform_8(%arg0: i32) -> (i32, i32) {
    %c0_i32 = arith.constant 0 : i32
    %c0_i32_0 = arith.constant 0 : i32
    %c0_i32_1 = arith.constant 0 : i32
    return %c0_i32, %c0_i32_0 : i32, i32
  }
  func.func @transform_9(%arg0: i32) -> (i32, i32) {
    %c0_i32 = arith.constant 0 : i32
    %c0_i32_0 = arith.constant 0 : i32
    %c0_i32_1 = arith.constant 0 : i32
    return %c0_i32, %c0_i32_0 : i32, i32
  }
  func.func @transform_10(%arg0: i32) -> (i32, i32) {
    %c0_i32 = arith.constant 0 : i32
    %c0_i32_0 = arith.constant 0 : i32
    %c0_i32_1 = arith.constant 0 : i32
    return %c0_i32, %c0_i32_0 : i32, i32
  }
  func.func @transform_11(%arg0: i32) -> (i32, i32, i32) {
    %c0_i32 = arith.constant 0 : i32
    %c0_i32_0 = arith.constant 0 : i32
    %c0_i32_1 = arith.constant 0 : i32
    return %arg0, %c0_i32, %c0_i32_0 : i32, i32, i32
  }
}

module attributes {stable_mosaic.version = 11 : i64} {
  func.func @_layernorm_kernel(%arg0: i32, %arg1: memref<8x32xf32, #tpu.memory_space<vmem>>, %arg2: memref<1x32xf32, #tpu.memory_space<vmem>>, %arg3: memref<1x32xf32, #tpu.memory_space<vmem>>, %arg4: memref<8x32xf32, #tpu.memory_space<vmem>>) attributes {dimension_semantics = [#tpu.dimension_semantics<parallel>], iteration_bounds = array<i64: 1>, scalar_prefetch = 0 : i64, scratch_operands = 0 : i64, tpu.core_type = #tpu.core_type<tc>, window_params = [{transform_indices = @transform_0, window_bounds = array<i64: 8, 32>}, {pipeline_mode = #tpu.pipeline_mode<synchronous>, transform_indices = @transform_1, window_bounds = array<i64: 1, 32>}, {pipeline_mode = #tpu.pipeline_mode<synchronous>, transform_indices = @transform_2, window_bounds = array<i64: 1, 32>}, {transform_indices = @transform_3, window_bounds = array<i64: 8, 32>}]} {
    %c0 = arith.constant 0 : index
    %c0_0 = arith.constant 0 : index
    %0 = vector.load %arg1[%c0, %c0_0] : memref<8x32xf32, #tpu.memory_space<vmem>>, vector<8x32xf32>
    %cst = arith.constant dense<0.000000e+00> : vector<8xf32>
    %1 = vector.multi_reduction <add>, %0, %cst [1] : vector<8x32xf32> to vector<8xf32>
    %2 = vector.shape_cast %1 : vector<8xf32> to vector<8x1xf32>
    %cst_1 = arith.constant 3.200000e+01 : f32
    %3 = vector.broadcast %cst_1 : f32 to vector<8x1xf32>
    %4 = arith.divf %2, %3 : vector<8x1xf32>
    %5 = vector.broadcast %4 : vector<8x1xf32> to vector<8x32xf32>
    %6 = arith.subf %0, %5 : vector<8x32xf32>
    %7 = arith.mulf %6, %6 : vector<8x32xf32>
    %cst_2 = arith.constant dense<0.000000e+00> : vector<8xf32>
    %8 = vector.multi_reduction <add>, %7, %cst_2 [1] : vector<8x32xf32> to vector<8xf32>
    %9 = vector.shape_cast %8 : vector<8xf32> to vector<8x1xf32>
    %cst_3 = arith.constant 3.200000e+01 : f32
    %10 = vector.broadcast %cst_3 : f32 to vector<8x1xf32>
    %11 = arith.divf %9, %10 : vector<8x1xf32>
    %12 = vector.broadcast %4 : vector<8x1xf32> to vector<8x32xf32>
    %13 = arith.subf %0, %12 : vector<8x32xf32>
    %cst_4 = arith.constant 9.99999974E-6 : f32
    %14 = vector.broadcast %cst_4 : f32 to vector<8x1xf32>
    %15 = arith.addf %11, %14 : vector<8x1xf32>
    %16 = math.rsqrt %15 : vector<8x1xf32>
    %17 = vector.broadcast %16 : vector<8x1xf32> to vector<8x32xf32>
    %18 = arith.mulf %13, %17 : vector<8x32xf32>
    %c0_5 = arith.constant 0 : index
    %c0_6 = arith.constant 0 : index
    %19 = vector.load %arg2[%c0_5, %c0_6] : memref<1x32xf32, #tpu.memory_space<vmem>>, vector<1x32xf32>
    %20 = vector.broadcast %19 : vector<1x32xf32> to vector<8x32xf32>
    %21 = arith.mulf %18, %20 : vector<8x32xf32>
    %c0_7 = arith.constant 0 : index
    %c0_8 = arith.constant 0 : index
    %22 = vector.load %arg3[%c0_7, %c0_8] : memref<1x32xf32, #tpu.memory_space<vmem>>, vector<1x32xf32>
    %23 = vector.broadcast %22 : vector<1x32xf32> to vector<8x32xf32>
    %24 = arith.addf %21, %23 : vector<8x32xf32>
    %c0_9 = arith.constant 0 : index
    %c0_10 = arith.constant 0 : index
    %25 = vector.load %arg4[%c0_9, %c0_10] : memref<8x32xf32, #tpu.memory_space<vmem>>, vector<8x32xf32>
    tpu.vector_store %arg4[%c0_9, %c0_10], %24 {strides = array<i32>} : memref<8x32xf32, #tpu.memory_space<vmem>>, vector<8x32xf32>,
    return
  }
  func.func @transform_0(%arg0: i32) -> (i32, i32) {
    %c0_i32 = arith.constant 0 : i32
    %c0_i32_0 = arith.constant 0 : i32
    return %arg0, %c0_i32 : i32, i32
  }
  func.func @transform_1(%arg0: i32) -> (i32, i32) {
    %c0_i32 = arith.constant 0 : i32
    %c0_i32_0 = arith.constant 0 : i32
    %c0_i32_1 = arith.constant 0 : i32
    return %c0_i32, %c0_i32_0 : i32, i32
  }
  func.func @transform_2(%arg0: i32) -> (i32, i32) {
    %c0_i32 = arith.constant 0 : i32
    %c0_i32_0 = arith.constant 0 : i32
    %c0_i32_1 = arith.constant 0 : i32
    return %c0_i32, %c0_i32_0 : i32, i32
  }
  func.func @transform_3(%arg0: i32) -> (i32, i32) {
    %c0_i32 = arith.constant 0 : i32
    %c0_i32_0 = arith.constant 0 : i32
    return %arg0, %c0_i32 : i32, i32
  }
}

module attributes {stable_mosaic.version = 11 : i64} {
  func.func @_logits_logsoftmax_kernel(%arg0: i32, %arg1: memref<8x32xf32, #tpu.memory_space<vmem>>, %arg2: memref<32x16xbf16, #tpu.memory_space<vmem>>, %arg3: memref<1x16xf32, #tpu.memory_space<vmem>>, %arg4: memref<8x16xf32, #tpu.memory_space<vmem>>) attributes {dimension_semantics = [#tpu.dimension_semantics<parallel>], iteration_bounds = array<i64: 1>, scalar_prefetch = 0 : i64, scratch_operands = 0 : i64, tpu.core_type = #tpu.core_type<tc>, window_params = [{transform_indices = @transform_0, window_bounds = array<i64: 8, 32>}, {pipeline_mode = #tpu.pipeline_mode<synchronous>, transform_indices = @transform_1, window_bounds = array<i64: 32, 16>}, {pipeline_mode = #tpu.pipeline_mode<synchronous>, transform_indices = @transform_2, window_bounds = array<i64: 1, 16>}, {transform_indices = @transform_3, window_bounds = array<i64: 8, 16>}]} {
    %c0 = arith.constant 0 : index
    %c0_0 = arith.constant 0 : index
    %0 = vector.load %arg1[%c0, %c0_0] : memref<8x32xf32, #tpu.memory_space<vmem>>, vector<8x32xf32>
    %1 = arith.truncf %0 : vector<8x32xf32> to vector<8x32xbf16>
    %c0_1 = arith.constant 0 : index
    %c0_2 = arith.constant 0 : index
    %2 = vector.load %arg2[%c0_1, %c0_2] : memref<32x16xbf16, #tpu.memory_space<vmem>>, vector<32x16xbf16>
    %cst = arith.constant dense<0.000000e+00> : vector<8x16xf32>
    %3 = tpu.matmul %1, %2, %cst {dimension_numbers = #tpu.dot_dimension_numbers<[1], [0], [0], [1], [0, 0, 1, 1], [], []>} : vector<8x32xbf16>, vector<32x16xbf16>, vector<8x16xf32> -> vector<8x16xf32>
    %c0_3 = arith.constant 0 : index
    %c0_4 = arith.constant 0 : index
    %4 = vector.load %arg3[%c0_3, %c0_4] : memref<1x16xf32, #tpu.memory_space<vmem>>, vector<1x16xf32>
    %5 = vector.broadcast %4 : vector<1x16xf32> to vector<8x16xf32>
    %6 = arith.addf %3, %5 : vector<8x16xf32>
    %cst_5 = arith.constant dense<0xFF800000> : vector<8xf32>
    %7 = vector.multi_reduction <maximumf>, %6, %cst_5 [1] : vector<8x16xf32> to vector<8xf32>
    %8 = vector.shape_cast %7 : vector<8xf32> to vector<8x1xf32>
    %9 = vector.broadcast %8 : vector<8x1xf32> to vector<8x16xf32>
    %10 = arith.subf %6, %9 : vector<8x16xf32>
    %11 = math.exp %10 : vector<8x16xf32>
    %cst_6 = arith.constant dense<0.000000e+00> : vector<8xf32>
    %12 = vector.multi_reduction <add>, %11, %cst_6 [1] : vector<8x16xf32> to vector<8xf32>
    %13 = vector.shape_cast %12 : vector<8xf32> to vector<8x1xf32>
    %14 = math.log %13 : vector<8x1xf32>
    %15 = arith.addf %14, %8 : vector<8x1xf32>
    %16 = vector.broadcast %15 : vector<8x1xf32> to vector<8x16xf32>
    %17 = arith.subf %6, %16 : vector<8x16xf32>
    %c0_7 = arith.constant 0 : index
    %c0_8 = arith.constant 0 : index
    %18 = vector.load %arg4[%c0_7, %c0_8] : memref<8x16xf32, #tpu.memory_space<vmem>>, vector<8x16xf32>
    tpu.vector_store %arg4[%c0_7, %c0_8], %17 {strides = array<i32>} : memref<8x16xf32, #tpu.memory_space<vmem>>, vector<8x16xf32>,
    return
  }
  func.func @transform_0(%arg0: i32) -> (i32, i32) {
    %c0_i32 = arith.constant 0 : i32
    %c0_i32_0 = arith.constant 0 : i32
    return %arg0, %c0_i32 : i32, i32
  }
  func.func @transform_1(%arg0: i32) -> (i32, i32) {
    %c0_i32 = arith.constant 0 : i32
    %c0_i32_0 = arith.constant 0 : i32
    %c0_i32_1 = arith.constant 0 : i32
    return %c0_i32, %c0_i32_0 : i32, i32
  }
  func.func @transform_2(%arg0: i32) -> (i32, i32) {
    %c0_i32 = arith.constant 0 : i32
    %c0_i32_0 = arith.constant 0 : i32
    %c0_i32_1 = arith.constant 0 : i32
    return %c0_i32, %c0_i32_0 : i32, i32
  }
  func.func @transform_3(%arg0: i32) -> (i32, i32) {
    %c0_i32 = arith.constant 0 : i32
    %c0_i32_0 = arith.constant 0 : i32
    return %arg0, %c0_i32 : i32, i32
  }
}

</mosaic_0001>

<llo_original>
// kernel: conformer_forward.19
$region0: #{conformer_forward.19}
  #allocation0 [shape = 'u32[]', space=smem, size = 0x4, offset = 0x4, fixed_abs, tag = 'smem constant byte address 0x4 - core index']
  #allocation1 [shape = 'u32[72,128]{1,0:T(1,128)}', space=vmem, size = 0x9000, scoped, tag = 'internal scratch']
  #allocation2 [shape = 'f32[32,32]{1,0:T(8,128)}', space=vmem, size = 0x4000, scoped, tag = 'scratch operand']
  %s0 = inlined_call_operand.vmem [shape: f32[32,288], index: 0, kind: input, shape index: {}]
  %s1 = inlined_call_operand.vmem [shape: bf16[288,32], index: 1, kind: input, shape index: {}]
  %s2 = inlined_call_operand.vmem [shape: f32[1,32], index: 2, kind: input, shape index: {}]
  %s3 = inlined_call_operand.vmem [shape: f32[32,32], index: 3, kind: output, shape index: {}]
  %s4 = sld [smem:[#allocation0]]
  $region30: #{conformer_forward.19} parent=0
    _
  %s6 = ssub.s32 1, %s4
  %s7 = scalar_select 0, %s6, %s4
  // Predicated region
  $region2: #{conformer_forward.19} parent=0 // pred_check
    _
  $region3: #{conformer_forward.19} parent=0 // pred_check_branch
    %9 = sbr.rel (0) target = $region5
  $region4: #{conformer_forward.19} parent=0 // pred_region
    _
  $region5: #{conformer_forward.19} parent=0 // pred_fallthru
    _
  // Predicated region
  $region6: #{conformer_forward.19} parent=0 // pred_check
    _
  $region7: #{conformer_forward.19} parent=0 // pred_check_branch
    %11 = sbr.rel (0) target = $region9
  $region8: #{conformer_forward.19} parent=0 // pred_region
    _
  $region9: #{conformer_forward.19} parent=0 // pred_fallthru
    _
  // Predicated region
  $region10: #{conformer_forward.19} parent=0 // pred_check
    _
  $region11: #{conformer_forward.19} parent=0 // pred_check_branch
    %13 = sbr.rel (0) target = $region13
  $region12: #{conformer_forward.19} parent=0 // pred_region
    _
  $region13: #{conformer_forward.19} parent=0 // pred_fallthru
    _
  %p15 = scmp.eq.s32.totalorder 0, 0
  // Predicated region
  $region14: #{conformer_forward.19} parent=0 // pred_check
    %p16 = pneg %p15
  $region15: #{conformer_forward.19} parent=0 // pred_check_branch
    %18 = sbr.rel (%p16) target = $region17
  $region16: #{conformer_forward.19} parent=0 // pred_region
    %vm19 = vcmask 261120
    %20 = vst.msk [vmem:[#allocation2] sm:$0xff] %vm19, 0.0
    %21 = vst.msk [vmem:[#allocation2 + $0x8] sm:$0xff] %vm19, 0.0
    %22 = vst.msk [vmem:[#allocation2 + $0x10] sm:$0xff] %vm19, 0.0
    %23 = vst.msk [vmem:[#allocation2 + $0x18] sm:$0xff] %vm19, 0.0
  $region17: #{conformer_forward.19} parent=0 // pred_fallthru
    _
  %v24 = vld [vmem:[#allocation2] sm:$0xff]
  %v25 = vld [vmem:[#allocation2 + $0x8] sm:$0xff]
  %v26 = vld [vmem:[#allocation2 + $0x10] sm:$0xff]
  %v27 = vld [vmem:[#allocation2 + $0x18] sm:$0xff]
  %v28 = vld [vmem:[%s0] sm:$0xff]
  %v29 = vld [vmem:[%s0 + $0x8] sm:$0xff]
  %v30 = vld [vmem:[%s0 + $0x10] sm:$0xff]
  %v31 = vld [vmem:[%s0 + $0x18] sm:$0xff]
  %v32 = vld [vmem:[%s0 + $0x20] sm:$0xff]
  %v33 = vld [vmem:[%s0 + $0x28] sm:$0xff]
  %v34 = vld [vmem:[%s0 + $0x30] sm:$0xff]
  %v35 = vld [vmem:[%s0 + $0x38] sm:$0xff]
  %v36 = vld [vmem:[%s0 + $0x40] sm:$0xff]
  %v37 = vld [vmem:[%s0 + $0x48] sm:$0xff]
  %v38 = vld [vmem:[%s0 + $0x50] sm:$0xff]
  %v39 = vld [vmem:[%s0 + $0x58] sm:$0xff]
  %v40 = vpack.c.bf16 %v31, %v28
  %v41 = vpack.c.bf16 %v32, %v29
  %v42 = vpack.c.bf16 %v33, %v30
  %v43 = vpack.c.bf16 %v37, %v34
  %v44 = vpack.c.bf16 %v38, %v35
  %v45 = vpack.c.bf16 %v39, %v36
  %v46 = vld [vmem:[%s1] sm:$0xf]
  %v47 = vld [vmem:[%s1 + $0x4] sm:$0xf]
  %v48 = vld [vmem:[%s1 + $0x8] sm:$0xf]
  %v49 = vld [vmem:[%s1 + $0xc] sm:$0xf]
  %v50 = vld [vmem:[%s1 + $0x10] sm:$0xf]
  %v51 = vld [vmem:[%s1 + $0x14] sm:$0xf]
  %v52 = vld [vmem:[%s1 + $0x18] sm:$0xf]
  %v53 = vld [vmem:[%s1 + $0x1c] sm:$0xf]
  %v54 = vld [vmem:[%s1 + $0x20] sm:$0xf]
  %v55 = vld [vmem:[%s1 + $0x24] sm:$0xf]
  %v56 = vld [vmem:[%s1 + $0x28] sm:$0xf]
  %v57 = vld [vmem:[%s1 + $0x2c] sm:$0xf]
  %v58 = vld [vmem:[%s1 + $0x30] sm:$0xf]
  %v59 = vld [vmem:[%s1 + $0x34] sm:$0xf]
  %v60 = vld [vmem:[%s1 + $0x38] sm:$0xf]
  %v61 = vld [vmem:[%s1 + $0x3c] sm:$0xf]
  %v62 = vld [vmem:[%s1 + $0x40] sm:$0xf]
  %v63 = vld [vmem:[%s1 + $0x44] sm:$0xf]
  %v64 = vld [vmem:[%s1 + $0x48] sm:$0xf]
  %v65 = vld [vmem:[%s1 + $0x4c] sm:$0xf]
  %v66 = vld [vmem:[%s1 + $0x50] sm:$0xf]
  %v67 = vld [vmem:[%s1 + $0x54] sm:$0xf]
  %v68 = vld [vmem:[%s1 + $0x58] sm:$0xf]
  %v69 = vld [vmem:[%s1 + $0x5c] sm:$0xf]
  %v70 = vld [vmem:[%s1 + $0x60] sm:$0xf]
  %v71 = vld [vmem:[%s1 + $0x64] sm:$0xf]
  %v72 = vld [vmem:[%s1 + $0x68] sm:$0xf]
  %v73 = vld [vmem:[%s1 + $0x6c] sm:$0xf]
  %v74 = vld [vmem:[%s1 + $0x70] sm:$0xf]
  %v75 = vld [vmem:[%s1 + $0x74] sm:$0xf]
  %v76 = vld [vmem:[%s1 + $0x78] sm:$0xf]
  %v77 = vld [vmem:[%s1 + $0x7c] sm:$0xf]
  %v78 = vld [vmem:[%s1 + $0x80] sm:$0xf]
  %v79 = vld [vmem:[%s1 + $0x84] sm:$0xf]
  %v80 = vld [vmem:[%s1 + $0x88] sm:$0xf]
  %v81 = vld [vmem:[%s1 + $0x8c] sm:$0xf]
  %v118 = vunpack.c.l.b16 %v46
  %v119 = vunpack.c.l.b16 %v47
  %v120 = vunpack.c.l.b16 %v48
  %v121 = vunpack.c.l.b16 %v49
  %v122 = vunpack.c.l.b16 %v50
  %v123 = vunpack.c.l.b16 %v51
  %v124 = vunpack.c.l.b16 %v52
  %v125 = vunpack.c.l.b16 %v53
  %v126 = vunpack.c.l.b16 %v54
  %v127 = vunpack.c.l.b16 %v55
  %v128 = vunpack.c.l.b16 %v56
  %v129 = vunpack.c.l.b16 %v57
  %v130 = vunpack.c.l.b16 %v58
  %v131 = vunpack.c.l.b16 %v59
  %v132 = vunpack.c.l.b16 %v60
  %v133 = vunpack.c.l.b16 %v61
  %v134 = vunpack.c.l.b16 %v62
  %v135 = vunpack.c.l.b16 %v63
  %v136 = vunpack.c.l.b16 %v64
  %v137 = vunpack.c.l.b16 %v65
  %v138 = vunpack.c.l.b16 %v66
  %v139 = vunpack.c.l.b16 %v67
  %v140 = vunpack.c.l.b16 %v68
  %v141 = vunpack.c.l.b16 %v69
  %v142 = vunpack.c.l.b16 %v70
  %v143 = vunpack.c.l.b16 %v71
  %v144 = vunpack.c.l.b16 %v72
  %v145 = vunpack.c.l.b16 %v73
  %v146 = vunpack.c.l.b16 %v74
  %v147 = vunpack.c.l.b16 %v75
  %v148 = vunpack.c.l.b16 %v76
  %v149 = vunpack.c.l.b16 %v77
  %v150 = vunpack.c.l.b16 %v78
  %v151 = vunpack.c.l.b16 %v79
  %v152 = vunpack.c.l.b16 %v80
  %v153 = vunpack.c.l.b16 %v81
  %v154 = vpack.c.b16 %v119, %v118
  %v155 = vpack.c.b16 %v121, %v120
  %v156 = vpack.c.b16 %v123, %v122
  %v157 = vpack.c.b16 %v125, %v124
  %v158 = vpack.c.b16 %v127, %v126
  %v159 = vpack.c.b16 %v129, %v128
  %v160 = vpack.c.b16 %v131, %v130
  %v161 = vpack.c.b16 %v133, %v132
  %v162 = vpack.c.b16 %v135, %v134
  %v163 = vpack.c.b16 %v137, %v136
  %v164 = vpack.c.b16 %v139, %v138
  %v165 = vpack.c.b16 %v141, %v140
  %v166 = vpack.c.b16 %v143, %v142
  %v167 = vpack.c.b16 %v145, %v144
  %v168 = vpack.c.b16 %v147, %v146
  %v169 = vpack.c.b16 %v149, %v148
  %v170 = vpack.c.b16 %v151, %v150
  %v171 = vpack.c.b16 %v153, %v152
  %vm190 = vcmask 261120
  %v192 = vsel %vm190, %v42, 0
  %v195 = vsel %vm190, %v45, 0
  %197 = vmatpush.bf16.msra.mxu0 %v161
  %198 = vmatpush.bf16.msra.mxu0 %v160
  %199 = vmatpush.bf16.msra.mxu0 %v159
  %200 = vmatpush.bf16.msra.mxu0 %v158
  %201 = vmatpush.bf16.msra.mxu0 %v157
  %202 = vmatpush.bf16.msra.mxu0 %v156
  %203 = vmatpush.bf16.msra.mxu0 %v155
  %204 = vmatpush.bf16.msra.mxu0 %v154
  %205 = vmatmul.bf16.gmra.mxu0 %v40
  %v206 = vpop.f32.mrf.mxu0
  %v207 = vadd.f32 0.0, %v206
  %v208 = vpop.f32.mrf.mxu0
  %v209 = vadd.f32 0.0, %v208
  %210 = vmatmul.bf16.gmra.mxu0 %v43
  %v211 = vpop.f32.mrf.mxu0
  %v212 = vadd.f32 0.0, %v211
  %v213 = vpop.f32.mrf.mxu0
  %v214 = vadd.f32 0.0, %v213
  %215 = vdwg.mxu0
  %216 = vmatpush.bf16.msra.mxu0 %v169
  %217 = vmatpush.bf16.msra.mxu0 %v168
  %218 = vmatpush.bf16.msra.mxu0 %v167
  %219 = vmatpush.bf16.msra.mxu0 %v166
  %220 = vmatpush.bf16.msra.mxu0 %v165
  %221 = vmatpush.bf16.msra.mxu0 %v164
  %222 = vmatpush.bf16.msra.mxu0 %v163
  %223 = vmatpush.bf16.msra.mxu0 %v162
  %224 = vmatmul.bf16.gmra.mxu0 %v41
  %v225 = vpop.f32.mrf.mxu0
  %v226 = vadd.f32 %v207, %v225
  %v227 = vpop.f32.mrf.mxu0
  %v228 = vadd.f32 %v209, %v227
  %229 = vmatmul.bf16.gmra.mxu0 %v44
  %v230 = vpop.f32.mrf.mxu0
  %v231 = vadd.f32 %v212, %v230
  %v232 = vpop.f32.mrf.mxu0
  %v233 = vadd.f32 %v214, %v232
  %234 = vdwg.mxu0
  %235 = vmatpush.bf16.msra.mxu0 0
  %236 = vmatpush.bf16.msra.mxu0 0
  %237 = vmatpush.bf16.msra.mxu0 0
  %238 = vmatpush.bf16.msra.mxu0 0
  %239 = vmatpush.bf16.msra.mxu0 0
  %240 = vmatpush.bf16.msra.mxu0 0
  %241 = vmatpush.bf16.msra.mxu0 %v171
  %242 = vmatpush.bf16.msra.mxu0 %v170
  %243 = vmatmul.bf16.gmra.mxu0 %v192
  %v244 = vpop.f32.mrf.mxu0
  %v245 = vadd.f32 %v226, %v244
  %v246 = vpop.f32.mrf.mxu0
  %v247 = vadd.f32 %v228, %v246
  %248 = vmatmul.bf16.gmra.mxu0 %v195
  %v249 = vpop.f32.mrf.mxu0
  %v250 = vadd.f32 %v231, %v249
  %v251 = vpop.f32.mrf.mxu0
  %v252 = vadd.f32 %v233, %v251
  %253 = vdwg.mxu0
  %v254 = vadd.f32 %v24, %v245
  %v255 = vadd.f32 %v25, %v247
  %v256 = vadd.f32 %v26, %v250
  %v257 = vadd.f32 %v27, %v252
  %258 = vst.msk [vmem:[#allocation2] sm:$0xff] %vm190, %v254
  %259 = vst.msk [vmem:[#allocation2 + $0x8] sm:$0xff] %vm190, %v255
  %260 = vst.msk [vmem:[#allocation2 + $0x10] sm:$0xff] %vm190, %v256
  %261 = vst.msk [vmem:[#allocation2 + $0x18] sm:$0xff] %vm190, %v257
  // Predicated region
  $region18: #{conformer_forward.19} parent=0 // pred_check
    %p262 = pneg %p15
  $region19: #{conformer_forward.19} parent=0 // pred_check_branch
    %264 = sbr.rel (%p262) target = $region21
  $region20: #{conformer_forward.19} parent=0 // pred_region
    %v265 = vld [vmem:[#allocation2] sm:$0xff]
    %v266 = vld [vmem:[#allocation2 + $0x8] sm:$0xff]
    %v267 = vld [vmem:[#allocation2 + $0x10] sm:$0xff]
    %v268 = vld [vmem:[#allocation2 + $0x18] sm:$0xff]
    %v269 = vld [vmem:[%s2] sm:$0x1]
    %v271 = vperm.slane %v269, 0
    %v273 = vadd.f32 %v265, %v271
    %v274 = vadd.f32 %v266, %v271
    %v275 = vadd.f32 %v267, %v271
    %v276 = vadd.f32 %v268, %v271
    %v277 = vmax.f32 %v273, 0.0
    %v278 = vmax.f32 %v274, 0.0
    %v279 = vmax.f32 %v275, 0.0
    %v280 = vmax.f32 %v276, 0.0
    %281 = vst.msk [vmem:[%s3] sm:$0xff] %vm190, %v277
    %282 = vst.msk [vmem:[%s3 + $0x8] sm:$0xff] %vm190, %v278
    %283 = vst.msk [vmem:[%s3 + $0x10] sm:$0xff] %vm190, %v279
    %284 = vst.msk [vmem:[%s3 + $0x18] sm:$0xff] %vm190, %v280
  $region21: #{conformer_forward.19} parent=0 // pred_fallthru
    _
  // Predicated region
  $region22: #{conformer_forward.19} parent=0 // pred_check
    _
  $region23: #{conformer_forward.19} parent=0 // pred_check_branch
    %286 = sbr.rel (0) target = $region25
  $region24: #{conformer_forward.19} parent=0 // pred_region
    _
  $region25: #{conformer_forward.19} parent=0 // pred_fallthru
    _
  // Predicated region
  $region26: #{conformer_forward.19} parent=0 // pred_check
    _
  $region27: #{conformer_forward.19} parent=0 // pred_check_branch
    %288 = sbr.rel (0) target = $region29
  $region28: #{conformer_forward.19} parent=0 // pred_region
    _
  $region29: #{conformer_forward.19} parent=0 // pred_fallthru
    _

// kernel: conformer_forward.18
$region0: #{conformer_forward.18}
  #allocation0 [shape = 'u32[]', space=smem, size = 0x4, offset = 0x4, fixed_abs, tag = 'smem constant byte address 0x4 - core index']
  #allocation1 [shape = 'u32[72,128]{1,0:T(1,128)}', space=vmem, size = 0x9000, scoped, tag = 'internal scratch']
  #allocation2 [shape = 'f32[128,32]{1,0:T(8,128)}', space=vmem, size = 0x10000, scoped, tag = 'scratch operand']
  %s0 = inlined_call_operand.vmem [shape: f32[128,9], index: 0, kind: input, shape index: {}]
  %s1 = inlined_call_operand.vmem [shape: bf16[9,32], index: 1, kind: input, shape index: {}]
  %s2 = inlined_call_operand.vmem [shape: f32[1,32], index: 2, kind: input, shape index: {}]
  %s3 = inlined_call_operand.vmem [shape: f32[128,32], index: 3, kind: output, shape index: {}]
  %s4 = sld [smem:[#allocation0]]
  $region30: #{conformer_forward.18} parent=0
    _
  %s6 = ssub.s32 1, %s4
  %s7 = scalar_select 0, %s6, %s4
  // Predicated region
  $region2: #{conformer_forward.18} parent=0 // pred_check
    _
  $region3: #{conformer_forward.18} parent=0 // pred_check_branch
    %9 = sbr.rel (0) target = $region5
  $region4: #{conformer_forward.18} parent=0 // pred_region
    _
  $region5: #{conformer_forward.18} parent=0 // pred_fallthru
    _
  // Predicated region
  $region6: #{conformer_forward.18} parent=0 // pred_check
    _
  $region7: #{conformer_forward.18} parent=0 // pred_check_branch
    %11 = sbr.rel (0) target = $region9
  $region8: #{conformer_forward.18} parent=0 // pred_region
    _
  $region9: #{conformer_forward.18} parent=0 // pred_fallthru
    _
  // Predicated region
  $region10: #{conformer_forward.18} parent=0 // pred_check
    _
  $region11: #{conformer_forward.18} parent=0 // pred_check_branch
    %13 = sbr.rel (0) target = $region13
  $region12: #{conformer_forward.18} parent=0 // pred_region
    _
  $region13: #{conformer_forward.18} parent=0 // pred_fallthru
    _
  %p15 = scmp.eq.s32.totalorder 0, 0
  // Predicated region
  $region14: #{conformer_forward.18} parent=0 // pred_check
    %p16 = pneg %p15
  $region15: #{conformer_forward.18} parent=0 // pred_check_branch
    %18 = sbr.rel (%p16) target = $region17
  $region16: #{conformer_forward.18} parent=0 // pred_region
    %vm19 = vcmask 261120
    %20 = vst.msk [vmem:[#allocation2] sm:$0xff] %vm19, 0.0
    %21 = vst.msk [vmem:[#allocation2 + $0x8] sm:$0xff] %vm19, 0.0
    %22 = vst.msk [vmem:[#allocation2 + $0x10] sm:$0xff] %vm19, 0.0
    %23 = vst.msk [vmem:[#allocation2 + $0x18] sm:$0xff] %vm19, 0.0
    %24 = vst.msk [vmem:[#allocation2 + $0x20] sm:$0xff] %vm19, 0.0
    %25 = vst.msk [vmem:[#allocation2 + $0x28] sm:$0xff] %vm19, 0.0
    %26 = vst.msk [vmem:[#allocation2 + $0x30] sm:$0xff] %vm19, 0.0
    %27 = vst.msk [vmem:[#allocation2 + $0x38] sm:$0xff] %vm19, 0.0
    %28 = vst.msk [vmem:[#allocation2 + $0x40] sm:$0xff] %vm19, 0.0
    %29 = vst.msk [vmem:[#allocation2 + $0x48] sm:$0xff] %vm19, 0.0
    %30 = vst.msk [vmem:[#allocation2 + $0x50] sm:$0xff] %vm19, 0.0
    %31 = vst.msk [vmem:[#allocation2 + $0x58] sm:$0xff] %vm19, 0.0
    %32 = vst.msk [vmem:[#allocation2 + $0x60] sm:$0xff] %vm19, 0.0
    %33 = vst.msk [vmem:[#allocation2 + $0x68] sm:$0xff] %vm19, 0.0
    %34 = vst.msk [vmem:[#allocation2 + $0x70] sm:$0xff] %vm19, 0.0
    %35 = vst.msk [vmem:[#allocation2 + $0x78] sm:$0xff] %vm19, 0.0
  $region17: #{conformer_forward.18} parent=0 // pred_fallthru
    _
  %v36 = vld [vmem:[#allocation2] sm:$0xff]
  %v37 = vld [vmem:[#allocation2 + $0x8] sm:$0xff]
  %v38 = vld [vmem:[#allocation2 + $0x10] sm:$0xff]
  %v39 = vld [vmem:[#allocation2 + $0x18] sm:$0xff]
  %v40 = vld [vmem:[#allocation2 + $0x20] sm:$0xff]
  %v41 = vld [vmem:[#allocation2 + $0x28] sm:$0xff]
  %v42 = vld [vmem:[#allocation2 + $0x30] sm:$0xff]
  %v43 = vld [vmem:[#allocation2 + $0x38] sm:$0xff]
  %v44 = vld [vmem:[#allocation2 + $0x40] sm:$0xff]
  %v45 = vld [vmem:[#allocation2 + $0x48] sm:$0xff]
  %v46 = vld [vmem:[#allocation2 + $0x50] sm:$0xff]
  %v47 = vld [vmem:[#allocation2 + $0x58] sm:$0xff]
  %v48 = vld [vmem:[#allocation2 + $0x60] sm:$0xff]
  %v49 = vld [vmem:[#allocation2 + $0x68] sm:$0xff]
  %v50 = vld [vmem:[#allocation2 + $0x70] sm:$0xff]
  %v51 = vld [vmem:[#allocation2 + $0x78] sm:$0xff]
  %v52 = vld [vmem:[%s0] sm:$0xff]
  %v53 = vld [vmem:[%s0 + $0x8] sm:$0xff]
  %v54 = vld [vmem:[%s0 + $0x10] sm:$0xff]
  %v55 = vld [vmem:[%s0 + $0x18] sm:$0xff]
  %v56 = vld [vmem:[%s0 + $0x20] sm:$0xff]
  %v57 = vld [vmem:[%s0 + $0x28] sm:$0xff]
  %v58 = vld [vmem:[%s0 + $0x30] sm:$0xff]
  %v59 = vld [vmem:[%s0 + $0x38] sm:$0xff]
  %v60 = vld [vmem:[%s0 + $0x40] sm:$0xff]
  %v61 = vld [vmem:[%s0 + $0x48] sm:$0xff]
  %v62 = vld [vmem:[%s0 + $0x50] sm:$0xff]
  %v63 = vld [vmem:[%s0 + $0x58] sm:$0xff]
  %v64 = vld [vmem:[%s0 + $0x60] sm:$0xff]
  %v65 = vld [vmem:[%s0 + $0x68] sm:$0xff]
  %v66 = vld [vmem:[%s0 + $0x70] sm:$0xff]
  %v67 = vld [vmem:[%s0 + $0x78] sm:$0xff]
  %v68 = vpack.c.bf16 %v53, %v52
  %v69 = vpack.c.bf16 %v55, %v54
  %v70 = vpack.c.bf16 %v57, %v56
  %v71 = vpack.c.bf16 %v59, %v58
  %v72 = vpack.c.bf16 %v61, %v60
  %v73 = vpack.c.bf16 %v63, %v62
  %v74 = vpack.c.bf16 %v65, %v64
  %v75 = vpack.c.bf16 %v67, %v66
  %v76 = vld [vmem:[%s1] sm:$0xf]
  %v77 = vld [vmem:[%s1 + $0x4] sm:$0x1]
  %v80 = vunpack.c.l.b16 %v76
  %v81 = vunpack.c.l.b16 %v77
  %v82 = vpack.c.b16 %v81, %v80
  %vm83 = vcmask 72704
  %v85 = vsel %vm83, %v68, 0
  %v88 = vsel %vm83, %v69, 0
  %v91 = vsel %vm83, %v70, 0
  %v94 = vsel %vm83, %v71, 0
  %v97 = vsel %vm83, %v72, 0
  %v100 = vsel %vm83, %v73, 0
  %v103 = vsel %vm83, %v74, 0
  %v106 = vsel %vm83, %v75, 0
  %vm108 = vcmask 1043456
  %vm109 = vcmask 1044480
  %v110 = vsel %vm108, 4294967295, 65535
  %v111 = vsel %vm109, %v110, 0
  %v113 = vand.u32 %v82, %v111
  %115 = vmatpush.bf16.msra.mxu0 0
  %116 = vmatpush.bf16.msra.mxu0 0
  %117 = vmatpush.bf16.msra.mxu0 0
  %118 = vmatpush.bf16.msra.mxu0 0
  %119 = vmatpush.bf16.msra.mxu0 0
  %120 = vmatpush.bf16.msra.mxu0 0
  %121 = vmatpush.bf16.msra.mxu0 0
  %122 = vmatpush.bf16.msra.mxu0 %v113
  %123 = vmatmul.bf16.gmra.mxu0 %v85
  %v124 = vpop.f32.mrf.mxu0
  %v125 = vadd.f32 0.0, %v124
  %v126 = vpop.f32.mrf.mxu0
  %v127 = vadd.f32 0.0, %v126
  %128 = vmatmul.bf16.gmra.mxu0 %v88
  %v129 = vpop.f32.mrf.mxu0
  %v130 = vadd.f32 0.0, %v129
  %v131 = vpop.f32.mrf.mxu0
  %v132 = vadd.f32 0.0, %v131
  %133 = vmatmul.bf16.gmra.mxu0 %v91
  %v134 = vpop.f32.mrf.mxu0
  %v135 = vadd.f32 0.0, %v134
  %v136 = vpop.f32.mrf.mxu0
  %v137 = vadd.f32 0.0, %v136
  %138 = vmatmul.bf16.gmra.mxu0 %v94
  %v139 = vpop.f32.mrf.mxu0
  %v140 = vadd.f32 0.0, %v139
  %v141 = vpop.f32.mrf.mxu0
  %v142 = vadd.f32 0.0, %v141
  %143 = vmatmul.bf16.gmra.mxu0 %v97
  %v144 = vpop.f32.mrf.mxu0
  %v145 = vadd.f32 0.0, %v144
  %v146 = vpop.f32.mrf.mxu0
  %v147 = vadd.f32 0.0, %v146
  %148 = vmatmul.bf16.gmra.mxu0 %v100
  %v149 = vpop.f32.mrf.mxu0
  %v150 = vadd.f32 0.0, %v149
  %v151 = vpop.f32.mrf.mxu0
  %v152 = vadd.f32 0.0, %v151
  %153 = vmatmul.bf16.gmra.mxu0 %v103
  %v154 = vpop.f32.mrf.mxu0
  %v155 = vadd.f32 0.0, %v154
  %v156 = vpop.f32.mrf.mxu0
  %v157 = vadd.f32 0.0, %v156
  %158 = vmatmul.bf16.gmra.mxu0 %v106
  %v159 = vpop.f32.mrf.mxu0
  %v160 = vadd.f32 0.0, %v159
  %v161 = vpop.f32.mrf.mxu0
  %v162 = vadd.f32 0.0, %v161
  %163 = vdwg.mxu0
  %v164 = vadd.f32 %v36, %v125
  %v165 = vadd.f32 %v37, %v127
  %v166 = vadd.f32 %v38, %v130
  %v167 = vadd.f32 %v39, %v132
  %v168 = vadd.f32 %v40, %v135
  %v169 = vadd.f32 %v41, %v137
  %v170 = vadd.f32 %v42, %v140
  %v171 = vadd.f32 %v43, %v142
  %v172 = vadd.f32 %v44, %v145
  %v173 = vadd.f32 %v45, %v147
  %v174 = vadd.f32 %v46, %v150
  %v175 = vadd.f32 %v47, %v152
  %v176 = vadd.f32 %v48, %v155
  %v177 = vadd.f32 %v49, %v157
  %v178 = vadd.f32 %v50, %v160
  %v179 = vadd.f32 %v51, %v162
  %vm180 = vcmask 261120
  %181 = vst.msk [vmem:[#allocation2] sm:$0xff] %vm180, %v164
  %182 = vst.msk [vmem:[#allocation2 + $0x8] sm:$0xff] %vm180, %v165
  %183 = vst.msk [vmem:[#allocation2 + $0x10] sm:$0xff] %vm180, %v166
  %184 = vst.msk [vmem:[#allocation2 + $0x18] sm:$0xff] %vm180, %v167
  %185 = vst.msk [vmem:[#allocation2 + $0x20] sm:$0xff] %vm180, %v168
  %186 = vst.msk [vmem:[#allocation2 + $0x28] sm:$0xff] %vm180, %v169
  %187 = vst.msk [vmem:[#allocation2 + $0x30] sm:$0xff] %vm180, %v170
  %188 = vst.msk [vmem:[#allocation2 + $0x38] sm:$0xff] %vm180, %v171
  %189 = vst.msk [vmem:[#allocation2 + $0x40] sm:$0xff] %vm180, %v172
  %190 = vst.msk [vmem:[#allocation2 + $0x48] sm:$0xff] %vm180, %v173
  %191 = vst.msk [vmem:[#allocation2 + $0x50] sm:$0xff] %vm180, %v174
  %192 = vst.msk [vmem:[#allocation2 + $0x58] sm:$0xff] %vm180, %v175
  %193 = vst.msk [vmem:[#allocation2 + $0x60] sm:$0xff] %vm180, %v176
  %194 = vst.msk [vmem:[#allocation2 + $0x68] sm:$0xff] %vm180, %v177
  %195 = vst.msk [vmem:[#allocation2 + $0x70] sm:$0xff] %vm180, %v178
  %196 = vst.msk [vmem:[#allocation2 + $0x78] sm:$0xff] %vm180, %v179
  // Predicated region
  $region18: #{conformer_forward.18} parent=0 // pred_check
    %p197 = pneg %p15
  $region19: #{conformer_forward.18} parent=0 // pred_check_branch
    %199 = sbr.rel (%p197) target = $region21
  $region20: #{conformer_forward.18} parent=0 // pred_region
    %v200 = vld [vmem:[#allocation2] sm:$0xff]
    %v201 = vld [vmem:[#allocation2 + $0x8] sm:$0xff]
    %v202 = vld [vmem:[#allocation2 + $0x10] sm:$0xff]
    %v203 = vld [vmem:[#allocation2 + $0x18] sm:$0xff]
    %v204 = vld [vmem:[#allocation2 + $0x20] sm:$0xff]
    %v205 = vld [vmem:[#allocation2 + $0x28] sm:$0xff]
    %v206 = vld [vmem:[#allocation2 + $0x30] sm:$0xff]
    %v207 = vld [vmem:[#allocation2 + $0x38] sm:$0xff]
    %v208 = vld [vmem:[#allocation2 + $0x40] sm:$0xff]
    %v209 = vld [vmem:[#allocation2 + $0x48] sm:$0xff]
    %v210 = vld [vmem:[#allocation2 + $0x50] sm:$0xff]
    %v211 = vld [vmem:[#allocation2 + $0x58] sm:$0xff]
    %v212 = vld [vmem:[#allocation2 + $0x60] sm:$0xff]
    %v213 = vld [vmem:[#allocation2 + $0x68] sm:$0xff]
    %v214 = vld [vmem:[#allocation2 + $0x70] sm:$0xff]
    %v215 = vld [vmem:[#allocation2 + $0x78] sm:$0xff]
    %v216 = vld [vmem:[%s2] sm:$0x1]
    %v218 = vperm.slane %v216, 0
    %v220 = vadd.f32 %v200, %v218
    %v221 = vadd.f32 %v201, %v218
    %v222 = vadd.f32 %v202, %v218
    %v223 = vadd.f32 %v203, %v218
    %v224 = vadd.f32 %v204, %v218
    %v225 = vadd.f32 %v205, %v218
    %v226 = vadd.f32 %v206, %v218
    %v227 = vadd.f32 %v207, %v218
    %v228 = vadd.f32 %v208, %v218
    %v229 = vadd.f32 %v209, %v218
    %v230 = vadd.f32 %v210, %v218
    %v231 = vadd.f32 %v211, %v218
    %v232 = vadd.f32 %v212, %v218
    %v233 = vadd.f32 %v213, %v218
    %v234 = vadd.f32 %v214, %v218
    %v235 = vadd.f32 %v215, %v218
    %v236 = vmax.f32 %v220, 0.0
    %v237 = vmax.f32 %v221, 0.0
    %v238 = vmax.f32 %v222, 0.0
    %v239 = vmax.f32 %v223, 0.0
    %v240 = vmax.f32 %v224, 0.0
    %v241 = vmax.f32 %v225, 0.0
    %v242 = vmax.f32 %v226, 0.0
    %v243 = vmax.f32 %v227, 0.0
    %v244 = vmax.f32 %v228, 0.0
    %v245 = vmax.f32 %v229, 0.0
    %v246 = vmax.f32 %v230, 0.0
    %v247 = vmax.f32 %v231, 0.0
    %v248 = vmax.f32 %v232, 0.0
    %v249 = vmax.f32 %v233, 0.0
    %v250 = vmax.f32 %v234, 0.0
    %v251 = vmax.f32 %v235, 0.0
    %252 = vst.msk [vmem:[%s3] sm:$0xff] %vm180, %v236
    %253 = vst.msk [vmem:[%s3 + $0x8] sm:$0xff] %vm180, %v237
    %254 = vst.msk [vmem:[%s3 + $0x10] sm:$0xff] %vm180, %v238
    %255 = vst.msk [vmem:[%s3 + $0x18] sm:$0xff] %vm180, %v239
    %256 = vst.msk [vmem:[%s3 + $0x20] sm:$0xff] %vm180, %v240
    %257 = vst.msk [vmem:[%s3 + $0x28] sm:$0xff] %vm180, %v241
    %258 = vst.msk [vmem:[%s3 + $0x30] sm:$0xff] %vm180, %v242
    %259 = vst.msk [vmem:[%s3 + $0x38] sm:$0xff] %vm180, %v243
    %260 = vst.msk [vmem:[%s3 + $0x40] sm:$0xff] %vm180, %v244
    %261 = vst.msk [vmem:[%s3 + $0x48] sm:$0xff] %vm180, %v245
    %262 = vst.msk [vmem:[%s3 + $0x50] sm:$0xff] %vm180, %v246
    %263 = vst.msk [vmem:[%s3 + $0x58] sm:$0xff] %vm180, %v247
    %264 = vst.msk [vmem:[%s3 + $0x60] sm:$0xff] %vm180, %v248
    %265 = vst.msk [vmem:[%s3 + $0x68] sm:$0xff] %vm180, %v249
    %266 = vst.msk [vmem:[%s3 + $0x70] sm:$0xff] %vm180, %v250
    %267 = vst.msk [vmem:[%s3 + $0x78] sm:$0xff] %vm180, %v251
  $region21: #{conformer_forward.18} parent=0 // pred_fallthru
    _
  // Predicated region
  $region22: #{conformer_forward.18} parent=0 // pred_check
    _
  $region23: #{conformer_forward.18} parent=0 // pred_check_branch
    %269 = sbr.rel (0) target = $region25
  $region24: #{conformer_forward.18} parent=0 // pred_region
    _
  $region25: #{conformer_forward.18} parent=0 // pred_fallthru
    _
  // Predicated region
  $region26: #{conformer_forward.18} parent=0 // pred_check
    _
  $region27: #{conformer_forward.18} parent=0 // pred_check_branch
    %271 = sbr.rel (0) target = $region29
  $region28: #{conformer_forward.18} parent=0 // pred_region
    _
  $region29: #{conformer_forward.18} parent=0 // pred_fallthru
    _

// kernel: conformer_forward.20
$region0: #{conformer_forward.20}
  #allocation0 [shape = 'u32[]', space=smem, size = 0x4, offset = 0x4, fixed_abs, tag = 'smem constant byte address 0x4 - core index']
  #allocation1 [shape = 'u32[72,128]{1,0:T(1,128)}', space=vmem, size = 0x9000, scoped, tag = 'internal scratch']
  #allocation2 [shape = 'f32[8,32]{1,0:T(8,128)}', space=vmem, size = 0x1000, scoped, tag = 'scratch operand']
  %s0 = inlined_call_operand.vmem [shape: f32[8,128], index: 0, kind: input, shape index: {}]
  %s1 = inlined_call_operand.vmem [shape: bf16[128,32], index: 1, kind: input, shape index: {}]
  %s2 = inlined_call_operand.vmem [shape: f32[1,32], index: 2, kind: input, shape index: {}]
  %s3 = inlined_call_operand.vmem [shape: f32[8,32], index: 3, kind: output, shape index: {}]
  %s4 = sld [smem:[#allocation0]]
  $region30: #{conformer_forward.20} parent=0
    _
  %s6 = ssub.s32 1, %s4
  %s7 = scalar_select 0, %s6, %s4
  // Predicated region
  $region2: #{conformer_forward.20} parent=0 // pred_check
    _
  $region3: #{conformer_forward.20} parent=0 // pred_check_branch
    %9 = sbr.rel (0) target = $region5
  $region4: #{conformer_forward.20} parent=0 // pred_region
    _
  $region5: #{conformer_forward.20} parent=0 // pred_fallthru
    _
  // Predicated region
  $region6: #{conformer_forward.20} parent=0 // pred_check
    _
  $region7: #{conformer_forward.20} parent=0 // pred_check_branch
    %11 = sbr.rel (0) target = $region9
  $region8: #{conformer_forward.20} parent=0 // pred_region
    _
  $region9: #{conformer_forward.20} parent=0 // pred_fallthru
    _
  // Predicated region
  $region10: #{conformer_forward.20} parent=0 // pred_check
    _
  $region11: #{conformer_forward.20} parent=0 // pred_check_branch
    %13 = sbr.rel (0) target = $region13
  $region12: #{conformer_forward.20} parent=0 // pred_region
    _
  $region13: #{conformer_forward.20} parent=0 // pred_fallthru
    _
  %p14 = scmp.eq.s32.totalorder 0, 0
  // Predicated region
  $region14: #{conformer_forward.20} parent=0 // pred_check
    %p15 = pneg %p14
  $region15: #{conformer_forward.20} parent=0 // pred_check_branch
    %17 = sbr.rel (%p15) target = $region17
  $region16: #{conformer_forward.20} parent=0 // pred_region
    %vm18 = vcmask 261120
    %19 = vst.msk [vmem:[#allocation2] sm:$0xff] %vm18, 0.0
  $region17: #{conformer_forward.20} parent=0 // pred_fallthru
    _
  %v20 = vld [vmem:[#allocation2] sm:$0xff]
  %v21 = vld [vmem:[%s0] sm:$0xff]
  %v22 = vpack.c.bf16 %v21, %v21
  %v23 = vld [vmem:[%s1] sm:$0xf]
  %v24 = vld [vmem:[%s1 + $0x4] sm:$0xf]
  %v25 = vld [vmem:[%s1 + $0x8] sm:$0xf]
  %v26 = vld [vmem:[%s1 + $0xc] sm:$0xf]
  %v27 = vld [vmem:[%s1 + $0x10] sm:$0xf]
  %v28 = vld [vmem:[%s1 + $0x14] sm:$0xf]
  %v29 = vld [vmem:[%s1 + $0x18] sm:$0xf]
  %v30 = vld [vmem:[%s1 + $0x1c] sm:$0xf]
  %v31 = vld [vmem:[%s1 + $0x20] sm:$0xf]
  %v32 = vld [vmem:[%s1 + $0x24] sm:$0xf]
  %v33 = vld [vmem:[%s1 + $0x28] sm:$0xf]
  %v34 = vld [vmem:[%s1 + $0x2c] sm:$0xf]
  %v35 = vld [vmem:[%s1 + $0x30] sm:$0xf]
  %v36 = vld [vmem:[%s1 + $0x34] sm:$0xf]
  %v37 = vld [vmem:[%s1 + $0x38] sm:$0xf]
  %v38 = vld [vmem:[%s1 + $0x3c] sm:$0xf]
  %v55 = vunpack.c.l.b16 %v23
  %v56 = vunpack.c.l.b16 %v24
  %v57 = vunpack.c.l.b16 %v25
  %v58 = vunpack.c.l.b16 %v26
  %v59 = vunpack.c.l.b16 %v27
  %v60 = vunpack.c.l.b16 %v28
  %v61 = vunpack.c.l.b16 %v29
  %v62 = vunpack.c.l.b16 %v30
  %v63 = vunpack.c.l.b16 %v31
  %v64 = vunpack.c.l.b16 %v32
  %v65 = vunpack.c.l.b16 %v33
  %v66 = vunpack.c.l.b16 %v34
  %v67 = vunpack.c.l.b16 %v35
  %v68 = vunpack.c.l.b16 %v36
  %v69 = vunpack.c.l.b16 %v37
  %v70 = vunpack.c.l.b16 %v38
  %v71 = vpack.c.b16 %v56, %v55
  %v72 = vpack.c.b16 %v58, %v57
  %v73 = vpack.c.b16 %v60, %v59
  %v74 = vpack.c.b16 %v62, %v61
  %v75 = vpack.c.b16 %v64, %v63
  %v76 = vpack.c.b16 %v66, %v65
  %v77 = vpack.c.b16 %v68, %v67
  %v78 = vpack.c.b16 %v70, %v69
  %87 = vmatpush.bf16.msra.mxu0 %v78
  %88 = vmatpush.bf16.msra.mxu0 %v77
  %89 = vmatpush.bf16.msra.mxu0 %v76
  %90 = vmatpush.bf16.msra.mxu0 %v75
  %91 = vmatpush.bf16.msra.mxu0 %v74
  %92 = vmatpush.bf16.msra.mxu0 %v73
  %93 = vmatpush.bf16.msra.mxu0 %v72
  %94 = vmatpush.bf16.msra.mxu0 %v71
  %95 = vmatmul.bf16.gmra.mxu0 %v22
  %v96 = vpop.f32.mrf.mxu0
  %v97 = vadd.f32 0.0, %v96
  %v98 = vpop.f32.mrf.mxu0
  %99 = vdwg.mxu0
  %v100 = vadd.f32 %v20, %v97
  %vm101 = vcmask 261120
  %102 = vst.msk [vmem:[#allocation2] sm:$0xff] %vm101, %v100
  // Predicated region
  $region18: #{conformer_forward.20} parent=0 // pred_check
    %p103 = pneg %p14
  $region19: #{conformer_forward.20} parent=0 // pred_check_branch
    %105 = sbr.rel (%p103) target = $region21
  $region20: #{conformer_forward.20} parent=0 // pred_region
    %v106 = vld [vmem:[#allocation2] sm:$0xff]
    %v107 = vld [vmem:[%s2] sm:$0x1]
    %v109 = vperm.slane %v107, 0
    %v111 = vadd.f32 %v106, %v109
    %112 = vst.msk [vmem:[%s3] sm:$0xff] %vm101, %v111
  $region21: #{conformer_forward.20} parent=0 // pred_fallthru
    _
  // Predicated region
  $region22: #{conformer_forward.20} parent=0 // pred_check
    _
  $region23: #{conformer_forward.20} parent=0 // pred_check_branch
    %114 = sbr.rel (0) target = $region25
  $region24: #{conformer_forward.20} parent=0 // pred_region
    _
  $region25: #{conformer_forward.20} parent=0 // pred_fallthru
    _
  // Predicated region
  $region26: #{conformer_forward.20} parent=0 // pred_check
    _
  $region27: #{conformer_forward.20} parent=0 // pred_check_branch
    %116 = sbr.rel (0) target = $region29
  $region28: #{conformer_forward.20} parent=0 // pred_region
    _
  $region29: #{conformer_forward.20} parent=0 // pred_fallthru
    _

// kernel: tile.19
$region0: #{tile.19}
  %s0 = inlined_call_operand.vmem [shape: f32[4,4,8], index: 0, kind: input, shape index: {}]
  %s1 = inlined_call_operand.vmem [shape: f32[4,32], index: 1, kind: output, shape index: {}]
  $region1: #{tile.19} parent=0
    #allocation0 [shape = 'u8[4096]{0}', space=vmem, size = 0x1000, scoped, tag = 'scoped mem for output reshape']
    #allocation1 [shape = 'u8[16384]{0}', space=vmem, size = 0x4000, scoped, tag = 'scoped mem for input reshape']
    %s3 = ssub.s32 16, 1
    %s4 = scalar_lea.vmem %s0, 12
    %v5 = vld [vmem:[%s4] sm:%s3]
    %s6 = scalar_lea.vmem [#allocation1], 24
    %7 = vst [vmem:[%s6] sm:%s3] %v5
    %s8 = scalar_lea.vmem %s0, 8
    %v9 = vld [vmem:[%s8] sm:%s3]
    %s10 = scalar_lea.vmem [#allocation1], 16
    %11 = vst [vmem:[%s10] sm:%s3] %v9
    %s12 = scalar_lea.vmem %s0, 4
    %v13 = vld [vmem:[%s12] sm:%s3]
    %s14 = scalar_lea.vmem [#allocation1], 8
    %15 = vst [vmem:[%s14] sm:%s3] %v13
    %v16 = vld [vmem:[%s0] sm:%s3]
    %17 = vst [vmem:[#allocation1] sm:%s3] %v16
    %v18 = vld [vmem:[#allocation1] ss:$8 sm:$0xf]
    %vm19 = vcmask 64512
    %20 = vst.msk [vmem:[#allocation0] sm:$0xf] %vm19, %v18
    %s21 = scalar_lea.vmem [#allocation1], 3
    %v22 = vld [vmem:[%s21] ss:$8 sm:$0xf]
    %23 = vrot.lane.b32.xlu0 %v22, 24
    %v24 = vpop.permute.xlu0 %23
    %vm25 = vcmask 261312
    %26 = vst.msk [vmem:[#allocation0] sm:$0xf] %vm25, %v24
    %s27 = scalar_lea.vmem [#allocation1], 2
    %v28 = vld [vmem:[%s27] ss:$8 sm:$0xf]
    %29 = vrot.lane.b32.xlu0 %v28, 16
    %v30 = vpop.permute.xlu0 %29
    %vm31 = vcmask 195712
    %32 = vst.msk [vmem:[#allocation0] sm:$0xf] %vm31, %v30
    %s33 = scalar_lea.vmem [#allocation1], 1
    %v34 = vld [vmem:[%s33] ss:$8 sm:$0xf]
    %35 = vrot.lane.b32.xlu0 %v34, 8
    %v36 = vpop.permute.xlu0 %35
    %vm37 = vcmask 130112
    %38 = vst.msk [vmem:[#allocation0] sm:$0xf] %vm37, %v36
    %s40 = ssub.s32 16, 1
    %v41 = vld [vmem:[#allocation0] sm:%s40]
    %s43 = ssub.s32 16, 1
    %44 = vst [vmem:[%s1] sm:%s43] %v41

// kernel: conformer_forward.21
$region0: #{conformer_forward.21}
  #allocation0 [shape = 'u32[]', space=smem, size = 0x4, offset = 0x4, fixed_abs, tag = 'smem constant byte address 0x4 - core index']
  #allocation1 [shape = 'u32[72,128]{1,0:T(1,128)}', space=vmem, size = 0x9000, scoped, tag = 'internal scratch']
  #allocation2 [shape = 'bf16[8,32]{1,0:T(8,128)(2,1)}', space=vmem, size = 0x800, scoped, tag = 'scratch operand']
  #allocation3 [shape = 'f32[8,32]{1,0:T(8,128)}', space=vmem, size = 0x1000, scoped, tag = 'scratch operand']
  %s0 = inlined_call_operand.vmem [shape: f32[8,32], index: 0, kind: input, shape index: {}]
  %s1 = inlined_call_operand.vmem [shape: f32[1,32], index: 1, kind: input, shape index: {}]
  %s2 = inlined_call_operand.vmem [shape: f32[1,32], index: 2, kind: input, shape index: {}]
  %s3 = inlined_call_operand.vmem [shape: bf16[32,64], index: 3, kind: input, shape index: {}]
  %s4 = inlined_call_operand.vmem [shape: f32[1,64], index: 4, kind: input, shape index: {}]
  %s5 = inlined_call_operand.vmem [shape: bf16[64,32], index: 5, kind: input, shape index: {}]
  %s6 = inlined_call_operand.vmem [shape: f32[1,32], index: 6, kind: input, shape index: {}]
  %s7 = inlined_call_operand.vmem [shape: f32[8,32], index: 7, kind: output, shape index: {}]
  %s8 = sld [smem:[#allocation0]]
  $region46: #{conformer_forward.21} parent=0
    _
  %s10 = ssub.s32 1, %s8
  %s11 = scalar_select 0, %s10, %s8
  // Predicated region
  $region2: #{conformer_forward.21} parent=0 // pred_check
    _
  $region3: #{conformer_forward.21} parent=0 // pred_check_branch
    %13 = sbr.rel (0) target = $region5
  $region4: #{conformer_forward.21} parent=0 // pred_region
    _
  $region5: #{conformer_forward.21} parent=0 // pred_fallthru
    _
  // Predicated region
  $region6: #{conformer_forward.21} parent=0 // pred_check
    _
  $region7: #{conformer_forward.21} parent=0 // pred_check_branch
    %15 = sbr.rel (0) target = $region9
  $region8: #{conformer_forward.21} parent=0 // pred_region
    _
  $region9: #{conformer_forward.21} parent=0 // pred_fallthru
    _
  // Predicated region
  $region10: #{conformer_forward.21} parent=0 // pred_check
    _
  $region11: #{conformer_forward.21} parent=0 // pred_check_branch
    %17 = sbr.rel (0) target = $region13
  $region12: #{conformer_forward.21} parent=0 // pred_region
    _
  $region13: #{conformer_forward.21} parent=0 // pred_fallthru
    _
  // Predicated region
  $region14: #{conformer_forward.21} parent=0 // pred_check
    _
  $region15: #{conformer_forward.21} parent=0 // pred_check_branch
    %19 = sbr.rel (0) target = $region17
  $region16: #{conformer_forward.21} parent=0 // pred_region
    _
  $region17: #{conformer_forward.21} parent=0 // pred_fallthru
    _
  // Predicated region
  $region18: #{conformer_forward.21} parent=0 // pred_check
    _
  $region19: #{conformer_forward.21} parent=0 // pred_check_branch
    %21 = sbr.rel (0) target = $region21
  $region20: #{conformer_forward.21} parent=0 // pred_region
    _
  $region21: #{conformer_forward.21} parent=0 // pred_fallthru
    _
  // Predicated region
  $region22: #{conformer_forward.21} parent=0 // pred_check
    _
  $region23: #{conformer_forward.21} parent=0 // pred_check_branch
    %23 = sbr.rel (0) target = $region25
  $region24: #{conformer_forward.21} parent=0 // pred_region
    _
  $region25: #{conformer_forward.21} parent=0 // pred_fallthru
    _
  // Predicated region
  $region26: #{conformer_forward.21} parent=0 // pred_check
    _
  $region27: #{conformer_forward.21} parent=0 // pred_check_branch
    %25 = sbr.rel (0) target = $region29
  $region28: #{conformer_forward.21} parent=0 // pred_region
    _
  $region29: #{conformer_forward.21} parent=0 // pred_fallthru
    _
  %p27 = scmp.eq.s32.totalorder 0, 0
  // Predicated region
  $region30: #{conformer_forward.21} parent=0 // pred_check
    %p28 = pneg %p27
  $region31: #{conformer_forward.21} parent=0 // pred_check_branch
    %30 = sbr.rel (%p28) target = $region33
  $region32: #{conformer_forward.21} parent=0 // pred_region
    %v31 = vld [vmem:[%s0] sm:$0xff]
    %vm32 = vcmask 261120
    %v33 = vsel %vm32, %v31, 0.0
    %34 = vadd.xlane.f32.xlu0 %v33
    %v35 = vpop.xlane.xlu0 %34
    %v36 = vrcp.pop 32.0
    %v37 = vmul.f32 32.0, %v36
    %v38 = vsub.f32 1.0, %v37
    %v39 = vmul.f32 %v36, %v38
    %v40 = vadd.f32 %v36, %v39
    %vm41 = vweird.f32 %v36
    %v42 = vsel %vm41, %v36, %v40
    %v43 = vmul.f32 %v35, %v42
    %v44 = vsub.f32 %v31, %v43
    %v45 = vmul.f32 %v44, %v44
    %v46 = vsel %vm32, %v45, 0.0
    %47 = vadd.xlane.f32.xlu0 %v46
    %v48 = vpop.xlane.xlu0 %47
    %v49 = vmul.f32 %v48, %v42
    %v50 = vadd.f32 %v49, 1e-05
    %v51 = vrsqrt.pop %v50
    %v52 = vmul.f32 %v51, %v50
    %v53 = vmul.f32 %v52, %v51
    %v54 = vmul.f32 0.5, %v53
    %v55 = vsub.f32 1.5, %v54
    %v56 = vmul.f32 %v51, %v55
    %vm57 = vweird.f32 %v50
    %vm58 = vweird.f32 %v51
    %vm59 = vmor %vm57, %vm58
    %v60 = vsel %vm59, %v51, %v56
    %v61 = vmul.f32 %v44, %v60
    %v62 = vld [vmem:[%s1] sm:$0x1]
    %v64 = vperm.slane %v62, 0
    %v66 = vmul.f32 %v61, %v64
    %v67 = vld [vmem:[%s2] sm:$0x1]
    %v69 = vperm.slane %v67, 0
    %v71 = vadd.f32 %v66, %v69
    %v72 = vpack.c.bf16 %v71, %v71
    %vm73 = vcmask 257024
    %74 = vst.msk [vmem:[#allocation2] sm:$0xf] %vm73, %v72
    %75 = vst.msk [vmem:[#allocation3] sm:$0xff] %vm32, 0.0
  $region33: #{conformer_forward.21} parent=0 // pred_fallthru
    _
  %v76 = vld [vmem:[#allocation2] sm:$0xf]
  %v77 = vld [vmem:[%s3] sm:$0xf]
  %v78 = vld [vmem:[%s3 + $0x4] sm:$0xf]
  %v79 = vld [vmem:[%s3 + $0x8] sm:$0xf]
  %v80 = vld [vmem:[%s3 + $0xc] sm:$0xf]
  %v81 = vld [vmem:[%s4] sm:$0x1]
  %v83 = vperm.slane %v81, 0
  %v89 = vunpack.c.l.b16 %v77
  %v90 = vunpack.c.l.b16 %v78
  %v91 = vunpack.c.l.b16 %v79
  %v92 = vunpack.c.l.b16 %v80
  %v93 = vpack.c.b16 %v90, %v89
  %v94 = vpack.c.b16 %v92, %v91
  %vm97 = vcmask 261120
  %v99 = vsel %vm97, %v76, 0
  %101 = vmatpush.bf16.msra.mxu0 0
  %102 = vmatpush.bf16.msra.mxu0 0
  %103 = vmatpush.bf16.msra.mxu0 0
  %104 = vmatpush.bf16.msra.mxu0 0
  %105 = vmatpush.bf16.msra.mxu0 0
  %106 = vmatpush.bf16.msra.mxu0 0
  %107 = vmatpush.bf16.msra.mxu0 %v94
  %108 = vmatpush.bf16.msra.mxu0 %v93
  %109 = vmatmul.bf16.gmra.mxu0 %v99
  %v110 = vpop.f32.mrf.mxu0
  %v111 = vadd.f32 %v83, %v110
  %v112 = vpop.f32.mrf.mxu0
  %113 = vdwg.mxu0
  %v114 = vxor.u32 %v111, 2147483648
  %v115 = vmul.f32 %v114, 1.442695
  %v116 = vpow.pop %v115
  %v117 = vadd.f32 %v116, 1.0
  %v118 = vrcp.pop %v117
  %v119 = vmul.f32 %v117, %v118
  %v120 = vsub.f32 1.0, %v119
  %v121 = vmul.f32 %v118, %v120
  %v122 = vadd.f32 %v118, %v121
  %vm123 = vweird.f32 %v117
  %vm124 = vweird.f32 %v118
  %vm125 = vmor %vm123, %vm124
  %v126 = vsel %vm125, %v118, %v122
  %v127 = vand.u32 2147483647, %v117
  %vm128 = vcmp.eq.f32.partialorder %v127, 8.507059e+37
  %v129 = vand.u32 %v117, 2147483648
  %v130 = vor.u32 1.1754944e-38, %v129
  %v131 = vsel %vm128, %v130, %v126
  %v132 = vmul.f32 1.0, %v131
  %v133 = vmul.f32 %v111, %v132
  %v134 = vpack.c.bf16 %v133, %v133
  %v135 = vld [vmem:[#allocation3] sm:$0xff]
  %v136 = vld [vmem:[%s5] sm:$0xf]
  %v137 = vld [vmem:[%s5 + $0x4] sm:$0xf]
  %v138 = vld [vmem:[%s5 + $0x8] sm:$0xf]
  %v139 = vld [vmem:[%s5 + $0xc] sm:$0xf]
  %v140 = vld [vmem:[%s5 + $0x10] sm:$0xf]
  %v141 = vld [vmem:[%s5 + $0x14] sm:$0xf]
  %v142 = vld [vmem:[%s5 + $0x18] sm:$0xf]
  %v143 = vld [vmem:[%s5 + $0x1c] sm:$0xf]
  %v152 = vunpack.c.l.b16 %v136
  %v153 = vunpack.c.l.b16 %v137
  %v154 = vunpack.c.l.b16 %v138
  %v155 = vunpack.c.l.b16 %v139
  %v156 = vunpack.c.l.b16 %v140
  %v157 = vunpack.c.l.b16 %v141
  %v158 = vunpack.c.l.b16 %v142
  %v159 = vunpack.c.l.b16 %v143
  %v160 = vpack.c.b16 %v153, %v152
  %v161 = vpack.c.b16 %v155, %v154
  %v162 = vpack.c.b16 %v157, %v156
  %v163 = vpack.c.b16 %v159, %v158
  %vm168 = vcmask 523264
  %v170 = vsel %vm168, %v134, 0
  %172 = vmatpush.bf16.msra.mxu0 0
  %173 = vmatpush.bf16.msra.mxu0 0
  %174 = vmatpush.bf16.msra.mxu0 0
  %175 = vmatpush.bf16.msra.mxu0 0
  %176 = vmatpush.bf16.msra.mxu0 %v163
  %177 = vmatpush.bf16.msra.mxu0 %v162
  %178 = vmatpush.bf16.msra.mxu0 %v161
  %179 = vmatpush.bf16.msra.mxu0 %v160
  %180 = vmatmul.bf16.gmra.mxu0 %v170
  %v181 = vpop.f32.mrf.mxu0
  %v182 = vadd.f32 0.0, %v181
  %v183 = vpop.f32.mrf.mxu0
  %184 = vdwg.mxu0
  %v185 = vadd.f32 %v135, %v182
  %186 = vst.msk [vmem:[#allocation3] sm:$0xff] %vm97, %v185
  // Predicated region
  $region34: #{conformer_forward.21} parent=0 // pred_check
    %p187 = pneg %p27
  $region35: #{conformer_forward.21} parent=0 // pred_check_branch
    %189 = sbr.rel (%p187) target = $region37
  $region36: #{conformer_forward.21} parent=0 // pred_region
    %v190 = vld [vmem:[#allocation3] sm:$0xff]
    %v191 = vld [vmem:[%s6] sm:$0x1]
    %v193 = vperm.slane %v191, 0
    %v195 = vadd.f32 %v190, %v193
    %v196 = vld [vmem:[%s0] sm:$0xff]
    %v197 = vmul.f32 %v196, 0.5
    %v198 = vadd.f32 %v197, %v195
    %199 = vst.msk [vmem:[%s7] sm:$0xff] %vm97, %v198
  $region37: #{conformer_forward.21} parent=0 // pred_fallthru
    _
  // Predicated region
  $region38: #{conformer_forward.21} parent=0 // pred_check
    _
  $region39: #{conformer_forward.21} parent=0 // pred_check_branch
    %201 = sbr.rel (0) target = $region41
  $region40: #{conformer_forward.21} parent=0 // pred_region
    _
  $region41: #{conformer_forward.21} parent=0 // pred_fallthru
    _
  // Predicated region
  $region42: #{conformer_forward.21} parent=0 // pred_check
    _
  $region43: #{conformer_forward.21} parent=0 // pred_check_branch
    %203 = sbr.rel (0) target = $region45
  $region44: #{conformer_forward.21} parent=0 // pred_region
    _
  $region45: #{conformer_forward.21} parent=0 // pred_fallthru
    _

// kernel: conformer_forward.22
$region0: #{conformer_forward.22}
  #allocation0 [shape = 'u32[]', space=smem, size = 0x4, offset = 0x4, fixed_abs, tag = 'smem constant byte address 0x4 - core index']
  #allocation1 [shape = 'u32[72,128]{1,0:T(1,128)}', space=vmem, size = 0x9000, scoped, tag = 'internal scratch']
  %s0 = inlined_call_operand.vmem [shape: f32[2,4,32], index: 0, kind: input, shape index: {}]
  %s1 = inlined_call_operand.vmem [shape: f32[1,32], index: 1, kind: input, shape index: {}]
  %s2 = inlined_call_operand.vmem [shape: f32[1,32], index: 2, kind: input, shape index: {}]
  %s3 = inlined_call_operand.vmem [shape: bf16[32,160], index: 3, kind: input, shape index: {}]
  %s4 = inlined_call_operand.vmem [shape: f32[1,160], index: 4, kind: input, shape index: {}]
  %s5 = inlined_call_operand.vmem [shape: f32[4,32], index: 5, kind: input, shape index: {}]
  %s6 = inlined_call_operand.vmem [shape: f32[4,32], index: 6, kind: input, shape index: {}]
  %s7 = inlined_call_operand.vmem [shape: bf16[2,4,4,8], index: 7, kind: output, shape index: {0}]
  %s8 = inlined_call_operand.vmem [shape: bf16[2,4,4,8], index: 8, kind: output, shape index: {1}]
  %s9 = inlined_call_operand.vmem [shape: bf16[2,4,4,8], index: 9, kind: output, shape index: {2}]
  %10 = xla_tuple %s7, %s8, %s9
  %s11 = sld [smem:[#allocation0]]
  $region77: #{conformer_forward.22} parent=0
    _
  %s13 = ssub.s32 1, %s11
  %s14 = scalar_select 0, %s13, %s11
  loop: start=0, step=1, limit=4
  $region2: #{conformer_forward.22} parent=0 // loop_pre_header
    _
  $region3: #{conformer_forward.22} parent=0 // loop_header
    %s16 = sphi 0, %s20
    %p17 = scmp.ge.s32.totalorder %s16, 4
    %s23 = sphi 0, %s35
    %s24 = sphi 0, %s31
    %s25 = sphi 0, %s23
    %s26 = sphi 0, %s24
    %s27 = sphi 0, %s25
    %s28 = sphi 0, %s26
    %s40 = sphi 0, %s42
    %s43 = sphi 0, %s40
    %s44 = sphi 0, %s43
    %s60 = sphi 0, %s44
    %s64 = sphi 0, %s64
    %s66 = sphi 0, %s64
    %s67 = sphi 0, %s66
    %s81 = sphi 0, %s67
    %s85 = sphi 0, %s85
    %s87 = sphi 0, %s85
    %s88 = sphi 0, %s87
    %s102 = sphi 0, %s88
    %s106 = sphi 0, %s106
    %s108 = sphi 0, %s106
    %s109 = sphi 0, %s108
    %s123 = sphi 0, %s109
    %s127 = sphi 0, %s127
    %s129 = sphi 0, %s127
    %s130 = sphi 0, %s129
    %s144 = sphi 0, %s130
    %s150 = sphi 0, %s152
    %s153 = sphi 0, %s150
    %s154 = sphi 0, %s153
    %s170 = sphi 0, %s154
    %s176 = sphi 0, %s178
    %s179 = sphi 0, %s176
    %s180 = sphi 0, %s179
    %s196 = sphi 0, %s180
    %s204 = sphi 0, %s206
    %s207 = sphi 0, %s204
    %s208 = sphi 0, %s207
    %s224 = sphi 0, %s208
    %s232 = sphi 0, %s234
    %s235 = sphi 0, %s232
    %s236 = sphi 0, %s235
    %s252 = sphi 0, %s236
    %s260 = sphi 0, %s262
    %s263 = sphi 0, %s260
    %s264 = sphi 0, %s263
    %s280 = sphi 0, %s264
  $region4: #{conformer_forward.22} parent=0 // loop_header_branch
    %19 = sbr.rel (%p17) target = $region8
  $region5: #{conformer_forward.22} parent=0 // loop_body
    %s21 = ssub.s32 %s16, 1
    %s22 = ssub.s32 %s16, 2
    %s29 = sadd.s32 1, %s24
    %p30 = scmp.ge.s32.totalorder %s29, 1
    %s31 = scalar_select %p30, 0, %s29
    %s32 = sadd.s32 1, %s23
    %s33 = scalar_select %p30, %s32, %s23
    %p34 = scmp.ge.s32.totalorder %s33, 2
    %s35 = scalar_select %p34, 0, %s33
    %s36 = ssub.s32 %s23, %s35
    %s37 = ssub.s32 %s24, %s31
    %s38 = sor.u32 %s36, %s37
    %p39 = scmp.eq.s32.totalorder %s38, 0
    %s41 = sadd.s32 %s40, 1
    %s42 = scalar_select %p39, %s40, %s41
    %p45 = pneg %p39
    %p46 = scmp.eq.s32.totalorder %s16, 1
    %p47 = por %p45, %p46
    %p48 = scmp.ne.s32.totalorder %s40, %s43
    %p49 = scmp.eq.s32.totalorder %s16, 0
    %p50 = por %p48, %p49
    %p51 = scmp.ne.s32.totalorder %s40, %s43
    %p52 = scmp.eq.s32.totalorder %s21, 1
    %p53 = por %p51, %p52
    %p54 = scmp.ne.s32.totalorder %s43, %s44
    %p55 = scmp.eq.s32.totalorder %s21, 0
    %p56 = por %p54, %p55
    %p57 = scmp.ne.s32.totalorder %s43, %s44
    %p58 = scmp.eq.s32.totalorder %s22, 1
    %p59 = por %p57, %p58
    %p61 = scmp.ne.s32.totalorder %s44, %s60
    %p62 = scmp.eq.s32.totalorder %s22, 0
    %p63 = por %p61, %p62
    %s65 = sadd.s32 %s64, 1
    %p68 = scmp.eq.s32.totalorder %s16, 1
    %p69 = scmp.ne.s32.totalorder %s64, %s66
    %p70 = scmp.eq.s32.totalorder %s16, 0
    %p71 = por %p69, %p70
    %p72 = scmp.ne.s32.totalorder %s64, %s66
    %p73 = scmp.eq.s32.totalorder %s21, 1
    %p74 = por %p72, %p73
    %p75 = scmp.ne.s32.totalorder %s66, %s67
    %p76 = scmp.eq.s32.totalorder %s21, 0
    %p77 = por %p75, %p76
    %p78 = scmp.ne.s32.totalorder %s66, %s67
    %p79 = scmp.eq.s32.totalorder %s22, 1
    %p80 = por %p78, %p79
    %p82 = scmp.ne.s32.totalorder %s67, %s81
    %p83 = scmp.eq.s32.totalorder %s22, 0
    %p84 = por %p82, %p83
    %s86 = sadd.s32 %s85, 1
    %p89 = scmp.eq.s32.totalorder %s16, 1
    %p90 = scmp.ne.s32.totalorder %s85, %s87
    %p91 = scmp.eq.s32.totalorder %s16, 0
    %p92 = por %p90, %p91
    %p93 = scmp.ne.s32.totalorder %s85, %s87
    %p94 = scmp.eq.s32.totalorder %s21, 1
    %p95 = por %p93, %p94
    %p96 = scmp.ne.s32.totalorder %s87, %s88
    %p97 = scmp.eq.s32.totalorder %s21, 0
    %p98 = por %p96, %p97
    %p99 = scmp.ne.s32.totalorder %s87, %s88
    %p100 = scmp.eq.s32.totalorder %s22, 1
    %p101 = por %p99, %p100
    %p103 = scmp.ne.s32.totalorder %s88, %s102
    %p104 = scmp.eq.s32.totalorder %s22, 0
    %p105 = por %p103, %p104
    %s107 = sadd.s32 %s106, 1
    %p110 = scmp.eq.s32.totalorder %s16, 1
    %p111 = scmp.ne.s32.totalorder %s106, %s108
    %p112 = scmp.eq.s32.totalorder %s16, 0
    %p113 = por %p111, %p112
    %p114 = scmp.ne.s32.totalorder %s106, %s108
    %p115 = scmp.eq.s32.totalorder %s21, 1
    %p116 = por %p114, %p115
    %p117 = scmp.ne.s32.totalorder %s108, %s109
    %p118 = scmp.eq.s32.totalorder %s21, 0
    %p119 = por %p117, %p118
    %p120 = scmp.ne.s32.totalorder %s108, %s109
    %p121 = scmp.eq.s32.totalorder %s22, 1
    %p122 = por %p120, %p121
    %p124 = scmp.ne.s32.totalorder %s109, %s123
    %p125 = scmp.eq.s32.totalorder %s22, 0
    %p126 = por %p124, %p125
    %s128 = sadd.s32 %s127, 1
    %p131 = scmp.eq.s32.totalorder %s16, 1
    %p132 = scmp.ne.s32.totalorder %s127, %s129
    %p133 = scmp.eq.s32.totalorder %s16, 0
    %p134 = por %p132, %p133
    %p135 = scmp.ne.s32.totalorder %s127, %s129
    %p136 = scmp.eq.s32.totalorder %s21, 1
    %p137 = por %p135, %p136
    %p138 = scmp.ne.s32.totalorder %s129, %s130
    %p139 = scmp.eq.s32.totalorder %s21, 0
    %p140 = por %p138, %p139
    %p141 = scmp.ne.s32.totalorder %s129, %s130
    %p142 = scmp.eq.s32.totalorder %s22, 1
    %p143 = por %p141, %p142
    %p145 = scmp.ne.s32.totalorder %s130, %s144
    %p146 = scmp.eq.s32.totalorder %s22, 0
    %p147 = por %p145, %p146
    %s148 = ssub.s32 %s24, %s31
    %p149 = scmp.eq.s32.totalorder %s148, 0
    %s151 = sadd.s32 %s150, 1
    %s152 = scalar_select %p149, %s150, %s151
    %p155 = pneg %p149
    %p156 = scmp.eq.s32.totalorder %s16, 1
    %p157 = por %p155, %p156
    %p158 = scmp.ne.s32.totalorder %s150, %s153
    %p159 = scmp.eq.s32.totalorder %s16, 0
    %p160 = por %p158, %p159
    %p161 = scmp.ne.s32.totalorder %s150, %s153
    %p162 = scmp.eq.s32.totalorder %s21, 1
    %p163 = por %p161, %p162
    %p164 = scmp.ne.s32.totalorder %s153, %s154
    %p165 = scmp.eq.s32.totalorder %s21, 0
    %p166 = por %p164, %p165
    %p167 = scmp.ne.s32.totalorder %s153, %s154
    %p168 = scmp.eq.s32.totalorder %s22, 1
    %p169 = por %p167, %p168
    %p171 = scmp.ne.s32.totalorder %s154, %s170
    %p172 = scmp.eq.s32.totalorder %s22, 0
    %p173 = por %p171, %p172
    %s174 = ssub.s32 %s24, %s31
    %p175 = scmp.eq.s32.totalorder %s174, 0
    %s177 = sadd.s32 %s176, 1
    %s178 = scalar_select %p175, %s176, %s177
    %p181 = pneg %p175
    %p182 = scmp.eq.s32.totalorder %s16, 1
    %p183 = por %p181, %p182
    %p184 = scmp.ne.s32.totalorder %s176, %s179
    %p185 = scmp.eq.s32.totalorder %s16, 0
    %p186 = por %p184, %p185
    %p187 = scmp.ne.s32.totalorder %s176, %s179
    %p188 = scmp.eq.s32.totalorder %s21, 1
    %p189 = por %p187, %p188
    %p190 = scmp.ne.s32.totalorder %s179, %s180
    %p191 = scmp.eq.s32.totalorder %s21, 0
    %p192 = por %p190, %p191
    %p193 = scmp.ne.s32.totalorder %s179, %s180
    %p194 = scmp.eq.s32.totalorder %s22, 1
    %p195 = por %p193, %p194
    %p197 = scmp.ne.s32.totalorder %s180, %s196
    %p198 = scmp.eq.s32.totalorder %s22, 0
    %p199 = por %p197, %p198
    %s200 = ssub.s32 %s23, %s35
    %s201 = ssub.s32 %s24, %s31
    %s202 = sor.u32 %s200, %s201
    %p203 = scmp.eq.s32.totalorder %s202, 0
    %s205 = sadd.s32 %s204, 1
    %s206 = scalar_select %p203, %s204, %s205
    %p209 = pneg %p203
    %p210 = scmp.eq.s32.totalorder %s16, 1
    %p211 = por %p209, %p210
    %p212 = scmp.ne.s32.totalorder %s204, %s207
    %p213 = scmp.eq.s32.totalorder %s16, 0
    %p214 = por %p212, %p213
    %p215 = scmp.ne.s32.totalorder %s204, %s207
    %p216 = scmp.eq.s32.totalorder %s21, 1
    %p217 = por %p215, %p216
    %p218 = scmp.ne.s32.totalorder %s207, %s208
    %p219 = scmp.eq.s32.totalorder %s21, 0
    %p220 = por %p218, %p219
    %p221 = scmp.ne.s32.totalorder %s207, %s208
    %p222 = scmp.eq.s32.totalorder %s22, 1
    %p223 = por %p221, %p222
    %p225 = scmp.ne.s32.totalorder %s208, %s224
    %p226 = scmp.eq.s32.totalorder %s22, 0
    %p227 = por %p225, %p226
    %s228 = ssub.s32 %s23, %s35
    %s229 = ssub.s32 %s24, %s31
    %s230 = sor.u32 %s228, %s229
    %p231 = scmp.eq.s32.totalorder %s230, 0
    %s233 = sadd.s32 %s232, 1
    %s234 = scalar_select %p231, %s232, %s233
    %p237 = pneg %p231
    %p238 = scmp.eq.s32.totalorder %s16, 1
    %p239 = por %p237, %p238
    %p240 = scmp.ne.s32.totalorder %s232, %s235
    %p241 = scmp.eq.s32.totalorder %s16, 0
    %p242 = por %p240, %p241
    %p243 = scmp.ne.s32.totalorder %s232, %s235
    %p244 = scmp.eq.s32.totalorder %s21, 1
    %p245 = por %p243, %p244
    %p246 = scmp.ne.s32.totalorder %s235, %s236
    %p247 = scmp.eq.s32.totalorder %s21, 0
    %p248 = por %p246, %p247
    %p249 = scmp.ne.s32.totalorder %s235, %s236
    %p250 = scmp.eq.s32.totalorder %s22, 1
    %p251 = por %p249, %p250
    %p253 = scmp.ne.s32.totalorder %s236, %s252
    %p254 = scmp.eq.s32.totalorder %s22, 0
    %p255 = por %p253, %p254
    %s256 = ssub.s32 %s23, %s35
    %s257 = ssub.s32 %s24, %s31
    %s258 = sor.u32 %s256, %s257
    %p259 = scmp.eq.s32.totalorder %s258, 0
    %s261 = sadd.s32 %s260, 1
    %s262 = scalar_select %p259, %s260, %s261
    %p265 = pneg %p259
    %p266 = scmp.eq.s32.totalorder %s16, 1
    %p267 = por %p265, %p266
    %p268 = scmp.ne.s32.totalorder %s260, %s263
    %p269 = scmp.eq.s32.totalorder %s16, 0
    %p270 = por %p268, %p269
    %p271 = scmp.ne.s32.totalorder %s260, %s263
    %p272 = scmp.eq.s32.totalorder %s21, 1
    %p273 = por %p271, %p272
    %p274 = scmp.ne.s32.totalorder %s263, %s264
    %p275 = scmp.eq.s32.totalorder %s21, 0
    %p276 = por %p274, %p275
    %p277 = scmp.ne.s32.totalorder %s263, %s264
    %p278 = scmp.eq.s32.totalorder %s22, 1
    %p279 = por %p277, %p278
    %p281 = scmp.ne.s32.totalorder %s264, %s280
    %p282 = scmp.eq.s32.totalorder %s22, 0
    %p283 = por %p281, %p282
    %p284 = scmp.le.s32.totalorder 1, %s16
    %p285 = scmp.lt.s32.totalorder %s16, 3
    %p286 = pnand %p284, %p285
    %p287 = pneg %p286
    // Predicated region
    $region9: #{conformer_forward.22} parent=5 // pred_check
      _
    $region10: #{conformer_forward.22} parent=5 // pred_check_branch
      %289 = sbr.rel (%p286) target = $region12
    $region11: #{conformer_forward.22} parent=5 // pred_region
      %s290 = ssub.s32 %s16, 1
      // Predicated region
      $region13: #{conformer_forward.22} parent=11 // pred_check
        %p291 = pneg %p77
      $region14: #{conformer_forward.22} parent=11 // pred_check_branch
        %293 = sbr.rel (%p291) target = $region16
      $region15: #{conformer_forward.22} parent=11 // pred_region
        _
      $region16: #{conformer_forward.22} parent=11 // pred_fallthru
        _
      // Predicated region
      $region17: #{conformer_forward.22} parent=11 // pred_check
        %p294 = pneg %p98
      $region18: #{conformer_forward.22} parent=11 // pred_check_branch
        %296 = sbr.rel (%p294) target = $region20
      $region19: #{conformer_forward.22} parent=11 // pred_region
        _
      $region20: #{conformer_forward.22} parent=11 // pred_fallthru
        _
      // Predicated region
      $region21: #{conformer_forward.22} parent=11 // pred_check
        %p297 = pneg %p119
      $region22: #{conformer_forward.22} parent=11 // pred_check_branch
        %299 = sbr.rel (%p297) target = $region24
      $region23: #{conformer_forward.22} parent=11 // pred_region
        _
      $region24: #{conformer_forward.22} parent=11 // pred_fallthru
        _
      // Predicated region
      $region25: #{conformer_forward.22} parent=11 // pred_check
        %p300 = pneg %p140
      $region26: #{conformer_forward.22} parent=11 // pred_check_branch
        %302 = sbr.rel (%p300) target = $region28
      $region27: #{conformer_forward.22} parent=11 // pred_region
        _
      $region28: #{conformer_forward.22} parent=11 // pred_fallthru
        _
      // Predicated region
      $region29: #{conformer_forward.22} parent=11 // pred_check
        %p303 = pneg %p166
      $region30: #{conformer_forward.22} parent=11 // pred_check_branch
        %305 = sbr.rel (%p303) target = $region32
      $region31: #{conformer_forward.22} parent=11 // pred_region
        %p306 = scmp.lt.s32.totalorder %s26, 0
        %s307 = scalar_select %p306, %s26, 0
        %s308 = smul.addr %s307, 4
        %s309 = scalar_lea.vmem %s5, %s308
      $region32: #{conformer_forward.22} parent=11 // pred_fallthru
        _
      // Predicated region
      $region33: #{conformer_forward.22} parent=11 // pred_check
        %p310 = pneg %p192
      $region34: #{conformer_forward.22} parent=11 // pred_check_branch
        %312 = sbr.rel (%p310) target = $region36
      $region35: #{conformer_forward.22} parent=11 // pred_region
        %p313 = scmp.lt.s32.totalorder %s26, 0
        %s314 = scalar_select %p313, %s26, 0
        %s315 = smul.addr %s314, 4
        %s316 = scalar_lea.vmem %s6, %s315
      $region36: #{conformer_forward.22} parent=11 // pred_fallthru
        _
    $region12: #{conformer_forward.22} parent=5 // pred_fallthru
      _
    %p317 = scmp.lt.s32.totalorder %s16, 2
    // Predicated region
    $region37: #{conformer_forward.22} parent=5 // pred_check
      %p318 = pneg %p317
    $region38: #{conformer_forward.22} parent=5 // pred_check_branch
      %320 = sbr.rel (%p318) target = $region40
    $region39: #{conformer_forward.22} parent=5 // pred_region
      // Predicated region
      $region41: #{conformer_forward.22} parent=39 // pred_check
        %p321 = pneg %p50
      $region42: #{conformer_forward.22} parent=39 // pred_check_branch
        %323 = sbr.rel (%p321) target = $region44
      $region43: #{conformer_forward.22} parent=39 // pred_region
        %p324 = scmp.lt.s32.totalorder %s23, 1
        %s325 = scalar_select %p324, %s23, 1
        %p326 = scmp.lt.s32.totalorder %s24, 0
        %s327 = scalar_select %p326, %s24, 0
        %s328 = sadd.s32 %s327, %s325
        %s329 = smul.addr %s328, 4
        %s330 = scalar_lea.vmem %s0, %s329
      $region44: #{conformer_forward.22} parent=39 // pred_fallthru
        _
    $region40: #{conformer_forward.22} parent=5 // pred_fallthru
      _
    %p331 = scmp.le.s32.totalorder 1, %s16
    %p332 = scmp.lt.s32.totalorder %s16, 3
    %p333 = pnand %p331, %p332
    %p334 = pneg %p333
    // Predicated region
    $region45: #{conformer_forward.22} parent=5 // pred_check
      _
    $region46: #{conformer_forward.22} parent=5 // pred_check_branch
      %336 = sbr.rel (%p333) target = $region48
    $region47: #{conformer_forward.22} parent=5 // pred_region
      %s337 = ssub.s32 %s16, 1
      %p338 = scmp.lt.s32.totalorder %s25, 1
      %s339 = scalar_select %p338, %s25, 1
      %p340 = scmp.lt.s32.totalorder %s26, 0
      %s341 = scalar_select %p340, %s26, 0
      %s342 = sadd.s32 %s341, %s339
      %s343 = smul.addr %s342, 4
      %s344 = scalar_lea.vmem %s0, %s343
      %p345 = pneg %p56
      %p346 = pneg %p53
      %p347 = pneg %p77
      %p348 = pneg %p74
      %p349 = pneg %p98
      %p350 = pneg %p95
      %p351 = pneg %p119
      %p352 = pneg %p116
      %p353 = pneg %p140
      %p354 = pneg %p137
      %p355 = scmp.lt.s32.totalorder %s26, 0
      %s356 = scalar_select %p355, %s26, 0
      %s357 = smul.addr %s356, 4
      %s358 = scalar_lea.vmem %s5, %s357
      %p359 = pneg %p166
      %p360 = pneg %p163
      %p361 = scmp.lt.s32.totalorder %s26, 0
      %s362 = scalar_select %p361, %s26, 0
      %s363 = smul.addr %s362, 4
      %s364 = scalar_lea.vmem %s6, %s363
      %p365 = pneg %p192
      %p366 = pneg %p189
      %p367 = pneg %p220
      %p368 = pneg %p217
      %p369 = scmp.lt.s32.totalorder %s25, 1
      %s370 = scalar_select %p369, %s25, 1
      %p371 = scmp.lt.s32.totalorder %s26, 0
      %s372 = scalar_select %p371, %s26, 0
      %s373 = smul.addr %s370, 4
      %s374 = sadd.s32 %s372, %s373
      %s375 = smul.addr %s374, 2
      %s376 = scalar_lea.vmem %s7, %s375
      %p377 = pneg %p248
      %p378 = pneg %p245
      %p379 = scmp.lt.s32.totalorder %s25, 1
      %s380 = scalar_select %p379, %s25, 1
      %p381 = scmp.lt.s32.totalorder %s26, 0
      %s382 = scalar_select %p381, %s26, 0
      %s383 = smul.addr %s380, 4
      %s384 = sadd.s32 %s382, %s383
      %s385 = smul.addr %s384, 2
      %s386 = scalar_lea.vmem %s8, %s385
      %p387 = pneg %p276
      %p388 = pneg %p273
      %p389 = scmp.lt.s32.totalorder %s25, 1
      %s390 = scalar_select %p389, %s25, 1
      %p391 = scmp.lt.s32.totalorder %s26, 0
      %s392 = scalar_select %p391, %s26, 0
      %s393 = smul.addr %s390, 4
      %s394 = sadd.s32 %s392, %s393
      %s395 = smul.addr %s394, 2
      %s396 = scalar_lea.vmem %s9, %s395
      %p397 = scmp.lt.s32.totalorder %s25, 1
      %s398 = scalar_select %p397, %s25, 1
      %p399 = scmp.lt.s32.totalorder %s26, 0
      %s400 = scalar_select %p399, %s26, 0
      %s401 = sadd.s32 %s400, %s398
      %s402 = smul.addr %s401, 4
      %s403 = scalar_lea.vmem %s0, %s402
      %p404 = scmp.lt.s32.totalorder %s26, 0
      %s405 = scalar_select %p404, %s26, 0
      %s406 = smul.addr %s405, 4
      %s407 = scalar_lea.vmem %s5, %s406
      %p408 = scmp.lt.s32.totalorder %s26, 0
      %s409 = scalar_select %p408, %s26, 0
      %s410 = smul.addr %s409, 4
      %s411 = scalar_lea.vmem %s6, %s410
      %p412 = scmp.lt.s32.totalorder %s25, 1
      %s413 = scalar_select %p412, %s25, 1
      %p414 = scmp.lt.s32.totalorder %s26, 0
      %s415 = scalar_select %p414, %s26, 0
      %s416 = smul.addr %s413, 4
      %s417 = sadd.s32 %s415, %s416
      %s418 = smul.addr %s417, 2
      %s419 = scalar_lea.vmem %s7, %s418
      %p420 = scmp.lt.s32.totalorder %s25, 1
      %s421 = scalar_select %p420, %s25, 1
      %p422 = scmp.lt.s32.totalorder %s26, 0
      %s423 = scalar_select %p422, %s26, 0
      %s424 = smul.addr %s421, 4
      %s425 = sadd.s32 %s423, %s424
      %s426 = smul.addr %s425, 2
      %s427 = scalar_lea.vmem %s8, %s426
      %p428 = scmp.lt.s32.totalorder %s25, 1
      %s429 = scalar_select %p428, %s25, 1
      %p430 = scmp.lt.s32.totalorder %s26, 0
      %s431 = scalar_select %p430, %s26, 0
      %s432 = smul.addr %s429, 4
      %s433 = sadd.s32 %s431, %s432
      %s434 = smul.addr %s433, 2
      %s435 = scalar_lea.vmem %s9, %s434
      %v437 = vld [vmem:[%s403] sm:$0xf]
      %vm438 = vcmask 257024
      %v439 = vsel %vm438, %v437, 0.0
      %440 = vadd.xlane.f32.xlu0 %v439
      %v441 = vpop.xlane.xlu0 %440
      %v442 = vrcp.pop 32.0
      %v443 = vmul.f32 32.0, %v442
      %v444 = vsub.f32 1.0, %v443
      %v445 = vmul.f32 %v442, %v444
      %v446 = vadd.f32 %v442, %v445
      %vm447 = vweird.f32 %v442
      %v448 = vsel %vm447, %v442, %v446
      %v449 = vmul.f32 %v441, %v448
      %v450 = vsub.f32 %v437, %v449
      %v451 = vmul.f32 %v450, %v450
      %v452 = vsel %vm438, %v451, 0.0
      %453 = vadd.xlane.f32.xlu0 %v452
      %v454 = vpop.xlane.xlu0 %453
      %v455 = vmul.f32 %v454, %v448
      %v456 = vadd.f32 %v455, 1e-05
      %v457 = vrsqrt.pop %v456
      %v458 = vmul.f32 %v457, %v456
      %v459 = vmul.f32 %v458, %v457
      %v460 = vmul.f32 0.5, %v459
      %v461 = vsub.f32 1.5, %v460
      %v462 = vmul.f32 %v457, %v461
      %vm463 = vweird.f32 %v456
      %vm464 = vweird.f32 %v457
      %vm465 = vmor %vm463, %vm464
      %v466 = vsel %vm465, %v457, %v462
      %v467 = vmul.f32 %v450, %v466
      %v468 = vld [vmem:[%s1] sm:$0x1]
      %v470 = vperm.slane %v468, 0
      %v472 = vmul.f32 %v467, %v470
      %v473 = vld [vmem:[%s2] sm:$0x1]
      %v475 = vperm.slane %v473, 0
      %v477 = vadd.f32 %v472, %v475
      %v478 = vpack.c.bf16 %v477, %v477
      %v479 = vld [vmem:[%s3] sm:$0xff]
      %v480 = vld [vmem:[%s3 + $0x8] sm:$0xff]
      %v481 = vld [vmem:[%s3 + $0x10] sm:$0xff]
      %v482 = vld [vmem:[%s3 + $0x18] sm:$0xff]
      %v483 = vld [vmem:[%s4] sm:$0x3]
      %v485 = vperm.slane %v483, 0
      %v486 = vperm.slane %v483, 1
      %v493 = vunpack.c.l.b16 %v479
      %v494 = vunpack.c.h.b16 %v479
      %v495 = vunpack.c.l.b16 %v480
      %v496 = vunpack.c.h.b16 %v480
      %v497 = vunpack.c.l.b16 %v481
      %v498 = vunpack.c.h.b16 %v481
      %v499 = vunpack.c.l.b16 %v482
      %v500 = vunpack.c.h.b16 %v482
      %v501 = vpack.c.b16 %v495, %v493
      %v502 = vpack.c.b16 %v496, %v494
      %v503 = vpack.c.b16 %v499, %v497
      %v504 = vpack.c.b16 %v500, %v498
      %vm509 = vcmask 261120
      %v511 = vsel %vm509, %v478, 0
      %513 = vmatpush.bf16.msra.mxu0 0
      %514 = vmatpush.bf16.msra.mxu0 0
      %515 = vmatpush.bf16.msra.mxu0 0
      %516 = vmatpush.bf16.msra.mxu0 0
      %517 = vmatpush.bf16.msra.mxu0 0
      %518 = vmatpush.bf16.msra.mxu0 0
      %519 = vmatpush.bf16.msra.mxu0 %v503
      %520 = vmatpush.bf16.msra.mxu0 %v501
      %521 = vmatmul.bf16.gmra.mxu0 %v511
      %v522 = vpop.f32.mrf.mxu0
      %v523 = vadd.f32 %v485, %v522
      %v524 = vpop.f32.mrf.mxu0
      %525 = vdwg.mxu0
      %526 = vmatpush.bf16.msra.mxu0 0
      %527 = vmatpush.bf16.msra.mxu0 0
      %528 = vmatpush.bf16.msra.mxu0 0
      %529 = vmatpush.bf16.msra.mxu0 0
      %530 = vmatpush.bf16.msra.mxu0 0
      %531 = vmatpush.bf16.msra.mxu0 0
      %532 = vmatpush.bf16.msra.mxu0 %v504
      %533 = vmatpush.bf16.msra.mxu0 %v502
      %534 = vmatmul.bf16.gmra.mxu0 %v511
      %v535 = vpop.f32.mrf.mxu0
      %v536 = vadd.f32 %v486, %v535
      %v537 = vpop.f32.mrf.mxu0
      %538 = vdwg.mxu0
      %v539 = vld [vmem:[%s407] sm:$0xf]
      %v540 = vld [vmem:[%s411] sm:$0xf]
      %v541 = vmul.f32 %v523, %v539
      %543 = vrot.lane.b32.xlu0 %v540, 32
      %v544 = vpop.permute.xlu0 %543
      %v546 = vmul.f32 %v523, %v544
      %548 = vrot.lane.b32.xlu0 %v546, 96
      %v549 = vpop.permute.xlu0 %548
      %v551 = vadd.f32 %v541, %v549
      %v552 = vmul.f32 %v551, 0.35355338
      %554 = vrot.lane.b32.xlu0 %v539, 64
      %v555 = vpop.permute.xlu0 %554
      %v557 = vmul.f32 %v523, %v555
      %558 = vrot.lane.b32.xlu0 %v540, 96
      %v559 = vpop.permute.xlu0 %558
      %v561 = vmul.f32 %v523, %v559
      %563 = vrot.lane.b32.xlu0 %v561, 96
      %v564 = vpop.permute.xlu0 %563
      %v566 = vadd.f32 %v557, %v564
      %v567 = vpack.c.bf16 %v552, %v552
      %vm568 = vcmask 58368
      %569 = vst.msk [vmem:[%s419] sm:$0x3] %vm568, %v567
      %v570 = vpack.c.bf16 %v566, %v566
      %v572 = vrot.slane %v570, 2
      %vm573 = vcmask 1041408
      %v576 = vsel %vm573, %v570, %v572
      %578 = vrot.lane.b32.xlu0 %v576, 64
      %v579 = vpop.permute.xlu0 %578
      %581 = vst.msk [vmem:[%s427] sm:$0x3] %vm568, %v579
      %v582 = vpack.c.bf16 %v536, %v536
      %583 = vst.msk [vmem:[%s435] sm:$0x3] %vm568, %v582
      %v585 = vrot.slane %v567, 2
      %v588 = vsel %vm573, %v567, %v585
      %590 = vrot.lane.b32.xlu0 %v588, 120
      %v591 = vpop.permute.xlu0 %590
      %s593 = scalar_lea.vmem %s419, 2
      %594 = vst.msk [vmem:[%s593] sm:$0x3] %vm568, %v591
      %595 = vrot.lane.b32.xlu0 %v576, 56
      %v596 = vpop.permute.xlu0 %595
      %s598 = scalar_lea.vmem %s427, 2
      %599 = vst.msk [vmem:[%s598] sm:$0x3] %vm568, %v596
      %v601 = vrot.slane %v582, 2
      %v604 = vsel %vm573, %v582, %v601
      %606 = vrot.lane.b32.xlu0 %v604, 120
      %v607 = vpop.permute.xlu0 %606
      %s609 = scalar_lea.vmem %s435, 2
      %610 = vst.msk [vmem:[%s609] sm:$0x3] %vm568, %v607
      %611 = vrot.lane.b32.xlu0 %v588, 112
      %v612 = vpop.permute.xlu0 %611
      %s614 = scalar_lea.vmem %s419, 4
      %615 = vst.msk [vmem:[%s614] sm:$0x3] %vm568, %v612
      %616 = vrot.lane.b32.xlu0 %v576, 48
      %v617 = vpop.permute.xlu0 %616
      %s619 = scalar_lea.vmem %s427, 4
      %620 = vst.msk [vmem:[%s619] sm:$0x3] %vm568, %v617
      %621 = vrot.lane.b32.xlu0 %v604, 112
      %v622 = vpop.permute.xlu0 %621
      %s624 = scalar_lea.vmem %s435, 4
      %625 = vst.msk [vmem:[%s624] sm:$0x3] %vm568, %v622
      %626 = vrot.lane.b32.xlu0 %v588, 104
      %v627 = vpop.permute.xlu0 %626
      %s629 = scalar_lea.vmem %s419, 6
      %630 = vst.msk [vmem:[%s629] sm:$0x3] %vm568, %v627
      %631 = vrot.lane.b32.xlu0 %v576, 40
      %v632 = vpop.permute.xlu0 %631
      %s634 = scalar_lea.vmem %s427, 6
      %635 = vst.msk [vmem:[%s634] sm:$0x3] %vm568, %v632
      %636 = vrot.lane.b32.xlu0 %v604, 104
      %v637 = vpop.permute.xlu0 %636
      %s639 = scalar_lea.vmem %s435, 6
      %640 = vst.msk [vmem:[%s639] sm:$0x3] %vm568, %v637
      %p641 = scmp.lt.s32.totalorder %s25, 1
      %s642 = scalar_select %p641, %s25, 1
      %p643 = scmp.lt.s32.totalorder %s26, 0
      %s644 = scalar_select %p643, %s26, 0
      %s645 = smul.addr %s642, 4
      %s646 = sadd.s32 %s644, %s645
      %s647 = smul.addr %s646, 2
      %s648 = scalar_lea.vmem %s7, %s647
      %p649 = scmp.lt.s32.totalorder %s25, 1
      %s650 = scalar_select %p649, %s25, 1
      %p651 = scmp.lt.s32.totalorder %s26, 0
      %s652 = scalar_select %p651, %s26, 0
      %s653 = smul.addr %s650, 4
      %s654 = sadd.s32 %s652, %s653
      %s655 = smul.addr %s654, 2
      %s656 = scalar_lea.vmem %s8, %s655
      %p657 = scmp.lt.s32.totalorder %s25, 1
      %s658 = scalar_select %p657, %s25, 1
      %p659 = scmp.lt.s32.totalorder %s26, 0
      %s660 = scalar_select %p659, %s26, 0
      %s661 = smul.addr %s658, 4
      %s662 = sadd.s32 %s660, %s661
      %s663 = smul.addr %s662, 2
      %s664 = scalar_lea.vmem %s9, %s663
      // Predicated region
      $region49: #{conformer_forward.22} parent=47 // pred_check
        %p665 = pneg %p217
      $region50: #{conformer_forward.22} parent=47 // pred_check_branch
        %667 = sbr.rel (%p665) target = $region52
      $region51: #{conformer_forward.22} parent=47 // pred_region
        _
      $region52: #{conformer_forward.22} parent=47 // pred_fallthru
        _
      // Predicated region
      $region53: #{conformer_forward.22} parent=47 // pred_check
        %p668 = pneg %p245
      $region54: #{conformer_forward.22} parent=47 // pred_check_branch
        %670 = sbr.rel (%p668) target = $region56
      $region55: #{conformer_forward.22} parent=47 // pred_region
        _
      $region56: #{conformer_forward.22} parent=47 // pred_fallthru
        _
      // Predicated region
      $region57: #{conformer_forward.22} parent=47 // pred_check
        %p671 = pneg %p273
      $region58: #{conformer_forward.22} parent=47 // pred_check_branch
        %673 = sbr.rel (%p671) target = $region60
      $region59: #{conformer_forward.22} parent=47 // pred_region
        _
      $region60: #{conformer_forward.22} parent=47 // pred_fallthru
        _
    $region48: #{conformer_forward.22} parent=5 // pred_fallthru
      _
    %p674 = scmp.le.s32.totalorder 2, %s16
    // Predicated region
    $region61: #{conformer_forward.22} parent=5 // pred_check
      %p675 = pneg %p674
    $region62: #{conformer_forward.22} parent=5 // pred_check_branch
      %677 = sbr.rel (%p675) target = $region64
    $region63: #{conformer_forward.22} parent=5 // pred_region
      %s678 = ssub.s32 %s16, 2
      // Predicated region
      $region65: #{conformer_forward.22} parent=63 // pred_check
        %p679 = pneg %p223
      $region66: #{conformer_forward.22} parent=63 // pred_check_branch
        %681 = sbr.rel (%p679) target = $region68
      $region67: #{conformer_forward.22} parent=63 // pred_region
        %p682 = scmp.lt.s32.totalorder %s27, 1
        %s683 = scalar_select %p682, %s27, 1
        %p684 = scmp.lt.s32.totalorder %s28, 0
        %s685 = scalar_select %p684, %s28, 0
        %s686 = smul.addr %s683, 4
        %s687 = sadd.s32 %s685, %s686
        %s688 = smul.addr %s687, 2
        %s689 = scalar_lea.vmem %s7, %s688
      $region68: #{conformer_forward.22} parent=63 // pred_fallthru
        _
      // Predicated region
      $region69: #{conformer_forward.22} parent=63 // pred_check
        %p690 = pneg %p251
      $region70: #{conformer_forward.22} parent=63 // pred_check_branch
        %692 = sbr.rel (%p690) target = $region72
      $region71: #{conformer_forward.22} parent=63 // pred_region
        %p693 = scmp.lt.s32.totalorder %s27, 1
        %s694 = scalar_select %p693, %s27, 1
        %p695 = scmp.lt.s32.totalorder %s28, 0
        %s696 = scalar_select %p695, %s28, 0
        %s697 = smul.addr %s694, 4
        %s698 = sadd.s32 %s696, %s697
        %s699 = smul.addr %s698, 2
        %s700 = scalar_lea.vmem %s8, %s699
      $region72: #{conformer_forward.22} parent=63 // pred_fallthru
        _
      // Predicated region
      $region73: #{conformer_forward.22} parent=63 // pred_check
        %p701 = pneg %p279
      $region74: #{conformer_forward.22} parent=63 // pred_check_branch
        %703 = sbr.rel (%p701) target = $region76
      $region75: #{conformer_forward.22} parent=63 // pred_region
        %p704 = scmp.lt.s32.totalorder %s27, 1
        %s705 = scalar_select %p704, %s27, 1
        %p706 = scmp.lt.s32.totalorder %s28, 0
        %s707 = scalar_select %p706, %s28, 0
        %s708 = smul.addr %s705, 4
        %s709 = sadd.s32 %s707, %s708
        %s710 = smul.addr %s709, 2
        %s711 = scalar_lea.vmem %s9, %s710
      $region76: #{conformer_forward.22} parent=63 // pred_fallthru
        _
    $region64: #{conformer_forward.22} parent=5 // pred_fallthru
      _
  $region6: #{conformer_forward.22} parent=0 // loop_footer
    %s20 = sadd.s32 1, %s16
  $region7: #{conformer_forward.22} parent=0 // loop_footer_branch
    %15 = sbr.rel target = $region3
  $region8: #{conformer_forward.22} parent=0 // loop_exit
    _

// kernel: conformer_forward.23
$region0: #{conformer_forward.23}
  #allocation0 [shape = 'u32[]', space=smem, size = 0x4, offset = 0x4, fixed_abs, tag = 'smem constant byte address 0x4 - core index']
  #allocation1 [shape = 'u32[72,128]{1,0:T(1,128)}', space=vmem, size = 0x9000, scoped, tag = 'internal scratch']
  #allocation2 [shape = 'f32[4,1]{1,0:T(4,128)}', space=vmem, size = 0x800, scoped, tag = 'scratch operand']
  #allocation3 [shape = 'f32[4,1]{1,0:T(4,128)}', space=vmem, size = 0x800, scoped, tag = 'scratch operand']
  #allocation4 [shape = 'f32[4,8]{1,0:T(4,128)}', space=vmem, size = 0x800, scoped, tag = 'scratch operand']
  %s0 = inlined_call_operand.vmem [shape: bf16[2,4,4,8], index: 0, kind: input, shape index: {}]
  %s1 = inlined_call_operand.vmem [shape: bf16[2,4,4,8], index: 1, kind: input, shape index: {}]
  %s2 = inlined_call_operand.vmem [shape: bf16[2,4,4,8], index: 2, kind: input, shape index: {}]
  %s3 = inlined_call_operand.vmem [shape: f32[2,1,4], index: 3, kind: input, shape index: {}]
  %s4 = inlined_call_operand.vmem [shape: bf16[2,4,4,8], index: 4, kind: output, shape index: {}]
  %s5 = sld [smem:[#allocation0]]
  $region57: #{conformer_forward.23} parent=0
    _
  %s7 = ssub.s32 1, %s5
  %s8 = scalar_select 0, %s7, %s5
  loop: start=0, step=1, limit=10
  $region2: #{conformer_forward.23} parent=0 // loop_pre_header
    _
  $region3: #{conformer_forward.23} parent=0 // loop_header
    %s10 = sphi 0, %s14
    %p11 = scmp.ge.s32.totalorder %s10, 10
    %s17 = sphi 0, %s43
    %s18 = sphi 0, %s39
    %s19 = sphi 0, %s35
    %s20 = sphi 0, %s31
    %s21 = sphi 0, %s17
    %s22 = sphi 0, %s18
    %s23 = sphi 0, %s19
    %s24 = sphi 0, %s20
    %s25 = sphi 0, %s21
    %s26 = sphi 0, %s22
    %s27 = sphi 0, %s23
    %s28 = sphi 0, %s24
    %s50 = sphi 0, %s52
    %s53 = sphi 0, %s50
    %s54 = sphi 0, %s53
    %s70 = sphi 0, %s54
    %s80 = sphi 0, %s82
    %s83 = sphi 0, %s80
    %s84 = sphi 0, %s83
    %s100 = sphi 0, %s84
    %s110 = sphi 0, %s112
    %s113 = sphi 0, %s110
    %s114 = sphi 0, %s113
    %s130 = sphi 0, %s114
    %s138 = sphi 0, %s140
    %s141 = sphi 0, %s138
    %s142 = sphi 0, %s141
    %s158 = sphi 0, %s142
    %s168 = sphi 0, %s170
    %s171 = sphi 0, %s168
    %s172 = sphi 0, %s171
    %s188 = sphi 0, %s172
  $region4: #{conformer_forward.23} parent=0 // loop_header_branch
    %13 = sbr.rel (%p11) target = $region8
  $region5: #{conformer_forward.23} parent=0 // loop_body
    %s15 = ssub.s32 %s10, 1
    %s16 = ssub.s32 %s10, 2
    %s29 = sadd.s32 1, %s20
    %p30 = scmp.ge.s32.totalorder %s29, 1
    %s31 = scalar_select %p30, 0, %s29
    %s32 = sadd.s32 1, %s19
    %s33 = scalar_select %p30, %s32, %s19
    %p34 = scmp.ge.s32.totalorder %s33, 1
    %s35 = scalar_select %p34, 0, %s33
    %s36 = sadd.s32 1, %s18
    %s37 = scalar_select %p34, %s36, %s18
    %p38 = scmp.ge.s32.totalorder %s37, 4
    %s39 = scalar_select %p38, 0, %s37
    %s40 = sadd.s32 1, %s17
    %s41 = scalar_select %p38, %s40, %s17
    %p42 = scmp.ge.s32.totalorder %s41, 2
    %s43 = scalar_select %p42, 0, %s41
    %s44 = ssub.s32 %s17, %s43
    %s45 = ssub.s32 %s18, %s39
    %s46 = sor.u32 %s44, %s45
    %s47 = ssub.s32 %s19, %s35
    %s48 = sor.u32 %s46, %s47
    %p49 = scmp.eq.s32.totalorder %s48, 0
    %s51 = sadd.s32 %s50, 1
    %s52 = scalar_select %p49, %s50, %s51
    %p55 = pneg %p49
    %p56 = scmp.eq.s32.totalorder %s10, 7
    %p57 = por %p55, %p56
    %p58 = scmp.ne.s32.totalorder %s50, %s53
    %p59 = scmp.eq.s32.totalorder %s10, 0
    %p60 = por %p58, %p59
    %p61 = scmp.ne.s32.totalorder %s50, %s53
    %p62 = scmp.eq.s32.totalorder %s15, 7
    %p63 = por %p61, %p62
    %p64 = scmp.ne.s32.totalorder %s53, %s54
    %p65 = scmp.eq.s32.totalorder %s15, 0
    %p66 = por %p64, %p65
    %p67 = scmp.ne.s32.totalorder %s53, %s54
    %p68 = scmp.eq.s32.totalorder %s16, 7
    %p69 = por %p67, %p68
    %p71 = scmp.ne.s32.totalorder %s54, %s70
    %p72 = scmp.eq.s32.totalorder %s16, 0
    %p73 = por %p71, %p72
    %s74 = ssub.s32 %s17, %s43
    %s75 = ssub.s32 %s18, %s39
    %s76 = sor.u32 %s74, %s75
    %s77 = ssub.s32 %s20, %s31
    %s78 = sor.u32 %s76, %s77
    %p79 = scmp.eq.s32.totalorder %s78, 0
    %s81 = sadd.s32 %s80, 1
    %s82 = scalar_select %p79, %s80, %s81
    %p85 = pneg %p79
    %p86 = scmp.eq.s32.totalorder %s10, 7
    %p87 = por %p85, %p86
    %p88 = scmp.ne.s32.totalorder %s80, %s83
    %p89 = scmp.eq.s32.totalorder %s10, 0
    %p90 = por %p88, %p89
    %p91 = scmp.ne.s32.totalorder %s80, %s83
    %p92 = scmp.eq.s32.totalorder %s15, 7
    %p93 = por %p91, %p92
    %p94 = scmp.ne.s32.totalorder %s83, %s84
    %p95 = scmp.eq.s32.totalorder %s15, 0
    %p96 = por %p94, %p95
    %p97 = scmp.ne.s32.totalorder %s83, %s84
    %p98 = scmp.eq.s32.totalorder %s16, 7
    %p99 = por %p97, %p98
    %p101 = scmp.ne.s32.totalorder %s84, %s100
    %p102 = scmp.eq.s32.totalorder %s16, 0
    %p103 = por %p101, %p102
    %s104 = ssub.s32 %s17, %s43
    %s105 = ssub.s32 %s18, %s39
    %s106 = sor.u32 %s104, %s105
    %s107 = ssub.s32 %s20, %s31
    %s108 = sor.u32 %s106, %s107
    %p109 = scmp.eq.s32.totalorder %s108, 0
    %s111 = sadd.s32 %s110, 1
    %s112 = scalar_select %p109, %s110, %s111
    %p115 = pneg %p109
    %p116 = scmp.eq.s32.totalorder %s10, 7
    %p117 = por %p115, %p116
    %p118 = scmp.ne.s32.totalorder %s110, %s113
    %p119 = scmp.eq.s32.totalorder %s10, 0
    %p120 = por %p118, %p119
    %p121 = scmp.ne.s32.totalorder %s110, %s113
    %p122 = scmp.eq.s32.totalorder %s15, 7
    %p123 = por %p121, %p122
    %p124 = scmp.ne.s32.totalorder %s113, %s114
    %p125 = scmp.eq.s32.totalorder %s15, 0
    %p126 = por %p124, %p125
    %p127 = scmp.ne.s32.totalorder %s113, %s114
    %p128 = scmp.eq.s32.totalorder %s16, 7
    %p129 = por %p127, %p128
    %p131 = scmp.ne.s32.totalorder %s114, %s130
    %p132 = scmp.eq.s32.totalorder %s16, 0
    %p133 = por %p131, %p132
    %s134 = ssub.s32 %s17, %s43
    %s135 = ssub.s32 %s20, %s31
    %s136 = sor.u32 %s134, %s135
    %p137 = scmp.eq.s32.totalorder %s136, 0
    %s139 = sadd.s32 %s138, 1
    %s140 = scalar_select %p137, %s138, %s139
    %p143 = pneg %p137
    %p144 = scmp.eq.s32.totalorder %s10, 7
    %p145 = por %p143, %p144
    %p146 = scmp.ne.s32.totalorder %s138, %s141
    %p147 = scmp.eq.s32.totalorder %s10, 0
    %p148 = por %p146, %p147
    %p149 = scmp.ne.s32.totalorder %s138, %s141
    %p150 = scmp.eq.s32.totalorder %s15, 7
    %p151 = por %p149, %p150
    %p152 = scmp.ne.s32.totalorder %s141, %s142
    %p153 = scmp.eq.s32.totalorder %s15, 0
    %p154 = por %p152, %p153
    %p155 = scmp.ne.s32.totalorder %s141, %s142
    %p156 = scmp.eq.s32.totalorder %s16, 7
    %p157 = por %p155, %p156
    %p159 = scmp.ne.s32.totalorder %s142, %s158
    %p160 = scmp.eq.s32.totalorder %s16, 0
    %p161 = por %p159, %p160
    %s162 = ssub.s32 %s17, %s43
    %s163 = ssub.s32 %s18, %s39
    %s164 = sor.u32 %s162, %s163
    %s165 = ssub.s32 %s19, %s35
    %s166 = sor.u32 %s164, %s165
    %p167 = scmp.eq.s32.totalorder %s166, 0
    %s169 = sadd.s32 %s168, 1
    %s170 = scalar_select %p167, %s168, %s169
    %p173 = pneg %p167
    %p174 = scmp.eq.s32.totalorder %s10, 7
    %p175 = por %p173, %p174
    %p176 = scmp.ne.s32.totalorder %s168, %s171
    %p177 = scmp.eq.s32.totalorder %s10, 0
    %p178 = por %p176, %p177
    %p179 = scmp.ne.s32.totalorder %s168, %s171
    %p180 = scmp.eq.s32.totalorder %s15, 7
    %p181 = por %p179, %p180
    %p182 = scmp.ne.s32.totalorder %s171, %s172
    %p183 = scmp.eq.s32.totalorder %s15, 0
    %p184 = por %p182, %p183
    %p185 = scmp.ne.s32.totalorder %s171, %s172
    %p186 = scmp.eq.s32.totalorder %s16, 7
    %p187 = por %p185, %p186
    %p189 = scmp.ne.s32.totalorder %s172, %s188
    %p190 = scmp.eq.s32.totalorder %s16, 0
    %p191 = por %p189, %p190
    %p192 = scmp.le.s32.totalorder 1, %s10
    %p193 = scmp.lt.s32.totalorder %s10, 9
    %p194 = pnand %p192, %p193
    %p195 = pneg %p194
    // Predicated region
    $region9: #{conformer_forward.23} parent=5 // pred_check
      _
    $region10: #{conformer_forward.23} parent=5 // pred_check_branch
      %197 = sbr.rel (%p194) target = $region12
    $region11: #{conformer_forward.23} parent=5 // pred_region
      %s198 = ssub.s32 %s10, 1
    $region12: #{conformer_forward.23} parent=5 // pred_fallthru
      _
    %p199 = scmp.lt.s32.totalorder %s10, 8
    // Predicated region
    $region13: #{conformer_forward.23} parent=5 // pred_check
      %p200 = pneg %p199
    $region14: #{conformer_forward.23} parent=5 // pred_check_branch
      %202 = sbr.rel (%p200) target = $region16
    $region15: #{conformer_forward.23} parent=5 // pred_region
      // Predicated region
      $region17: #{conformer_forward.23} parent=15 // pred_check
        %p203 = pneg %p60
      $region18: #{conformer_forward.23} parent=15 // pred_check_branch
        %205 = sbr.rel (%p203) target = $region20
      $region19: #{conformer_forward.23} parent=15 // pred_region
        %p206 = scmp.lt.s32.totalorder %s17, 1
        %s207 = scalar_select %p206, %s17, 1
        %p208 = scmp.lt.s32.totalorder %s18, 3
        %s209 = scalar_select %p208, %s18, 3
        %p210 = scmp.lt.s32.totalorder %s19, 0
        %s211 = scalar_select %p210, %s19, 0
        %s212 = sadd.s32 %s211, %s209
        %s213 = smul.addr %s207, 4
        %s214 = sadd.s32 %s212, %s213
        %s215 = smul.addr %s214, 2
        %s216 = scalar_lea.vmem %s0, %s215
      $region20: #{conformer_forward.23} parent=15 // pred_fallthru
        _
      // Predicated region
      $region21: #{conformer_forward.23} parent=15 // pred_check
        %p217 = pneg %p90
      $region22: #{conformer_forward.23} parent=15 // pred_check_branch
        %219 = sbr.rel (%p217) target = $region24
      $region23: #{conformer_forward.23} parent=15 // pred_region
        %p220 = scmp.lt.s32.totalorder %s17, 1
        %s221 = scalar_select %p220, %s17, 1
        %p222 = scmp.lt.s32.totalorder %s18, 3
        %s223 = scalar_select %p222, %s18, 3
        %p224 = scmp.lt.s32.totalorder %s20, 0
        %s225 = scalar_select %p224, %s20, 0
        %s226 = sadd.s32 %s225, %s223
        %s227 = smul.addr %s221, 4
        %s228 = sadd.s32 %s226, %s227
        %s229 = smul.addr %s228, 2
        %s230 = scalar_lea.vmem %s1, %s229
      $region24: #{conformer_forward.23} parent=15 // pred_fallthru
        _
      // Predicated region
      $region25: #{conformer_forward.23} parent=15 // pred_check
        %p231 = pneg %p120
      $region26: #{conformer_forward.23} parent=15 // pred_check_branch
        %233 = sbr.rel (%p231) target = $region28
      $region27: #{conformer_forward.23} parent=15 // pred_region
        %p234 = scmp.lt.s32.totalorder %s17, 1
        %s235 = scalar_select %p234, %s17, 1
        %p236 = scmp.lt.s32.totalorder %s18, 3
        %s237 = scalar_select %p236, %s18, 3
        %p238 = scmp.lt.s32.totalorder %s20, 0
        %s239 = scalar_select %p238, %s20, 0
        %s240 = sadd.s32 %s239, %s237
        %s241 = smul.addr %s235, 4
        %s242 = sadd.s32 %s240, %s241
        %s243 = smul.addr %s242, 2
        %s244 = scalar_lea.vmem %s2, %s243
      $region28: #{conformer_forward.23} parent=15 // pred_fallthru
        _
      // Predicated region
      $region29: #{conformer_forward.23} parent=15 // pred_check
        %p245 = pneg %p148
      $region30: #{conformer_forward.23} parent=15 // pred_check_branch
        %247 = sbr.rel (%p245) target = $region32
      $region31: #{conformer_forward.23} parent=15 // pred_region
        %p248 = scmp.lt.s32.totalorder %s17, 1
        %s249 = scalar_select %p248, %s17, 1
        %p250 = scmp.lt.s32.totalorder %s20, 0
        %s251 = scalar_select %p250, %s20, 0
        %s252 = sadd.s32 %s251, %s249
        %s253 = scalar_lea.vmem %s3, %s252
      $region32: #{conformer_forward.23} parent=15 // pred_fallthru
        _
    $region16: #{conformer_forward.23} parent=5 // pred_fallthru
      _
    %p254 = scmp.le.s32.totalorder 1, %s10
    %p255 = scmp.lt.s32.totalorder %s10, 9
    %p256 = pnand %p254, %p255
    %p257 = pneg %p256
    // Predicated region
    $region33: #{conformer_forward.23} parent=5 // pred_check
      _
    $region34: #{conformer_forward.23} parent=5 // pred_check_branch
      %259 = sbr.rel (%p256) target = $region36
    $region35: #{conformer_forward.23} parent=5 // pred_region
      %s260 = ssub.s32 %s10, 1
      %p261 = scmp.lt.s32.totalorder %s21, 1
      %s262 = scalar_select %p261, %s21, 1
      %p263 = scmp.lt.s32.totalorder %s22, 3
      %s264 = scalar_select %p263, %s22, 3
      %p265 = scmp.lt.s32.totalorder %s23, 0
      %s266 = scalar_select %p265, %s23, 0
      %s267 = sadd.s32 %s266, %s264
      %s268 = smul.addr %s262, 4
      %s269 = sadd.s32 %s267, %s268
      %s270 = smul.addr %s269, 2
      %s271 = scalar_lea.vmem %s0, %s270
      %p272 = pneg %p66
      %p273 = pneg %p63
      %p274 = scmp.lt.s32.totalorder %s21, 1
      %s275 = scalar_select %p274, %s21, 1
      %p276 = scmp.lt.s32.totalorder %s22, 3
      %s277 = scalar_select %p276, %s22, 3
      %p278 = scmp.lt.s32.totalorder %s24, 0
      %s279 = scalar_select %p278, %s24, 0
      %s280 = sadd.s32 %s279, %s277
      %s281 = smul.addr %s275, 4
      %s282 = sadd.s32 %s280, %s281
      %s283 = smul.addr %s282, 2
      %s284 = scalar_lea.vmem %s1, %s283
      %p285 = pneg %p96
      %p286 = pneg %p93
      %p287 = scmp.lt.s32.totalorder %s21, 1
      %s288 = scalar_select %p287, %s21, 1
      %p289 = scmp.lt.s32.totalorder %s22, 3
      %s290 = scalar_select %p289, %s22, 3
      %p291 = scmp.lt.s32.totalorder %s24, 0
      %s292 = scalar_select %p291, %s24, 0
      %s293 = sadd.s32 %s292, %s290
      %s294 = smul.addr %s288, 4
      %s295 = sadd.s32 %s293, %s294
      %s296 = smul.addr %s295, 2
      %s297 = scalar_lea.vmem %s2, %s296
      %p298 = pneg %p126
      %p299 = pneg %p123
      %p300 = scmp.lt.s32.totalorder %s21, 1
      %s301 = scalar_select %p300, %s21, 1
      %p302 = scmp.lt.s32.totalorder %s24, 0
      %s303 = scalar_select %p302, %s24, 0
      %s304 = sadd.s32 %s303, %s301
      %s305 = scalar_lea.vmem %s3, %s304
      %p306 = pneg %p154
      %p307 = pneg %p151
      %p308 = pneg %p184
      %p309 = pneg %p181
      %p310 = scmp.lt.s32.totalorder %s21, 1
      %s311 = scalar_select %p310, %s21, 1
      %p312 = scmp.lt.s32.totalorder %s22, 3
      %s313 = scalar_select %p312, %s22, 3
      %p314 = scmp.lt.s32.totalorder %s23, 0
      %s315 = scalar_select %p314, %s23, 0
      %s316 = sadd.s32 %s315, %s313
      %s317 = smul.addr %s311, 4
      %s318 = sadd.s32 %s316, %s317
      %s319 = smul.addr %s318, 2
      %s320 = scalar_lea.vmem %s4, %s319
      %p321 = scmp.lt.s32.totalorder %s21, 1
      %s322 = scalar_select %p321, %s21, 1
      %p323 = scmp.lt.s32.totalorder %s22, 3
      %s324 = scalar_select %p323, %s22, 3
      %p325 = scmp.lt.s32.totalorder %s23, 0
      %s326 = scalar_select %p325, %s23, 0
      %s327 = sadd.s32 %s326, %s324
      %s328 = smul.addr %s322, 4
      %s329 = sadd.s32 %s327, %s328
      %s330 = smul.addr %s329, 2
      %s331 = scalar_lea.vmem %s0, %s330
      %p332 = scmp.lt.s32.totalorder %s21, 1
      %s333 = scalar_select %p332, %s21, 1
      %p334 = scmp.lt.s32.totalorder %s22, 3
      %s335 = scalar_select %p334, %s22, 3
      %p336 = scmp.lt.s32.totalorder %s24, 0
      %s337 = scalar_select %p336, %s24, 0
      %s338 = sadd.s32 %s337, %s335
      %s339 = smul.addr %s333, 4
      %s340 = sadd.s32 %s338, %s339
      %s341 = smul.addr %s340, 2
      %s342 = scalar_lea.vmem %s1, %s341
      %p343 = scmp.lt.s32.totalorder %s21, 1
      %s344 = scalar_select %p343, %s21, 1
      %p345 = scmp.lt.s32.totalorder %s22, 3
      %s346 = scalar_select %p345, %s22, 3
      %p347 = scmp.lt.s32.totalorder %s24, 0
      %s348 = scalar_select %p347, %s24, 0
      %s349 = sadd.s32 %s348, %s346
      %s350 = smul.addr %s344, 4
      %s351 = sadd.s32 %s349, %s350
      %s352 = smul.addr %s351, 2
      %s353 = scalar_lea.vmem %s2, %s352
      %p354 = scmp.lt.s32.totalorder %s21, 1
      %s355 = scalar_select %p354, %s21, 1
      %p356 = scmp.lt.s32.totalorder %s24, 0
      %s357 = scalar_select %p356, %s24, 0
      %s358 = sadd.s32 %s357, %s355
      %s359 = scalar_lea.vmem %s3, %s358
      %p360 = scmp.lt.s32.totalorder %s21, 1
      %s361 = scalar_select %p360, %s21, 1
      %p362 = scmp.lt.s32.totalorder %s22, 3
      %s363 = scalar_select %p362, %s22, 3
      %p364 = scmp.lt.s32.totalorder %s23, 0
      %s365 = scalar_select %p364, %s23, 0
      %s366 = sadd.s32 %s365, %s363
      %s367 = smul.addr %s361, 4
      %s368 = sadd.s32 %s366, %s367
      %s369 = smul.addr %s368, 2
      %s370 = scalar_lea.vmem %s4, %s369
      %p372 = scmp.eq.s32.totalorder %s24, 0
      // Predicated region
      $region37: #{conformer_forward.23} parent=35 // pred_check
        %p373 = pneg %p372
      $region38: #{conformer_forward.23} parent=35 // pred_check_branch
        %375 = sbr.rel (%p373) target = $region40
      $region39: #{conformer_forward.23} parent=35 // pred_region
        %vm376 = vcmask 3072
        %377 = vst.msk [vmem:[#allocation2] sm:$0xf] %vm376, -1e+30
        %378 = vst.msk [vmem:[#allocation3] sm:$0xf] %vm376, 0.0
        %vm379 = vcmask 60416
        %380 = vst.msk [vmem:[#allocation4] sm:$0xf] %vm379, 0.0
      $region40: #{conformer_forward.23} parent=35 // pred_fallthru
        _
      %v381 = vld [vmem:[%s331] sm:$0x3]
      %v382 = vld [vmem:[%s342] sm:$0x3]
      %v383 = vld [vmem:[%s353] sm:$0x3]
      %v384 = vld [vmem:[%s359] sm:$0x1]
      %v386 = vperm.slane %v384, 0
      %vm388 = vcmask 64512
      %v390 = vsel %vm388, %v381, 0
      %v393 = vsel %vm388, %v382, 0
      %395 = vmatpush.bf16.xpose.msra.mxu0 0
      %396 = vmatpush.bf16.xpose.msra.mxu0 0
      %397 = vmatpush.bf16.xpose.msra.mxu0 0
      %398 = vmatpush.bf16.xpose.msra.mxu0 0
      %399 = vmatpush.bf16.xpose.msra.mxu0 0
      %400 = vmatpush.bf16.xpose.msra.mxu0 0
      %401 = vmatpush.bf16.xpose.msra.mxu0 0
      %402 = vmatpush.bf16.xpose.msra.mxu0 %v393
      %403 = vmatmul.bf16.gmra.mxu0 %v390
      %v404 = vpop.f32.mrf.mxu0
      %v405 = vadd.f32 %v386, %v404
      %v406 = vpop.f32.mrf.mxu0
      %407 = vdwg.mxu0
      %v408 = vld [vmem:[#allocation2] sm:$0xf]
      %vm409 = vcmask 27648
      %v410 = vsel %vm409, %v405, -inf
      %411 = vmax.xlane.f32.xlu0 %v410
      %v412 = vpop.xlane.xlu0 %411
      %v413 = vmax.f32 %v408, %v412
      %v414 = vsub.f32 %v408, %v413
      %v415 = vmul.f32 %v414, 1.442695
      %v416 = vpow.pop %v415
      %418 = vset.pattern.permute.xlu0 0
      %419 = vperm.xlu0 %418, %v413
      %v420 = vpop.permute.xlu0 %419
      %v422 = vsub.f32 %v405, %v420
      %v423 = vmul.f32 %v422, 1.442695
      %v424 = vpow.pop %v423
      %v425 = vld [vmem:[#allocation3] sm:$0xf]
      %v426 = vmul.f32 %v416, %v425
      %v427 = vsel %vm409, %v424, 0.0
      %428 = vadd.xlane.f32.xlu0 %v427
      %v429 = vpop.xlane.xlu0 %428
      %v430 = vadd.f32 %v426, %v429
      %vm431 = vcmask 3072
      %432 = vst.msk [vmem:[#allocation3] sm:$0xf] %vm431, %v430
      %v433 = vld [vmem:[#allocation4] sm:$0xf]
      %435 = vset.pattern.permute.xlu0 0
      %436 = vperm.xlu0 %435, %v416
      %v437 = vpop.permute.xlu0 %436
      %v439 = vmul.f32 %v437, %v433
      %v440 = vpack.c.bf16 %v424, %v424
      %vm441 = vcmask 31744
      %v443 = vsel %vm441, %v440, 0
      %vm445 = vcmask 1041408
      %v447 = vsel %vm445, %v383, 0
      %449 = vmatpush.bf16.msra.mxu0 0
      %450 = vmatpush.bf16.msra.mxu0 0
      %451 = vmatpush.bf16.msra.mxu0 0
      %452 = vmatpush.bf16.msra.mxu0 0
      %453 = vmatpush.bf16.msra.mxu0 0
      %454 = vmatpush.bf16.msra.mxu0 0
      %455 = vmatpush.bf16.msra.mxu0 0
      %456 = vmatpush.bf16.msra.mxu0 %v447
      %457 = vmatmul.bf16.gmra.mxu0 %v443
      %v458 = vpop.f32.mrf.mxu0
      %v459 = vadd.f32 0.0, %v458
      %v460 = vpop.f32.mrf.mxu0
      %461 = vdwg.mxu0
      %v462 = vadd.f32 %v439, %v459
      %vm463 = vcmask 60416
      %464 = vst.msk [vmem:[#allocation4] sm:$0xf] %vm463, %v462
      %465 = vst.msk [vmem:[#allocation2] sm:$0xf] %vm431, %v413
      // Predicated region
      $region41: #{conformer_forward.23} parent=35 // pred_check
        %p466 = pneg %p372
      $region42: #{conformer_forward.23} parent=35 // pred_check_branch
        %468 = sbr.rel (%p466) target = $region44
      $region43: #{conformer_forward.23} parent=35 // pred_region
        %v469 = vld [vmem:[#allocation4] sm:$0xf]
        %v470 = vld [vmem:[#allocation3] sm:$0xf]
        %472 = vset.pattern.permute.xlu0 0
        %473 = vperm.xlu0 %472, %v470
        %v474 = vpop.permute.xlu0 %473
        %v476 = vrcp.pop %v474
        %v477 = vmul.f32 %v474, %v476
        %v478 = vsub.f32 1.0, %v477
        %v479 = vmul.f32 %v476, %v478
        %v480 = vadd.f32 %v476, %v479
        %vm481 = vweird.f32 %v474
        %vm482 = vweird.f32 %v476
        %vm483 = vmor %vm481, %vm482
        %v484 = vsel %vm483, %v476, %v480
        %v485 = vand.u32 2147483647, %v474
        %vm486 = vcmp.eq.f32.partialorder %v485, 8.507059e+37
        %v487 = vand.u32 %v474, 2147483648
        %v488 = vor.u32 1.1754944e-38, %v487
        %v489 = vsel %vm486, %v488, %v484
        %v490 = vmul.f32 %v469, %v489
        %v491 = vpack.c.bf16 %v490, %v490
        %vm492 = vcmask 58368
        %493 = vst.msk [vmem:[%s370] sm:$0x3] %vm492, %v491
      $region44: #{conformer_forward.23} parent=35 // pred_fallthru
        _
      %p494 = scmp.lt.s32.totalorder %s21, 1
      %s495 = scalar_select %p494, %s21, 1
      %p496 = scmp.lt.s32.totalorder %s22, 3
      %s497 = scalar_select %p496, %s22, 3
      %p498 = scmp.lt.s32.totalorder %s23, 0
      %s499 = scalar_select %p498, %s23, 0
      %s500 = sadd.s32 %s499, %s497
      %s501 = smul.addr %s495, 4
      %s502 = sadd.s32 %s500, %s501
      %s503 = smul.addr %s502, 2
      %s504 = scalar_lea.vmem %s4, %s503
      // Predicated region
      $region45: #{conformer_forward.23} parent=35 // pred_check
        %p505 = pneg %p181
      $region46: #{conformer_forward.23} parent=35 // pred_check_branch
        %507 = sbr.rel (%p505) target = $region48
      $region47: #{conformer_forward.23} parent=35 // pred_region
        _
      $region48: #{conformer_forward.23} parent=35 // pred_fallthru
        _
    $region36: #{conformer_forward.23} parent=5 // pred_fallthru
      _
    %p508 = scmp.le.s32.totalorder 2, %s10
    // Predicated region
    $region49: #{conformer_forward.23} parent=5 // pred_check
      %p509 = pneg %p508
    $region50: #{conformer_forward.23} parent=5 // pred_check_branch
      %511 = sbr.rel (%p509) target = $region52
    $region51: #{conformer_forward.23} parent=5 // pred_region
      %s512 = ssub.s32 %s10, 2
      // Predicated region
      $region53: #{conformer_forward.23} parent=51 // pred_check
        %p513 = pneg %p187
      $region54: #{conformer_forward.23} parent=51 // pred_check_branch
        %515 = sbr.rel (%p513) target = $region56
      $region55: #{conformer_forward.23} parent=51 // pred_region
        %p516 = scmp.lt.s32.totalorder %s25, 1
        %s517 = scalar_select %p516, %s25, 1
        %p518 = scmp.lt.s32.totalorder %s26, 3
        %s519 = scalar_select %p518, %s26, 3
        %p520 = scmp.lt.s32.totalorder %s27, 0
        %s521 = scalar_select %p520, %s27, 0
        %s522 = sadd.s32 %s521, %s519
        %s523 = smul.addr %s517, 4
        %s524 = sadd.s32 %s522, %s523
        %s525 = smul.addr %s524, 2
        %s526 = scalar_lea.vmem %s4, %s525
      $region56: #{conformer_forward.23} parent=51 // pred_fallthru
        _
    $region52: #{conformer_forward.23} parent=5 // pred_fallthru
      _
  $region6: #{conformer_forward.23} parent=0 // loop_footer
    %s14 = sadd.s32 1, %s10
  $region7: #{conformer_forward.23} parent=0 // loop_footer_branch
    %9 = sbr.rel target = $region3
  $region8: #{conformer_forward.23} parent=0 // loop_exit
    _

// kernel: conformer_forward.24
$region0: #{conformer_forward.24}
  #allocation0 [shape = 'u32[]', space=smem, size = 0x4, offset = 0x4, fixed_abs, tag = 'smem constant byte address 0x4 - core index']
  #allocation1 [shape = 'u32[72,128]{1,0:T(1,128)}', space=vmem, size = 0x9000, scoped, tag = 'internal scratch']
  #allocation2 [shape = 'f32[4,32]{1,0:T(4,128)}', space=vmem, size = 0x800, scoped, tag = 'scratch operand']
  %s0 = inlined_call_operand.vmem [shape: bf16[2,4,4,8], index: 0, kind: input, shape index: {}]
  %s1 = inlined_call_operand.vmem [shape: bf16[4,8,32], index: 1, kind: input, shape index: {}]
  %s2 = inlined_call_operand.vmem [shape: f32[1,32], index: 2, kind: input, shape index: {}]
  %s3 = inlined_call_operand.vmem [shape: f32[2,4,32], index: 3, kind: input, shape index: {}]
  %s4 = inlined_call_operand.vmem [shape: f32[2,4,32], index: 4, kind: output, shape index: {}]
  %s5 = sld [smem:[#allocation0]]
  $region57: #{conformer_forward.24} parent=0
    _
  %s7 = ssub.s32 1, %s5
  %s8 = scalar_select 0, %s7, %s5
  loop: start=0, step=1, limit=10
  $region2: #{conformer_forward.24} parent=0 // loop_pre_header
    _
  $region3: #{conformer_forward.24} parent=0 // loop_header
    %s10 = sphi 0, %s14
    %p11 = scmp.ge.s32.totalorder %s10, 10
    %s17 = sphi 0, %s36
    %s18 = sphi 0, %s32
    %s19 = sphi 0, %s28
    %s20 = sphi 0, %s17
    %s21 = sphi 0, %s18
    %s22 = sphi 0, %s19
    %s23 = sphi 0, %s20
    %s24 = sphi 0, %s21
    %s25 = sphi 0, %s22
    %s43 = sphi 0, %s45
    %s46 = sphi 0, %s43
    %s47 = sphi 0, %s46
    %s63 = sphi 0, %s47
    %s69 = sphi 0, %s71
    %s72 = sphi 0, %s69
    %s73 = sphi 0, %s72
    %s89 = sphi 0, %s73
    %s93 = sphi 0, %s93
    %s95 = sphi 0, %s93
    %s96 = sphi 0, %s95
    %s110 = sphi 0, %s96
    %s118 = sphi 0, %s120
    %s121 = sphi 0, %s118
    %s122 = sphi 0, %s121
    %s138 = sphi 0, %s122
    %s146 = sphi 0, %s148
    %s149 = sphi 0, %s146
    %s150 = sphi 0, %s149
    %s166 = sphi 0, %s150
  $region4: #{conformer_forward.24} parent=0 // loop_header_branch
    %13 = sbr.rel (%p11) target = $region8
  $region5: #{conformer_forward.24} parent=0 // loop_body
    %s15 = ssub.s32 %s10, 1
    %s16 = ssub.s32 %s10, 2
    %s26 = sadd.s32 1, %s19
    %p27 = scmp.ge.s32.totalorder %s26, 4
    %s28 = scalar_select %p27, 0, %s26
    %s29 = sadd.s32 1, %s18
    %s30 = scalar_select %p27, %s29, %s18
    %p31 = scmp.ge.s32.totalorder %s30, 1
    %s32 = scalar_select %p31, 0, %s30
    %s33 = sadd.s32 1, %s17
    %s34 = scalar_select %p31, %s33, %s17
    %p35 = scmp.ge.s32.totalorder %s34, 2
    %s36 = scalar_select %p35, 0, %s34
    %s37 = ssub.s32 %s17, %s36
    %s38 = ssub.s32 %s19, %s28
    %s39 = sor.u32 %s37, %s38
    %s40 = ssub.s32 %s18, %s32
    %s41 = sor.u32 %s39, %s40
    %p42 = scmp.eq.s32.totalorder %s41, 0
    %s44 = sadd.s32 %s43, 1
    %s45 = scalar_select %p42, %s43, %s44
    %p48 = pneg %p42
    %p49 = scmp.eq.s32.totalorder %s10, 7
    %p50 = por %p48, %p49
    %p51 = scmp.ne.s32.totalorder %s43, %s46
    %p52 = scmp.eq.s32.totalorder %s10, 0
    %p53 = por %p51, %p52
    %p54 = scmp.ne.s32.totalorder %s43, %s46
    %p55 = scmp.eq.s32.totalorder %s15, 7
    %p56 = por %p54, %p55
    %p57 = scmp.ne.s32.totalorder %s46, %s47
    %p58 = scmp.eq.s32.totalorder %s15, 0
    %p59 = por %p57, %p58
    %p60 = scmp.ne.s32.totalorder %s46, %s47
    %p61 = scmp.eq.s32.totalorder %s16, 7
    %p62 = por %p60, %p61
    %p64 = scmp.ne.s32.totalorder %s47, %s63
    %p65 = scmp.eq.s32.totalorder %s16, 0
    %p66 = por %p64, %p65
    %s67 = ssub.s32 %s19, %s28
    %p68 = scmp.eq.s32.totalorder %s67, 0
    %s70 = sadd.s32 %s69, 1
    %s71 = scalar_select %p68, %s69, %s70
    %p74 = pneg %p68
    %p75 = scmp.eq.s32.totalorder %s10, 7
    %p76 = por %p74, %p75
    %p77 = scmp.ne.s32.totalorder %s69, %s72
    %p78 = scmp.eq.s32.totalorder %s10, 0
    %p79 = por %p77, %p78
    %p80 = scmp.ne.s32.totalorder %s69, %s72
    %p81 = scmp.eq.s32.totalorder %s15, 7
    %p82 = por %p80, %p81
    %p83 = scmp.ne.s32.totalorder %s72, %s73
    %p84 = scmp.eq.s32.totalorder %s15, 0
    %p85 = por %p83, %p84
    %p86 = scmp.ne.s32.totalorder %s72, %s73
    %p87 = scmp.eq.s32.totalorder %s16, 7
    %p88 = por %p86, %p87
    %p90 = scmp.ne.s32.totalorder %s73, %s89
    %p91 = scmp.eq.s32.totalorder %s16, 0
    %p92 = por %p90, %p91
    %s94 = sadd.s32 %s93, 1
    %p97 = scmp.eq.s32.totalorder %s10, 7
    %p98 = scmp.ne.s32.totalorder %s93, %s95
    %p99 = scmp.eq.s32.totalorder %s10, 0
    %p100 = por %p98, %p99
    %p101 = scmp.ne.s32.totalorder %s93, %s95
    %p102 = scmp.eq.s32.totalorder %s15, 7
    %p103 = por %p101, %p102
    %p104 = scmp.ne.s32.totalorder %s95, %s96
    %p105 = scmp.eq.s32.totalorder %s15, 0
    %p106 = por %p104, %p105
    %p107 = scmp.ne.s32.totalorder %s95, %s96
    %p108 = scmp.eq.s32.totalorder %s16, 7
    %p109 = por %p107, %p108
    %p111 = scmp.ne.s32.totalorder %s96, %s110
    %p112 = scmp.eq.s32.totalorder %s16, 0
    %p113 = por %p111, %p112
    %s114 = ssub.s32 %s17, %s36
    %s115 = ssub.s32 %s18, %s32
    %s116 = sor.u32 %s114, %s115
    %p117 = scmp.eq.s32.totalorder %s116, 0
    %s119 = sadd.s32 %s118, 1
    %s120 = scalar_select %p117, %s118, %s119
    %p123 = pneg %p117
    %p124 = scmp.eq.s32.totalorder %s10, 7
    %p125 = por %p123, %p124
    %p126 = scmp.ne.s32.totalorder %s118, %s121
    %p127 = scmp.eq.s32.totalorder %s10, 0
    %p128 = por %p126, %p127
    %p129 = scmp.ne.s32.totalorder %s118, %s121
    %p130 = scmp.eq.s32.totalorder %s15, 7
    %p131 = por %p129, %p130
    %p132 = scmp.ne.s32.totalorder %s121, %s122
    %p133 = scmp.eq.s32.totalorder %s15, 0
    %p134 = por %p132, %p133
    %p135 = scmp.ne.s32.totalorder %s121, %s122
    %p136 = scmp.eq.s32.totalorder %s16, 7
    %p137 = por %p135, %p136
    %p139 = scmp.ne.s32.totalorder %s122, %s138
    %p140 = scmp.eq.s32.totalorder %s16, 0
    %p141 = por %p139, %p140
    %s142 = ssub.s32 %s17, %s36
    %s143 = ssub.s32 %s18, %s32
    %s144 = sor.u32 %s142, %s143
    %p145 = scmp.eq.s32.totalorder %s144, 0
    %s147 = sadd.s32 %s146, 1
    %s148 = scalar_select %p145, %s146, %s147
    %p151 = pneg %p145
    %p152 = scmp.eq.s32.totalorder %s10, 7
    %p153 = por %p151, %p152
    %p154 = scmp.ne.s32.totalorder %s146, %s149
    %p155 = scmp.eq.s32.totalorder %s10, 0
    %p156 = por %p154, %p155
    %p157 = scmp.ne.s32.totalorder %s146, %s149
    %p158 = scmp.eq.s32.totalorder %s15, 7
    %p159 = por %p157, %p158
    %p160 = scmp.ne.s32.totalorder %s149, %s150
    %p161 = scmp.eq.s32.totalorder %s15, 0
    %p162 = por %p160, %p161
    %p163 = scmp.ne.s32.totalorder %s149, %s150
    %p164 = scmp.eq.s32.totalorder %s16, 7
    %p165 = por %p163, %p164
    %p167 = scmp.ne.s32.totalorder %s150, %s166
    %p168 = scmp.eq.s32.totalorder %s16, 0
    %p169 = por %p167, %p168
    %p170 = scmp.le.s32.totalorder 1, %s10
    %p171 = scmp.lt.s32.totalorder %s10, 9
    %p172 = pnand %p170, %p171
    %p173 = pneg %p172
    // Predicated region
    $region9: #{conformer_forward.24} parent=5 // pred_check
      _
    $region10: #{conformer_forward.24} parent=5 // pred_check_branch
      %175 = sbr.rel (%p172) target = $region12
    $region11: #{conformer_forward.24} parent=5 // pred_region
      %s176 = ssub.s32 %s10, 1
      // Predicated region
      $region13: #{conformer_forward.24} parent=11 // pred_check
        %p177 = pneg %p106
      $region14: #{conformer_forward.24} parent=11 // pred_check_branch
        %179 = sbr.rel (%p177) target = $region16
      $region15: #{conformer_forward.24} parent=11 // pred_region
        _
      $region16: #{conformer_forward.24} parent=11 // pred_fallthru
        _
    $region12: #{conformer_forward.24} parent=5 // pred_fallthru
      _
    %p180 = scmp.lt.s32.totalorder %s10, 8
    // Predicated region
    $region17: #{conformer_forward.24} parent=5 // pred_check
      %p181 = pneg %p180
    $region18: #{conformer_forward.24} parent=5 // pred_check_branch
      %183 = sbr.rel (%p181) target = $region20
    $region19: #{conformer_forward.24} parent=5 // pred_region
      // Predicated region
      $region21: #{conformer_forward.24} parent=19 // pred_check
        %p184 = pneg %p53
      $region22: #{conformer_forward.24} parent=19 // pred_check_branch
        %186 = sbr.rel (%p184) target = $region24
      $region23: #{conformer_forward.24} parent=19 // pred_region
        %p187 = scmp.lt.s32.totalorder %s17, 1
        %s188 = scalar_select %p187, %s17, 1
        %p189 = scmp.lt.s32.totalorder %s19, 3
        %s190 = scalar_select %p189, %s19, 3
        %p191 = scmp.lt.s32.totalorder %s18, 0
        %s192 = scalar_select %p191, %s18, 0
        %s193 = sadd.s32 %s192, %s190
        %s194 = smul.addr %s188, 4
        %s195 = sadd.s32 %s193, %s194
        %s196 = smul.addr %s195, 2
        %s197 = scalar_lea.vmem %s0, %s196
      $region24: #{conformer_forward.24} parent=19 // pred_fallthru
        _
      // Predicated region
      $region25: #{conformer_forward.24} parent=19 // pred_check
        %p198 = pneg %p79
      $region26: #{conformer_forward.24} parent=19 // pred_check_branch
        %200 = sbr.rel (%p198) target = $region28
      $region27: #{conformer_forward.24} parent=19 // pred_region
        %p201 = scmp.lt.s32.totalorder %s19, 3
        %s202 = scalar_select %p201, %s19, 3
        %s203 = smul.addr %s202, 4
        %s204 = scalar_lea.vmem %s1, %s203
      $region28: #{conformer_forward.24} parent=19 // pred_fallthru
        _
      // Predicated region
      $region29: #{conformer_forward.24} parent=19 // pred_check
        %p205 = pneg %p128
      $region30: #{conformer_forward.24} parent=19 // pred_check_branch
        %207 = sbr.rel (%p205) target = $region32
      $region31: #{conformer_forward.24} parent=19 // pred_region
        %p208 = scmp.lt.s32.totalorder %s17, 1
        %s209 = scalar_select %p208, %s17, 1
        %p210 = scmp.lt.s32.totalorder %s18, 0
        %s211 = scalar_select %p210, %s18, 0
        %s212 = sadd.s32 %s211, %s209
        %s213 = smul.addr %s212, 4
        %s214 = scalar_lea.vmem %s3, %s213
      $region32: #{conformer_forward.24} parent=19 // pred_fallthru
        _
    $region20: #{conformer_forward.24} parent=5 // pred_fallthru
      _
    %p215 = scmp.le.s32.totalorder 1, %s10
    %p216 = scmp.lt.s32.totalorder %s10, 9
    %p217 = pnand %p215, %p216
    %p218 = pneg %p217
    // Predicated region
    $region33: #{conformer_forward.24} parent=5 // pred_check
      _
    $region34: #{conformer_forward.24} parent=5 // pred_check_branch
      %220 = sbr.rel (%p217) target = $region36
    $region35: #{conformer_forward.24} parent=5 // pred_region
      %s221 = ssub.s32 %s10, 1
      %p222 = scmp.lt.s32.totalorder %s20, 1
      %s223 = scalar_select %p222, %s20, 1
      %p224 = scmp.lt.s32.totalorder %s22, 3
      %s225 = scalar_select %p224, %s22, 3
      %p226 = scmp.lt.s32.totalorder %s21, 0
      %s227 = scalar_select %p226, %s21, 0
      %s228 = sadd.s32 %s227, %s225
      %s229 = smul.addr %s223, 4
      %s230 = sadd.s32 %s228, %s229
      %s231 = smul.addr %s230, 2
      %s232 = scalar_lea.vmem %s0, %s231
      %p233 = pneg %p59
      %p234 = pneg %p56
      %p235 = scmp.lt.s32.totalorder %s22, 3
      %s236 = scalar_select %p235, %s22, 3
      %s237 = smul.addr %s236, 4
      %s238 = scalar_lea.vmem %s1, %s237
      %p239 = pneg %p85
      %p240 = pneg %p82
      %p241 = pneg %p106
      %p242 = pneg %p103
      %p243 = scmp.lt.s32.totalorder %s20, 1
      %s244 = scalar_select %p243, %s20, 1
      %p245 = scmp.lt.s32.totalorder %s21, 0
      %s246 = scalar_select %p245, %s21, 0
      %s247 = sadd.s32 %s246, %s244
      %s248 = smul.addr %s247, 4
      %s249 = scalar_lea.vmem %s3, %s248
      %p250 = pneg %p134
      %p251 = pneg %p131
      %p252 = pneg %p162
      %p253 = pneg %p159
      %p254 = scmp.lt.s32.totalorder %s20, 1
      %s255 = scalar_select %p254, %s20, 1
      %p256 = scmp.lt.s32.totalorder %s21, 0
      %s257 = scalar_select %p256, %s21, 0
      %s258 = sadd.s32 %s257, %s255
      %s259 = smul.addr %s258, 4
      %s260 = scalar_lea.vmem %s4, %s259
      %p261 = scmp.lt.s32.totalorder %s20, 1
      %s262 = scalar_select %p261, %s20, 1
      %p263 = scmp.lt.s32.totalorder %s22, 3
      %s264 = scalar_select %p263, %s22, 3
      %p265 = scmp.lt.s32.totalorder %s21, 0
      %s266 = scalar_select %p265, %s21, 0
      %s267 = sadd.s32 %s266, %s264
      %s268 = smul.addr %s262, 4
      %s269 = sadd.s32 %s267, %s268
      %s270 = smul.addr %s269, 2
      %s271 = scalar_lea.vmem %s0, %s270
      %p272 = scmp.lt.s32.totalorder %s22, 3
      %s273 = scalar_select %p272, %s22, 3
      %s274 = smul.addr %s273, 4
      %s275 = scalar_lea.vmem %s1, %s274
      %p276 = scmp.lt.s32.totalorder %s20, 1
      %s277 = scalar_select %p276, %s20, 1
      %p278 = scmp.lt.s32.totalorder %s21, 0
      %s279 = scalar_select %p278, %s21, 0
      %s280 = sadd.s32 %s279, %s277
      %s281 = smul.addr %s280, 4
      %s282 = scalar_lea.vmem %s3, %s281
      %p283 = scmp.lt.s32.totalorder %s20, 1
      %s284 = scalar_select %p283, %s20, 1
      %p285 = scmp.lt.s32.totalorder %s21, 0
      %s286 = scalar_select %p285, %s21, 0
      %s287 = sadd.s32 %s286, %s284
      %s288 = smul.addr %s287, 4
      %s289 = scalar_lea.vmem %s4, %s288
      %p291 = scmp.eq.s32.totalorder %s22, 0
      // Predicated region
      $region37: #{conformer_forward.24} parent=35 // pred_check
        %p292 = pneg %p291
      $region38: #{conformer_forward.24} parent=35 // pred_check_branch
        %294 = sbr.rel (%p292) target = $region40
      $region39: #{conformer_forward.24} parent=35 // pred_region
        %vm295 = vcmask 257024
        %296 = vst.msk [vmem:[#allocation2] sm:$0xf] %vm295, 0.0
      $region40: #{conformer_forward.24} parent=35 // pred_fallthru
        _
      %v297 = vld [vmem:[#allocation2] sm:$0xf]
      %v298 = vld [vmem:[%s271] sm:$0x3]
      %v299 = vld [vmem:[%s275] sm:$0xf]
      %vm300 = vcmask 64512
      %v302 = vsel %vm300, %v298, 0
      %vm304 = vcmask 1043456
      %v306 = vsel %vm304, %v299, 0
      %308 = vmatpush.bf16.msra.mxu0 0
      %309 = vmatpush.bf16.msra.mxu0 0
      %310 = vmatpush.bf16.msra.mxu0 0
      %311 = vmatpush.bf16.msra.mxu0 0
      %312 = vmatpush.bf16.msra.mxu0 0
      %313 = vmatpush.bf16.msra.mxu0 0
      %314 = vmatpush.bf16.msra.mxu0 0
      %315 = vmatpush.bf16.msra.mxu0 %v306
      %316 = vmatmul.bf16.gmra.mxu0 %v302
      %v317 = vpop.f32.mrf.mxu0
      %v318 = vadd.f32 0.0, %v317
      %v319 = vpop.f32.mrf.mxu0
      %320 = vdwg.mxu0
      %v321 = vadd.f32 %v297, %v318
      %vm322 = vcmask 257024
      %323 = vst.msk [vmem:[#allocation2] sm:$0xf] %vm322, %v321
      %p324 = scmp.eq.s32.totalorder %s22, 3
      // Predicated region
      $region41: #{conformer_forward.24} parent=35 // pred_check
        %p325 = pneg %p324
      $region42: #{conformer_forward.24} parent=35 // pred_check_branch
        %327 = sbr.rel (%p325) target = $region44
      $region43: #{conformer_forward.24} parent=35 // pred_region
        %v328 = vld [vmem:[#allocation2] sm:$0xf]
        %v329 = vld [vmem:[%s2] sm:$0x1]
        %v331 = vperm.slane %v329, 0
        %v333 = vadd.f32 %v328, %v331
        %v334 = vld [vmem:[%s282] sm:$0xf]
        %v335 = vadd.f32 %v333, %v334
        %336 = vst.msk [vmem:[%s289] sm:$0xf] %vm322, %v335
      $region44: #{conformer_forward.24} parent=35 // pred_fallthru
        _
      %p337 = scmp.lt.s32.totalorder %s20, 1
      %s338 = scalar_select %p337, %s20, 1
      %p339 = scmp.lt.s32.totalorder %s21, 0
      %s340 = scalar_select %p339, %s21, 0
      %s341 = sadd.s32 %s340, %s338
      %s342 = smul.addr %s341, 4
      %s343 = scalar_lea.vmem %s4, %s342
      // Predicated region
      $region45: #{conformer_forward.24} parent=35 // pred_check
        %p344 = pneg %p159
      $region46: #{conformer_forward.24} parent=35 // pred_check_branch
        %346 = sbr.rel (%p344) target = $region48
      $region47: #{conformer_forward.24} parent=35 // pred_region
        _
      $region48: #{conformer_forward.24} parent=35 // pred_fallthru
        _
    $region36: #{conformer_forward.24} parent=5 // pred_fallthru
      _
    %p347 = scmp.le.s32.totalorder 2, %s10
    // Predicated region
    $region49: #{conformer_forward.24} parent=5 // pred_check
      %p348 = pneg %p347
    $region50: #{conformer_forward.24} parent=5 // pred_check_branch
      %350 = sbr.rel (%p348) target = $region52
    $region51: #{conformer_forward.24} parent=5 // pred_region
      %s351 = ssub.s32 %s10, 2
      // Predicated region
      $region53: #{conformer_forward.24} parent=51 // pred_check
        %p352 = pneg %p165
      $region54: #{conformer_forward.24} parent=51 // pred_check_branch
        %354 = sbr.rel (%p352) target = $region56
      $region55: #{conformer_forward.24} parent=51 // pred_region
        %p355 = scmp.lt.s32.totalorder %s23, 1
        %s356 = scalar_select %p355, %s23, 1
        %p357 = scmp.lt.s32.totalorder %s24, 0
        %s358 = scalar_select %p357, %s24, 0
        %s359 = sadd.s32 %s358, %s356
        %s360 = smul.addr %s359, 4
        %s361 = scalar_lea.vmem %s4, %s360
      $region56: #{conformer_forward.24} parent=51 // pred_fallthru
        _
    $region52: #{conformer_forward.24} parent=5 // pred_fallthru
      _
  $region6: #{conformer_forward.24} parent=0 // loop_footer
    %s14 = sadd.s32 1, %s10
  $region7: #{conformer_forward.24} parent=0 // loop_footer_branch
    %9 = sbr.rel target = $region3
  $region8: #{conformer_forward.24} parent=0 // loop_exit
    _

// kernel: conformer_forward.25
$region0: #{conformer_forward.25}
  #allocation0 [shape = 'u32[]', space=smem, size = 0x4, offset = 0x4, fixed_abs, tag = 'smem constant byte address 0x4 - core index']
  #allocation1 [shape = 'u32[72,128]{1,0:T(1,128)}', space=vmem, size = 0x9000, scoped, tag = 'internal scratch']
  %s0 = inlined_call_operand.vmem [shape: f32[2,4,32], index: 0, kind: input, shape index: {}]
  %s1 = inlined_call_operand.vmem [shape: f32[1,32], index: 1, kind: input, shape index: {}]
  %s2 = inlined_call_operand.vmem [shape: f32[1,32], index: 2, kind: input, shape index: {}]
  %s3 = inlined_call_operand.vmem [shape: bf16[32,64], index: 3, kind: input, shape index: {}]
  %s4 = inlined_call_operand.vmem [shape: f32[1,64], index: 4, kind: input, shape index: {}]
  %s5 = inlined_call_operand.vmem [shape: f32[3,32], index: 5, kind: input, shape index: {}]
  %s6 = inlined_call_operand.vmem [shape: f32[1,32], index: 6, kind: input, shape index: {}]
  %s7 = inlined_call_operand.vmem [shape: f32[1,32], index: 7, kind: input, shape index: {}]
  %s8 = inlined_call_operand.vmem [shape: f32[1,32], index: 8, kind: input, shape index: {}]
  %s9 = inlined_call_operand.vmem [shape: bf16[32,32], index: 9, kind: input, shape index: {}]
  %s10 = inlined_call_operand.vmem [shape: f32[1,32], index: 10, kind: input, shape index: {}]
  %s11 = inlined_call_operand.vmem [shape: f32[2,4,32], index: 11, kind: output, shape index: {}]
  %s12 = sld [smem:[#allocation0]]
  $region77: #{conformer_forward.25} parent=0
    _
  %s14 = ssub.s32 1, %s12
  %s15 = scalar_select 0, %s14, %s12
  loop: start=0, step=1, limit=4
  $region2: #{conformer_forward.25} parent=0 // loop_pre_header
    _
  $region3: #{conformer_forward.25} parent=0 // loop_header
    %s17 = sphi 0, %s21
    %p18 = scmp.ge.s32.totalorder %s17, 4
    %s27 = sphi 0, %s29
    %s30 = sphi 0, %s27
    %s31 = sphi 0, %s30
    %s47 = sphi 0, %s31
    %s51 = sphi 0, %s51
    %s53 = sphi 0, %s51
    %s54 = sphi 0, %s53
    %s68 = sphi 0, %s54
    %s72 = sphi 0, %s72
    %s74 = sphi 0, %s72
    %s75 = sphi 0, %s74
    %s89 = sphi 0, %s75
    %s93 = sphi 0, %s93
    %s95 = sphi 0, %s93
    %s96 = sphi 0, %s95
    %s110 = sphi 0, %s96
    %s114 = sphi 0, %s114
    %s116 = sphi 0, %s114
    %s117 = sphi 0, %s116
    %s131 = sphi 0, %s117
    %s135 = sphi 0, %s135
    %s137 = sphi 0, %s135
    %s138 = sphi 0, %s137
    %s152 = sphi 0, %s138
    %s156 = sphi 0, %s156
    %s158 = sphi 0, %s156
    %s159 = sphi 0, %s158
    %s173 = sphi 0, %s159
    %s177 = sphi 0, %s177
    %s179 = sphi 0, %s177
    %s180 = sphi 0, %s179
    %s194 = sphi 0, %s180
    %s198 = sphi 0, %s198
    %s200 = sphi 0, %s198
    %s201 = sphi 0, %s200
    %s215 = sphi 0, %s201
    %s219 = sphi 0, %s219
    %s221 = sphi 0, %s219
    %s222 = sphi 0, %s221
    %s236 = sphi 0, %s222
    %s240 = sphi 0, %s240
    %s242 = sphi 0, %s240
    %s243 = sphi 0, %s242
    %s257 = sphi 0, %s243
    %s263 = sphi 0, %s265
    %s266 = sphi 0, %s263
    %s267 = sphi 0, %s266
    %s283 = sphi 0, %s267
  $region4: #{conformer_forward.25} parent=0 // loop_header_branch
    %20 = sbr.rel (%p18) target = $region8
  $region5: #{conformer_forward.25} parent=0 // loop_body
    %s22 = ssub.s32 %s17, 1
    %s23 = ssub.s32 %s17, 2
    %s24 = sadd.s32 %s17, 1
    %s25 = ssub.s32 %s17, %s24
    %p26 = scmp.eq.s32.totalorder %s25, 0
    %s28 = sadd.s32 %s27, 1
    %s29 = scalar_select %p26, %s27, %s28
    %p32 = pneg %p26
    %p33 = scmp.eq.s32.totalorder %s17, 1
    %p34 = por %p32, %p33
    %p35 = scmp.ne.s32.totalorder %s27, %s30
    %p36 = scmp.eq.s32.totalorder %s17, 0
    %p37 = por %p35, %p36
    %p38 = scmp.ne.s32.totalorder %s27, %s30
    %p39 = scmp.eq.s32.totalorder %s22, 1
    %p40 = por %p38, %p39
    %p41 = scmp.ne.s32.totalorder %s30, %s31
    %p42 = scmp.eq.s32.totalorder %s22, 0
    %p43 = por %p41, %p42
    %p44 = scmp.ne.s32.totalorder %s30, %s31
    %p45 = scmp.eq.s32.totalorder %s23, 1
    %p46 = por %p44, %p45
    %p48 = scmp.ne.s32.totalorder %s31, %s47
    %p49 = scmp.eq.s32.totalorder %s23, 0
    %p50 = por %p48, %p49
    %s52 = sadd.s32 %s51, 1
    %p55 = scmp.eq.s32.totalorder %s17, 1
    %p56 = scmp.ne.s32.totalorder %s51, %s53
    %p57 = scmp.eq.s32.totalorder %s17, 0
    %p58 = por %p56, %p57
    %p59 = scmp.ne.s32.totalorder %s51, %s53
    %p60 = scmp.eq.s32.totalorder %s22, 1
    %p61 = por %p59, %p60
    %p62 = scmp.ne.s32.totalorder %s53, %s54
    %p63 = scmp.eq.s32.totalorder %s22, 0
    %p64 = por %p62, %p63
    %p65 = scmp.ne.s32.totalorder %s53, %s54
    %p66 = scmp.eq.s32.totalorder %s23, 1
    %p67 = por %p65, %p66
    %p69 = scmp.ne.s32.totalorder %s54, %s68
    %p70 = scmp.eq.s32.totalorder %s23, 0
    %p71 = por %p69, %p70
    %s73 = sadd.s32 %s72, 1
    %p76 = scmp.eq.s32.totalorder %s17, 1
    %p77 = scmp.ne.s32.totalorder %s72, %s74
    %p78 = scmp.eq.s32.totalorder %s17, 0
    %p79 = por %p77, %p78
    %p80 = scmp.ne.s32.totalorder %s72, %s74
    %p81 = scmp.eq.s32.totalorder %s22, 1
    %p82 = por %p80, %p81
    %p83 = scmp.ne.s32.totalorder %s74, %s75
    %p84 = scmp.eq.s32.totalorder %s22, 0
    %p85 = por %p83, %p84
    %p86 = scmp.ne.s32.totalorder %s74, %s75
    %p87 = scmp.eq.s32.totalorder %s23, 1
    %p88 = por %p86, %p87
    %p90 = scmp.ne.s32.totalorder %s75, %s89
    %p91 = scmp.eq.s32.totalorder %s23, 0
    %p92 = por %p90, %p91
    %s94 = sadd.s32 %s93, 1
    %p97 = scmp.eq.s32.totalorder %s17, 1
    %p98 = scmp.ne.s32.totalorder %s93, %s95
    %p99 = scmp.eq.s32.totalorder %s17, 0
    %p100 = por %p98, %p99
    %p101 = scmp.ne.s32.totalorder %s93, %s95
    %p102 = scmp.eq.s32.totalorder %s22, 1
    %p103 = por %p101, %p102
    %p104 = scmp.ne.s32.totalorder %s95, %s96
    %p105 = scmp.eq.s32.totalorder %s22, 0
    %p106 = por %p104, %p105
    %p107 = scmp.ne.s32.totalorder %s95, %s96
    %p108 = scmp.eq.s32.totalorder %s23, 1
    %p109 = por %p107, %p108
    %p111 = scmp.ne.s32.totalorder %s96, %s110
    %p112 = scmp.eq.s32.totalorder %s23, 0
    %p113 = por %p111, %p112
    %s115 = sadd.s32 %s114, 1
    %p118 = scmp.eq.s32.totalorder %s17, 1
    %p119 = scmp.ne.s32.totalorder %s114, %s116
    %p120 = scmp.eq.s32.totalorder %s17, 0
    %p121 = por %p119, %p120
    %p122 = scmp.ne.s32.totalorder %s114, %s116
    %p123 = scmp.eq.s32.totalorder %s22, 1
    %p124 = por %p122, %p123
    %p125 = scmp.ne.s32.totalorder %s116, %s117
    %p126 = scmp.eq.s32.totalorder %s22, 0
    %p127 = por %p125, %p126
    %p128 = scmp.ne.s32.totalorder %s116, %s117
    %p129 = scmp.eq.s32.totalorder %s23, 1
    %p130 = por %p128, %p129
    %p132 = scmp.ne.s32.totalorder %s117, %s131
    %p133 = scmp.eq.s32.totalorder %s23, 0
    %p134 = por %p132, %p133
    %s136 = sadd.s32 %s135, 1
    %p139 = scmp.eq.s32.totalorder %s17, 1
    %p140 = scmp.ne.s32.totalorder %s135, %s137
    %p141 = scmp.eq.s32.totalorder %s17, 0
    %p142 = por %p140, %p141
    %p143 = scmp.ne.s32.totalorder %s135, %s137
    %p144 = scmp.eq.s32.totalorder %s22, 1
    %p145 = por %p143, %p144
    %p146 = scmp.ne.s32.totalorder %s137, %s138
    %p147 = scmp.eq.s32.totalorder %s22, 0
    %p148 = por %p146, %p147
    %p149 = scmp.ne.s32.totalorder %s137, %s138
    %p150 = scmp.eq.s32.totalorder %s23, 1
    %p151 = por %p149, %p150
    %p153 = scmp.ne.s32.totalorder %s138, %s152
    %p154 = scmp.eq.s32.totalorder %s23, 0
    %p155 = por %p153, %p154
    %s157 = sadd.s32 %s156, 1
    %p160 = scmp.eq.s32.totalorder %s17, 1
    %p161 = scmp.ne.s32.totalorder %s156, %s158
    %p162 = scmp.eq.s32.totalorder %s17, 0
    %p163 = por %p161, %p162
    %p164 = scmp.ne.s32.totalorder %s156, %s158
    %p165 = scmp.eq.s32.totalorder %s22, 1
    %p166 = por %p164, %p165
    %p167 = scmp.ne.s32.totalorder %s158, %s159
    %p168 = scmp.eq.s32.totalorder %s22, 0
    %p169 = por %p167, %p168
    %p170 = scmp.ne.s32.totalorder %s158, %s159
    %p171 = scmp.eq.s32.totalorder %s23, 1
    %p172 = por %p170, %p171
    %p174 = scmp.ne.s32.totalorder %s159, %s173
    %p175 = scmp.eq.s32.totalorder %s23, 0
    %p176 = por %p174, %p175
    %s178 = sadd.s32 %s177, 1
    %p181 = scmp.eq.s32.totalorder %s17, 1
    %p182 = scmp.ne.s32.totalorder %s177, %s179
    %p183 = scmp.eq.s32.totalorder %s17, 0
    %p184 = por %p182, %p183
    %p185 = scmp.ne.s32.totalorder %s177, %s179
    %p186 = scmp.eq.s32.totalorder %s22, 1
    %p187 = por %p185, %p186
    %p188 = scmp.ne.s32.totalorder %s179, %s180
    %p189 = scmp.eq.s32.totalorder %s22, 0
    %p190 = por %p188, %p189
    %p191 = scmp.ne.s32.totalorder %s179, %s180
    %p192 = scmp.eq.s32.totalorder %s23, 1
    %p193 = por %p191, %p192
    %p195 = scmp.ne.s32.totalorder %s180, %s194
    %p196 = scmp.eq.s32.totalorder %s23, 0
    %p197 = por %p195, %p196
    %s199 = sadd.s32 %s198, 1
    %p202 = scmp.eq.s32.totalorder %s17, 1
    %p203 = scmp.ne.s32.totalorder %s198, %s200
    %p204 = scmp.eq.s32.totalorder %s17, 0
    %p205 = por %p203, %p204
    %p206 = scmp.ne.s32.totalorder %s198, %s200
    %p207 = scmp.eq.s32.totalorder %s22, 1
    %p208 = por %p206, %p207
    %p209 = scmp.ne.s32.totalorder %s200, %s201
    %p210 = scmp.eq.s32.totalorder %s22, 0
    %p211 = por %p209, %p210
    %p212 = scmp.ne.s32.totalorder %s200, %s201
    %p213 = scmp.eq.s32.totalorder %s23, 1
    %p214 = por %p212, %p213
    %p216 = scmp.ne.s32.totalorder %s201, %s215
    %p217 = scmp.eq.s32.totalorder %s23, 0
    %p218 = por %p216, %p217
    %s220 = sadd.s32 %s219, 1
    %p223 = scmp.eq.s32.totalorder %s17, 1
    %p224 = scmp.ne.s32.totalorder %s219, %s221
    %p225 = scmp.eq.s32.totalorder %s17, 0
    %p226 = por %p224, %p225
    %p227 = scmp.ne.s32.totalorder %s219, %s221
    %p228 = scmp.eq.s32.totalorder %s22, 1
    %p229 = por %p227, %p228
    %p230 = scmp.ne.s32.totalorder %s221, %s222
    %p231 = scmp.eq.s32.totalorder %s22, 0
    %p232 = por %p230, %p231
    %p233 = scmp.ne.s32.totalorder %s221, %s222
    %p234 = scmp.eq.s32.totalorder %s23, 1
    %p235 = por %p233, %p234
    %p237 = scmp.ne.s32.totalorder %s222, %s236
    %p238 = scmp.eq.s32.totalorder %s23, 0
    %p239 = por %p237, %p238
    %s241 = sadd.s32 %s240, 1
    %p244 = scmp.eq.s32.totalorder %s17, 1
    %p245 = scmp.ne.s32.totalorder %s240, %s242
    %p246 = scmp.eq.s32.totalorder %s17, 0
    %p247 = por %p245, %p246
    %p248 = scmp.ne.s32.totalorder %s240, %s242
    %p249 = scmp.eq.s32.totalorder %s22, 1
    %p250 = por %p248, %p249
    %p251 = scmp.ne.s32.totalorder %s242, %s243
    %p252 = scmp.eq.s32.totalorder %s22, 0
    %p253 = por %p251, %p252
    %p254 = scmp.ne.s32.totalorder %s242, %s243
    %p255 = scmp.eq.s32.totalorder %s23, 1
    %p256 = por %p254, %p255
    %p258 = scmp.ne.s32.totalorder %s243, %s257
    %p259 = scmp.eq.s32.totalorder %s23, 0
    %p260 = por %p258, %p259
    %s261 = ssub.s32 %s17, %s24
    %p262 = scmp.eq.s32.totalorder %s261, 0
    %s264 = sadd.s32 %s263, 1
    %s265 = scalar_select %p262, %s263, %s264
    %p268 = pneg %p262
    %p269 = scmp.eq.s32.totalorder %s17, 1
    %p270 = por %p268, %p269
    %p271 = scmp.ne.s32.totalorder %s263, %s266
    %p272 = scmp.eq.s32.totalorder %s17, 0
    %p273 = por %p271, %p272
    %p274 = scmp.ne.s32.totalorder %s263, %s266
    %p275 = scmp.eq.s32.totalorder %s22, 1
    %p276 = por %p274, %p275
    %p277 = scmp.ne.s32.totalorder %s266, %s267
    %p278 = scmp.eq.s32.totalorder %s22, 0
    %p279 = por %p277, %p278
    %p280 = scmp.ne.s32.totalorder %s266, %s267
    %p281 = scmp.eq.s32.totalorder %s23, 1
    %p282 = por %p280, %p281
    %p284 = scmp.ne.s32.totalorder %s267, %s283
    %p285 = scmp.eq.s32.totalorder %s23, 0
    %p286 = por %p284, %p285
    %p287 = scmp.le.s32.totalorder 1, %s17
    %p288 = scmp.lt.s32.totalorder %s17, 3
    %p289 = pnand %p287, %p288
    %p290 = pneg %p289
    // Predicated region
    $region9: #{conformer_forward.25} parent=5 // pred_check
      _
    $region10: #{conformer_forward.25} parent=5 // pred_check_branch
      %292 = sbr.rel (%p289) target = $region12
    $region11: #{conformer_forward.25} parent=5 // pred_region
      %s293 = ssub.s32 %s17, 1
      // Predicated region
      $region13: #{conformer_forward.25} parent=11 // pred_check
        %p294 = pneg %p64
      $region14: #{conformer_forward.25} parent=11 // pred_check_branch
        %296 = sbr.rel (%p294) target = $region16
      $region15: #{conformer_forward.25} parent=11 // pred_region
        _
      $region16: #{conformer_forward.25} parent=11 // pred_fallthru
        _
      // Predicated region
      $region17: #{conformer_forward.25} parent=11 // pred_check
        %p297 = pneg %p85
      $region18: #{conformer_forward.25} parent=11 // pred_check_branch
        %299 = sbr.rel (%p297) target = $region20
      $region19: #{conformer_forward.25} parent=11 // pred_region
        _
      $region20: #{conformer_forward.25} parent=11 // pred_fallthru
        _
      // Predicated region
      $region21: #{conformer_forward.25} parent=11 // pred_check
        %p300 = pneg %p106
      $region22: #{conformer_forward.25} parent=11 // pred_check_branch
        %302 = sbr.rel (%p300) target = $region24
      $region23: #{conformer_forward.25} parent=11 // pred_region
        _
      $region24: #{conformer_forward.25} parent=11 // pred_fallthru
        _
      // Predicated region
      $region25: #{conformer_forward.25} parent=11 // pred_check
        %p303 = pneg %p127
      $region26: #{conformer_forward.25} parent=11 // pred_check_branch
        %305 = sbr.rel (%p303) target = $region28
      $region27: #{conformer_forward.25} parent=11 // pred_region
        _
      $region28: #{conformer_forward.25} parent=11 // pred_fallthru
        _
      // Predicated region
      $region29: #{conformer_forward.25} parent=11 // pred_check
        %p306 = pneg %p148
      $region30: #{conformer_forward.25} parent=11 // pred_check_branch
        %308 = sbr.rel (%p306) target = $region32
      $region31: #{conformer_forward.25} parent=11 // pred_region
        _
      $region32: #{conformer_forward.25} parent=11 // pred_fallthru
        _
      // Predicated region
      $region33: #{conformer_forward.25} parent=11 // pred_check
        %p309 = pneg %p169
      $region34: #{conformer_forward.25} parent=11 // pred_check_branch
        %311 = sbr.rel (%p309) target = $region36
      $region35: #{conformer_forward.25} parent=11 // pred_region
        _
      $region36: #{conformer_forward.25} parent=11 // pred_fallthru
        _
      // Predicated region
      $region37: #{conformer_forward.25} parent=11 // pred_check
        %p312 = pneg %p190
      $region38: #{conformer_forward.25} parent=11 // pred_check_branch
        %314 = sbr.rel (%p312) target = $region40
      $region39: #{conformer_forward.25} parent=11 // pred_region
        _
      $region40: #{conformer_forward.25} parent=11 // pred_fallthru
        _
      // Predicated region
      $region41: #{conformer_forward.25} parent=11 // pred_check
        %p315 = pneg %p211
      $region42: #{conformer_forward.25} parent=11 // pred_check_branch
        %317 = sbr.rel (%p315) target = $region44
      $region43: #{conformer_forward.25} parent=11 // pred_region
        _
      $region44: #{conformer_forward.25} parent=11 // pred_fallthru
        _
      // Predicated region
      $region45: #{conformer_forward.25} parent=11 // pred_check
        %p318 = pneg %p232
      $region46: #{conformer_forward.25} parent=11 // pred_check_branch
        %320 = sbr.rel (%p318) target = $region48
      $region47: #{conformer_forward.25} parent=11 // pred_region
        _
      $region48: #{conformer_forward.25} parent=11 // pred_fallthru
        _
      // Predicated region
      $region49: #{conformer_forward.25} parent=11 // pred_check
        %p321 = pneg %p253
      $region50: #{conformer_forward.25} parent=11 // pred_check_branch
        %323 = sbr.rel (%p321) target = $region52
      $region51: #{conformer_forward.25} parent=11 // pred_region
        _
      $region52: #{conformer_forward.25} parent=11 // pred_fallthru
        _
    $region12: #{conformer_forward.25} parent=5 // pred_fallthru
      _
    %p324 = scmp.lt.s32.totalorder %s17, 2
    // Predicated region
    $region53: #{conformer_forward.25} parent=5 // pred_check
      %p325 = pneg %p324
    $region54: #{conformer_forward.25} parent=5 // pred_check_branch
      %327 = sbr.rel (%p325) target = $region56
    $region55: #{conformer_forward.25} parent=5 // pred_region
      // Predicated region
      $region57: #{conformer_forward.25} parent=55 // pred_check
        %p328 = pneg %p37
      $region58: #{conformer_forward.25} parent=55 // pred_check_branch
        %330 = sbr.rel (%p328) target = $region60
      $region59: #{conformer_forward.25} parent=55 // pred_region
        %p331 = scmp.lt.s32.totalorder %s17, 1
        %s332 = scalar_select %p331, %s17, 1
        %s333 = smul.addr %s332, 4
        %s334 = scalar_lea.vmem %s0, %s333
      $region60: #{conformer_forward.25} parent=55 // pred_fallthru
        _
    $region56: #{conformer_forward.25} parent=5 // pred_fallthru
      _
    %p335 = scmp.le.s32.totalorder 1, %s17
    %p336 = scmp.lt.s32.totalorder %s17, 3
    %p337 = pnand %p335, %p336
    %p338 = pneg %p337
    // Predicated region
    $region61: #{conformer_forward.25} parent=5 // pred_check
      _
    $region62: #{conformer_forward.25} parent=5 // pred_check_branch
      %340 = sbr.rel (%p337) target = $region64
    $region63: #{conformer_forward.25} parent=5 // pred_region
      %s341 = ssub.s32 %s17, 1
      %p342 = scmp.lt.s32.totalorder %s22, 1
      %s343 = scalar_select %p342, %s22, 1
      %s344 = smul.addr %s343, 4
      %s345 = scalar_lea.vmem %s0, %s344
      %p346 = pneg %p43
      %p347 = pneg %p40
      %p348 = pneg %p64
      %p349 = pneg %p61
      %p350 = pneg %p85
      %p351 = pneg %p82
      %p352 = pneg %p106
      %p353 = pneg %p103
      %p354 = pneg %p127
      %p355 = pneg %p124
      %p356 = pneg %p148
      %p357 = pneg %p145
      %p358 = pneg %p169
      %p359 = pneg %p166
      %p360 = pneg %p190
      %p361 = pneg %p187
      %p362 = pneg %p211
      %p363 = pneg %p208
      %p364 = pneg %p232
      %p365 = pneg %p229
      %p366 = pneg %p253
      %p367 = pneg %p250
      %p368 = pneg %p279
      %p369 = pneg %p276
      %p370 = scmp.lt.s32.totalorder %s22, 1
      %s371 = scalar_select %p370, %s22, 1
      %s372 = smul.addr %s371, 4
      %s373 = scalar_lea.vmem %s11, %s372
      %p374 = scmp.lt.s32.totalorder %s22, 1
      %s375 = scalar_select %p374, %s22, 1
      %s376 = smul.addr %s375, 4
      %s377 = scalar_lea.vmem %s0, %s376
      %p378 = scmp.lt.s32.totalorder %s22, 1
      %s379 = scalar_select %p378, %s22, 1
      %s380 = smul.addr %s379, 4
      %s381 = scalar_lea.vmem %s11, %s380
      %v383 = vld [vmem:[%s377] sm:$0xf]
      %vm384 = vcmask 257024
      %v385 = vsel %vm384, %v383, 0.0
      %386 = vadd.xlane.f32.xlu0 %v385
      %v387 = vpop.xlane.xlu0 %386
      %v388 = vrcp.pop 32.0
      %v389 = vmul.f32 32.0, %v388
      %v390 = vsub.f32 1.0, %v389
      %v391 = vmul.f32 %v388, %v390
      %v392 = vadd.f32 %v388, %v391
      %vm393 = vweird.f32 %v388
      %v394 = vsel %vm393, %v388, %v392
      %v395 = vmul.f32 %v387, %v394
      %v396 = vsub.f32 %v383, %v395
      %v397 = vmul.f32 %v396, %v396
      %v398 = vsel %vm384, %v397, 0.0
      %399 = vadd.xlane.f32.xlu0 %v398
      %v400 = vpop.xlane.xlu0 %399
      %v401 = vmul.f32 %v400, %v394
      %v402 = vadd.f32 %v401, 1e-05
      %v403 = vrsqrt.pop %v402
      %v404 = vmul.f32 %v403, %v402
      %v405 = vmul.f32 %v404, %v403
      %v406 = vmul.f32 0.5, %v405
      %v407 = vsub.f32 1.5, %v406
      %v408 = vmul.f32 %v403, %v407
      %vm409 = vweird.f32 %v402
      %vm410 = vweird.f32 %v403
      %vm411 = vmor %vm409, %vm410
      %v412 = vsel %vm411, %v403, %v408
      %v413 = vmul.f32 %v396, %v412
      %v414 = vld [vmem:[%s1] sm:$0x1]
      %v416 = vperm.slane %v414, 0
      %v418 = vmul.f32 %v413, %v416
      %v419 = vld [vmem:[%s2] sm:$0x1]
      %v421 = vperm.slane %v419, 0
      %v423 = vadd.f32 %v418, %v421
      %v424 = vpack.c.bf16 %v423, %v423
      %v425 = vld [vmem:[%s3] sm:$0xf]
      %v426 = vld [vmem:[%s3 + $0x4] sm:$0xf]
      %v427 = vld [vmem:[%s3 + $0x8] sm:$0xf]
      %v428 = vld [vmem:[%s3 + $0xc] sm:$0xf]
      %v429 = vld [vmem:[%s4] sm:$0x1]
      %v431 = vperm.slane %v429, 0
      %v437 = vunpack.c.l.b16 %v425
      %v438 = vunpack.c.l.b16 %v426
      %v439 = vunpack.c.l.b16 %v427
      %v440 = vunpack.c.l.b16 %v428
      %v441 = vpack.c.b16 %v438, %v437
      %v442 = vpack.c.b16 %v440, %v439
      %vm445 = vcmask 261120
      %v447 = vsel %vm445, %v424, 0
      %449 = vmatpush.bf16.msra.mxu0 0
      %450 = vmatpush.bf16.msra.mxu0 0
      %451 = vmatpush.bf16.msra.mxu0 0
      %452 = vmatpush.bf16.msra.mxu0 0
      %453 = vmatpush.bf16.msra.mxu0 0
      %454 = vmatpush.bf16.msra.mxu0 0
      %455 = vmatpush.bf16.msra.mxu0 %v442
      %456 = vmatpush.bf16.msra.mxu0 %v441
      %457 = vmatmul.bf16.gmra.mxu0 %v447
      %v458 = vpop.f32.mrf.mxu0
      %v459 = vadd.f32 %v431, %v458
      %v460 = vpop.f32.mrf.mxu0
      %461 = vdwg.mxu0
      %v462 = vxor.u32 %v459, 2147483648
      %v463 = vmul.f32 %v462, 1.442695
      %v464 = vpow.pop %v463
      %v465 = vadd.f32 %v464, 1.0
      %v466 = vrcp.pop %v465
      %v467 = vmul.f32 %v465, %v466
      %v468 = vsub.f32 1.0, %v467
      %v469 = vmul.f32 %v466, %v468
      %v470 = vadd.f32 %v466, %v469
      %vm471 = vweird.f32 %v465
      %vm472 = vweird.f32 %v466
      %vm473 = vmor %vm471, %vm472
      %v474 = vsel %vm473, %v466, %v470
      %v475 = vand.u32 2147483647, %v465
      %vm476 = vcmp.eq.f32.partialorder %v475, 8.507059e+37
      %v477 = vand.u32 %v465, 2147483648
      %v478 = vor.u32 1.1754944e-38, %v477
      %v479 = vsel %vm476, %v478, %v474
      %v480 = vmul.f32 1.0, %v479
      %482 = vrot.lane.b32.xlu0 %v480, 96
      %v483 = vpop.permute.xlu0 %482
      %v485 = vmul.f32 %v459, %v483
      %v487 = vrot.slane %v485, 7
      %vm489 = vcmask 1040384
      %v490 = vsel %vm489, 0.0, %v487
      %vm491 = vcmask 1044480
      %v492 = vsel %vm491, %v490, 0.0
      %v493 = vld [vmem:[%s5] sm:$0x7]
      %v494 = vperm.slane %v493, 0
      %v495 = vmul.f32 %v492, %v494
      %v496 = vadd.f32 %v495, 0.0
      %v497 = vperm.slane %v493, 1
      %v498 = vmul.f32 %v492, %v497
      %v500 = vrot.slane %v498, 1
      %v502 = vadd.f32 %v496, %v500
      %v503 = vperm.slane %v493, 2
      %v504 = vmul.f32 %v492, %v503
      %v506 = vrot.slane %v504, 2
      %v508 = vadd.f32 %v502, %v506
      %v509 = vld [vmem:[%s6] sm:$0x1]
      %v511 = vperm.slane %v509, 0
      %v513 = vadd.f32 %v508, %v511
      %v514 = vld [vmem:[%s7] sm:$0x1]
      %v516 = vperm.slane %v514, 0
      %v518 = vmul.f32 %v513, %v516
      %v519 = vld [vmem:[%s8] sm:$0x1]
      %v521 = vperm.slane %v519, 0
      %v523 = vadd.f32 %v518, %v521
      %v524 = vxor.u32 %v523, 2147483648
      %v525 = vmul.f32 %v524, 1.442695
      %v526 = vpow.pop %v525
      %v527 = vadd.f32 %v526, 1.0
      %v528 = vrcp.pop %v527
      %v529 = vmul.f32 %v527, %v528
      %v530 = vsub.f32 1.0, %v529
      %v531 = vmul.f32 %v528, %v530
      %v532 = vadd.f32 %v528, %v531
      %vm533 = vweird.f32 %v527
      %vm534 = vweird.f32 %v528
      %vm535 = vmor %vm533, %vm534
      %v536 = vsel %vm535, %v528, %v532
      %v537 = vand.u32 2147483647, %v527
      %vm538 = vcmp.eq.f32.partialorder %v537, 8.507059e+37
      %v539 = vand.u32 %v527, 2147483648
      %v540 = vor.u32 1.1754944e-38, %v539
      %v541 = vsel %vm538, %v540, %v536
      %v542 = vmul.f32 1.0, %v541
      %v543 = vmul.f32 %v523, %v542
      %v544 = vpack.c.bf16 %v543, %v543
      %v545 = vld [vmem:[%s9] sm:$0xf]
      %v546 = vld [vmem:[%s9 + $0x4] sm:$0xf]
      %v547 = vld [vmem:[%s9 + $0x8] sm:$0xf]
      %v548 = vld [vmem:[%s9 + $0xc] sm:$0xf]
      %v549 = vld [vmem:[%s10] sm:$0x1]
      %v551 = vperm.slane %v549, 0
      %v557 = vunpack.c.l.b16 %v545
      %v558 = vunpack.c.l.b16 %v546
      %v559 = vunpack.c.l.b16 %v547
      %v560 = vunpack.c.l.b16 %v548
      %v561 = vpack.c.b16 %v558, %v557
      %v562 = vpack.c.b16 %v560, %v559
      %v566 = vsel %vm445, %v544, 0
      %568 = vmatpush.bf16.msra.mxu0 0
      %569 = vmatpush.bf16.msra.mxu0 0
      %570 = vmatpush.bf16.msra.mxu0 0
      %571 = vmatpush.bf16.msra.mxu0 0
      %572 = vmatpush.bf16.msra.mxu0 0
      %573 = vmatpush.bf16.msra.mxu0 0
      %574 = vmatpush.bf16.msra.mxu0 %v562
      %575 = vmatpush.bf16.msra.mxu0 %v561
      %576 = vmatmul.bf16.gmra.mxu0 %v566
      %v577 = vpop.f32.mrf.mxu0
      %v578 = vadd.f32 %v551, %v577
      %v579 = vpop.f32.mrf.mxu0
      %580 = vdwg.mxu0
      %v581 = vadd.f32 %v383, %v578
      %582 = vst.msk [vmem:[%s381] sm:$0xf] %vm384, %v581
      %p583 = scmp.lt.s32.totalorder %s22, 1
      %s584 = scalar_select %p583, %s22, 1
      %s585 = smul.addr %s584, 4
      %s586 = scalar_lea.vmem %s11, %s585
      // Predicated region
      $region65: #{conformer_forward.25} parent=63 // pred_check
        %p587 = pneg %p276
      $region66: #{conformer_forward.25} parent=63 // pred_check_branch
        %589 = sbr.rel (%p587) target = $region68
      $region67: #{conformer_forward.25} parent=63 // pred_region
        _
      $region68: #{conformer_forward.25} parent=63 // pred_fallthru
        _
    $region64: #{conformer_forward.25} parent=5 // pred_fallthru
      _
    %p590 = scmp.le.s32.totalorder 2, %s17
    // Predicated region
    $region69: #{conformer_forward.25} parent=5 // pred_check
      %p591 = pneg %p590
    $region70: #{conformer_forward.25} parent=5 // pred_check_branch
      %593 = sbr.rel (%p591) target = $region72
    $region71: #{conformer_forward.25} parent=5 // pred_region
      %s594 = ssub.s32 %s17, 2
      // Predicated region
      $region73: #{conformer_forward.25} parent=71 // pred_check
        %p595 = pneg %p282
      $region74: #{conformer_forward.25} parent=71 // pred_check_branch
        %597 = sbr.rel (%p595) target = $region76
      $region75: #{conformer_forward.25} parent=71 // pred_region
        %p598 = scmp.lt.s32.totalorder %s23, 1
        %s599 = scalar_select %p598, %s23, 1
        %s600 = smul.addr %s599, 4
        %s601 = scalar_lea.vmem %s11, %s600
      $region76: #{conformer_forward.25} parent=71 // pred_fallthru
        _
    $region72: #{conformer_forward.25} parent=5 // pred_fallthru
      _
  $region6: #{conformer_forward.25} parent=0 // loop_footer
    %s21 = sadd.s32 1, %s17
  $region7: #{conformer_forward.25} parent=0 // loop_footer_branch
    %16 = sbr.rel target = $region3
  $region8: #{conformer_forward.25} parent=0 // loop_exit
    _

// kernel: conformer_forward.27
$region0: #{conformer_forward.27}
  #allocation0 [shape = 'u32[]', space=smem, size = 0x4, offset = 0x4, fixed_abs, tag = 'smem constant byte address 0x4 - core index']
  #allocation1 [shape = 'u32[72,128]{1,0:T(1,128)}', space=vmem, size = 0x9000, scoped, tag = 'internal scratch']
  %s0 = inlined_call_operand.vmem [shape: f32[8,32], index: 0, kind: input, shape index: {}]
  %s1 = inlined_call_operand.vmem [shape: f32[1,32], index: 1, kind: input, shape index: {}]
  %s2 = inlined_call_operand.vmem [shape: f32[1,32], index: 2, kind: input, shape index: {}]
  %s3 = inlined_call_operand.vmem [shape: f32[8,32], index: 3, kind: output, shape index: {}]
  %s4 = sld [smem:[#allocation0]]
  $region22: #{conformer_forward.27} parent=0
    _
  %s6 = ssub.s32 1, %s4
  %s7 = scalar_select 0, %s6, %s4
  // Predicated region
  $region2: #{conformer_forward.27} parent=0 // pred_check
    _
  $region3: #{conformer_forward.27} parent=0 // pred_check_branch
    %9 = sbr.rel (0) target = $region5
  $region4: #{conformer_forward.27} parent=0 // pred_region
    _
  $region5: #{conformer_forward.27} parent=0 // pred_fallthru
    _
  // Predicated region
  $region6: #{conformer_forward.27} parent=0 // pred_check
    _
  $region7: #{conformer_forward.27} parent=0 // pred_check_branch
    %11 = sbr.rel (0) target = $region9
  $region8: #{conformer_forward.27} parent=0 // pred_region
    _
  $region9: #{conformer_forward.27} parent=0 // pred_fallthru
    _
  // Predicated region
  $region10: #{conformer_forward.27} parent=0 // pred_check
    _
  $region11: #{conformer_forward.27} parent=0 // pred_check_branch
    %13 = sbr.rel (0) target = $region13
  $region12: #{conformer_forward.27} parent=0 // pred_region
    _
  $region13: #{conformer_forward.27} parent=0 // pred_fallthru
    _
  %v14 = vld [vmem:[%s0] sm:$0xff]
  %vm15 = vcmask 261120
  %v16 = vsel %vm15, %v14, 0.0
  %17 = vadd.xlane.f32.xlu0 %v16
  %v18 = vpop.xlane.xlu0 %17
  %v19 = vrcp.pop 32.0
  %v20 = vmul.f32 32.0, %v19
  %v21 = vsub.f32 1.0, %v20
  %v22 = vmul.f32 %v19, %v21
  %v23 = vadd.f32 %v19, %v22
  %vm24 = vweird.f32 %v19
  %v25 = vsel %vm24, %v19, %v23
  %v26 = vmul.f32 %v18, %v25
  %v27 = vsub.f32 %v14, %v26
  %v28 = vmul.f32 %v27, %v27
  %v29 = vsel %vm15, %v28, 0.0
  %30 = vadd.xlane.f32.xlu0 %v29
  %v31 = vpop.xlane.xlu0 %30
  %v32 = vmul.f32 %v31, %v25
  %v33 = vadd.f32 %v32, 1e-05
  %v34 = vrsqrt.pop %v33
  %v35 = vmul.f32 %v34, %v33
  %v36 = vmul.f32 %v35, %v34
  %v37 = vmul.f32 0.5, %v36
  %v38 = vsub.f32 1.5, %v37
  %v39 = vmul.f32 %v34, %v38
  %vm40 = vweird.f32 %v33
  %vm41 = vweird.f32 %v34
  %vm42 = vmor %vm40, %vm41
  %v43 = vsel %vm42, %v34, %v39
  %v44 = vmul.f32 %v27, %v43
  %v45 = vld [vmem:[%s1] sm:$0x1]
  %v47 = vperm.slane %v45, 0
  %v49 = vmul.f32 %v44, %v47
  %v50 = vld [vmem:[%s2] sm:$0x1]
  %v52 = vperm.slane %v50, 0
  %v54 = vadd.f32 %v49, %v52
  %55 = vst.msk [vmem:[%s3] sm:$0xff] %vm15, %v54
  // Predicated region
  $region14: #{conformer_forward.27} parent=0 // pred_check
    _
  $region15: #{conformer_forward.27} parent=0 // pred_check_branch
    %57 = sbr.rel (0) target = $region17
  $region16: #{conformer_forward.27} parent=0 // pred_region
    _
  $region17: #{conformer_forward.27} parent=0 // pred_fallthru
    _
  // Predicated region
  $region18: #{conformer_forward.27} parent=0 // pred_check
    _
  $region19: #{conformer_forward.27} parent=0 // pred_check_branch
    %59 = sbr.rel (0) target = $region21
  $region20: #{conformer_forward.27} parent=0 // pred_region
    _
  $region21: #{conformer_forward.27} parent=0 // pred_fallthru
    _

// kernel: conformer_forward.35
$region0: #{conformer_forward.35}
  #allocation0 [shape = 'u32[]', space=smem, size = 0x4, offset = 0x4, fixed_abs, tag = 'smem constant byte address 0x4 - core index']
  #allocation1 [shape = 'u32[72,128]{1,0:T(1,128)}', space=vmem, size = 0x9000, scoped, tag = 'internal scratch']
  %s0 = inlined_call_operand.vmem [shape: f32[8,32], index: 0, kind: input, shape index: {}]
  %s1 = inlined_call_operand.vmem [shape: bf16[32,16], index: 1, kind: input, shape index: {}]
  %s2 = inlined_call_operand.vmem [shape: f32[1,16], index: 2, kind: input, shape index: {}]
  %s3 = inlined_call_operand.hbm [shape: f32[8,16], index: 3, kind: output, shape index: {}]
  %s4 = sld [smem:[#allocation0]]
  $region22: #{conformer_forward.35} parent=0
    _
  %s6 = ssub.s32 1, %s4
  %s7 = scalar_select 0, %s6, %s4
  $region1: #{conformer_forward.35} parent=0
    #allocation2 [shape = 'u8[4096]{0}', space=vmem, size = 0x1000, scoped, tag = 'output window, operand 0, single buffered']
    #allocation3 [shape = 's32[1]{0}', space=sflag, size = 0x4, scoped, tag = 'scoped memory for conformer_forward.35']
    %8 = vsyncpa [#allocation3], 0
    // Predicated region
    $region2: #{conformer_forward.35} parent=1 // pred_check
      _
    $region3: #{conformer_forward.35} parent=1 // pred_check_branch
      %10 = sbr.rel (0) target = $region5
    $region4: #{conformer_forward.35} parent=1 // pred_region
      _
    $region5: #{conformer_forward.35} parent=1 // pred_fallthru
      _
    // Predicated region
    $region6: #{conformer_forward.35} parent=1 // pred_check
      _
    $region7: #{conformer_forward.35} parent=1 // pred_check_branch
      %12 = sbr.rel (0) target = $region9
    $region8: #{conformer_forward.35} parent=1 // pred_region
      _
    $region9: #{conformer_forward.35} parent=1 // pred_fallthru
      _
    // Predicated region
    $region10: #{conformer_forward.35} parent=1 // pred_check
      _
    $region11: #{conformer_forward.35} parent=1 // pred_check_branch
      %14 = sbr.rel (0) target = $region13
    $region12: #{conformer_forward.35} parent=1 // pred_region
      _
    $region13: #{conformer_forward.35} parent=1 // pred_fallthru
      _
    %v16 = vld [vmem:[%s0] sm:$0xff]
    %v17 = vpack.c.bf16 %v16, %v16
    %v18 = vld [vmem:[%s1] sm:$0xf]
    %v19 = vld [vmem:[%s1 + $0x4] sm:$0xf]
    %v20 = vld [vmem:[%s1 + $0x8] sm:$0xf]
    %v21 = vld [vmem:[%s1 + $0xc] sm:$0xf]
    %v22 = vld [vmem:[%s2] sm:$0x1]
    %v24 = vperm.slane %v22, 0
    %v30 = vunpack.c.l.b16 %v18
    %v31 = vunpack.c.l.b16 %v19
    %v32 = vunpack.c.l.b16 %v20
    %v33 = vunpack.c.l.b16 %v21
    %v34 = vpack.c.b16 %v31, %v30
    %v35 = vpack.c.b16 %v33, %v32
    %vm38 = vcmask 261120
    %v40 = vsel %vm38, %v17, 0
    %42 = vmatpush.bf16.msra.mxu0 0
    %43 = vmatpush.bf16.msra.mxu0 0
    %44 = vmatpush.bf16.msra.mxu0 0
    %45 = vmatpush.bf16.msra.mxu0 0
    %46 = vmatpush.bf16.msra.mxu0 0
    %47 = vmatpush.bf16.msra.mxu0 0
    %48 = vmatpush.bf16.msra.mxu0 %v35
    %49 = vmatpush.bf16.msra.mxu0 %v34
    %50 = vmatmul.bf16.gmra.mxu0 %v40
    %v51 = vpop.f32.mrf.mxu0
    %v52 = vadd.f32 %v24, %v51
    %v53 = vpop.f32.mrf.mxu0
    %54 = vdwg.mxu0
    %vm55 = vcmask 130048
    %v56 = vsel %vm55, %v52, -inf
    %57 = vmax.xlane.f32.xlu0 %v56
    %v58 = vpop.xlane.xlu0 %57
    %v59 = vsub.f32 %v52, %v58
    %v60 = vmul.f32 %v59, 1.442695
    %v61 = vpow.pop %v60
    %v62 = vsel %vm55, %v61, 0.0
    %63 = vadd.xlane.f32.xlu0 %v62
    %v64 = vpop.xlane.xlu0 %63
    %v65 = vlog2.pop %v64
    %v66 = vmul.f32 %v65, 0.6931472
    %v67 = vadd.f32 %v66, %v58
    %v68 = vsub.f32 %v52, %v67
    %69 = vst.msk [vmem:[#allocation2] sm:$0xff] %vm55, %v68
    // Predicated region
    $region14: #{conformer_forward.35} parent=1 // pred_check
      _
    $region15: #{conformer_forward.35} parent=1 // pred_check_branch
      %71 = sbr.rel (0) target = $region17
    $region16: #{conformer_forward.35} parent=1 // pred_region
      %73 = vsyncadd [#allocation3], 0
      %s75 = sshll.u32 [#allocation2], 4
      %s76 = int_to_ptr.vmem [resolvable:$true] %s75
      %s77 = sshll.u32 %s3, 4
      %s78 = int_to_ptr.hbm [resolvable:$true] %s77
      %80 = dma.vmem_to_hbm [thread:$0]  %s76, 128, %s78, [#allocation3]
    $region17: #{conformer_forward.35} parent=1 // pred_fallthru
      _
    // Predicated region
    $region18: #{conformer_forward.35} parent=1 // pred_check
      _
    $region19: #{conformer_forward.35} parent=1 // pred_check_branch
      %82 = sbr.rel (0) target = $region21
    $region20: #{conformer_forward.35} parent=1 // pred_region
      %84 = dma.done [#allocation3], 128
    $region21: #{conformer_forward.35} parent=1 // pred_fallthru
      _
    %85 = vsyncpa [#allocation3], 1

</llo_original>
